<compile_context>
chip_gen: v5e
topology: v5e:2x2
jax: 0.10.0
libtpu: 0.0.40
codegen_flags: <defaults>
</compile_context>

<pallas_src>
import jax
import jax.numpy as jnp
from jax.experimental import pallas as pl
from jax.experimental.pallas import tpu as pltpu

INPUT_DIM = 784          # MNIST pixels
LATENT_DIM = 20
HIDDEN = 128
BETA = 20.0              # only enters the loss, not forward()

OUT_PAD = 896            # 7 * 128: lane-aligned padding of recon / w4's N dim
HEAD_ALIGN = 128         # mu -> lanes [0:128), logvar -> lanes [128:256)
HEAD_PAD = 2 * HEAD_ALIGN
TB_MAX = 512             # largest batch tile (VMEM re-checked, see header)


def _round_up(n, m):
    return ((n + m - 1) // m) * m


def _pad_axis(x, axis, size):
    pad = size - x.shape[axis]
    if pad <= 0:
        return x
    widths = [(0, 0)] * x.ndim
    widths[axis] = (0, pad)
    return jnp.pad(x, widths)


def _pick_tb(batch):
    """>= 2 grid steps whenever possible (v7x megacore), multiple of 16
    sublanes (covers bf16 output packing), capped at TB_MAX."""
    half = -(-batch // 2)
    return max(16, min(TB_MAX, _round_up(half, 16)))


def beta_vae_kernel(x_ref, eps_ref,
                    w1_ref, b1_ref,
                    whead_ref, bhead_ref,
                    w3_ref, b3_ref,
                    w4_ref, b4_ref,
                    recon_ref, head_ref):
    # bf16 MXU operands, f32 accumulation.  The f32 -> bf16 cast of x is fused
    # here so the wrapper never does an extra HBM pass over the input.
    x = x_ref[...].astype(jnp.bfloat16)                                # (tb, 784)

    # ---- encode: fc1 -> relu ----
    h1 = jnp.dot(x, w1_ref[...], preferred_element_type=jnp.float32) + b1_ref[...]
    h1 = jnp.maximum(h1, 0.0).astype(jnp.bfloat16)                     # (tb, 128)

    # ---- fused, vreg-aligned mu|logvar head: one (128, 256) matmul ----
    head = jnp.dot(h1, whead_ref[...], preferred_element_type=jnp.float32) + bhead_ref[...]
    head_ref[...] = head                                               # (tb, 256) f32
    mu = head[:, :HEAD_ALIGN]                                          # lanes [0:20) valid
    logvar = head[:, HEAD_ALIGN:]                                      # lanes [0:20) valid

    # ---- reparameterize: z = mu + eps * exp(0.5 * logvar) ----
    # Padded lanes [20:128) are exactly zero (zero head cols/bias, zero eps),
    # and w3's padded rows are zero, so they contribute nothing to fc3.
    z = mu + eps_ref[...] * jnp.exp(0.5 * logvar)                      # (tb, 128) f32

    # ---- decode: fc3 -> relu -> fc4 -> sigmoid ----
    h3 = jnp.dot(z.astype(jnp.bfloat16), w3_ref[...],
                 preferred_element_type=jnp.float32) + b3_ref[...]
    h3 = jnp.maximum(h3, 0.0).astype(jnp.bfloat16)                     # (tb, 128)
    logits = jnp.dot(h3, w4_ref[...], preferred_element_type=jnp.float32) + b4_ref[...]

    # sigmoid(x) = 1 / (1 + exp(-x)): exp + approx reciprocal both land on the
    # EUP slot, keeping the 896-wide elementwise stage off the VPU divider.
    recon = pl.reciprocal(1.0 + jnp.exp(-logits), approx=True)
    recon_ref[...] = recon.astype(recon_ref.dtype)                     # bf16 writeback


def beta_vae_forward(x, eps, params, *, tb=None):
    """x: (B, 784) f32, eps: (B, 20) f32.

    Returns (recon_padded, head):
      recon_padded: (Bp, OUT_PAD) bf16 -- rows >= B and lanes >= 784 are padding
                    (crop/mask lazily downstream; never copied here).
      head:         (Bp, HEAD_PAD) f32 -- mu in lanes [0:20), logvar in [128:148).
    """
    B = x.shape[0]
    if tb is None:
        tb = _pick_tb(B)
    assert tb % 16 == 0
    n_tiles = pl.cdiv(B, tb)
    Bp = n_tiles * tb

    # ---- wrapper-side layout plumbing (no full-size pass over x when B == Bp) ----
    x_p = _pad_axis(x, 0, Bp)                                           # (Bp, 784) f32
    eps_p = _pad_axis(_pad_axis(eps, 1, HEAD_ALIGN), 0, Bp).astype(jnp.float32)

    w1 = params["w1"].astype(jnp.bfloat16)                              # (784, 128)
    b1 = params["b1"].astype(jnp.float32)                               # (1, 128)

    # fused mu|logvar head, vreg-aligned: w_mu -> lanes [0:128), w_lv -> [128:256)
    whead = jnp.zeros((HIDDEN, HEAD_PAD), jnp.float32)
    whead = whead.at[:, :LATENT_DIM].set(params["w_mu"])
    whead = whead.at[:, HEAD_ALIGN:HEAD_ALIGN + LATENT_DIM].set(params["w_lv"])
    whead = whead.astype(jnp.bfloat16)                                  # (128, 256)
    bhead = jnp.zeros((1, HEAD_PAD), jnp.float32)
    bhead = bhead.at[:, :LATENT_DIM].set(params["b_mu"])
    bhead = bhead.at[:, HEAD_ALIGN:HEAD_ALIGN + LATENT_DIM].set(params["b_lv"])

    w3 = jnp.zeros((HEAD_ALIGN, HIDDEN), jnp.float32)
    w3 = w3.at[:LATENT_DIM, :].set(params["w3"]).astype(jnp.bfloat16)   # (128, 128)
    b3 = params["b3"].astype(jnp.float32)                               # (1, 128)
    w4 = _pad_axis(params["w4"], 1, OUT_PAD).astype(jnp.bfloat16)       # (128, 896)
    b4 = _pad_axis(params["b4"], 1, OUT_PAD).astype(jnp.float32)        # (1, 896)

    bmap = lambda i: (i, 0)     # batch-tiled arrays
    wmap = lambda i: (0, 0)     # grid-invariant (resident) weights / biases

    in_specs = [
        pl.BlockSpec((tb, INPUT_DIM), bmap),          # x (full 784-lane dim, f32)
        pl.BlockSpec((tb, HEAD_ALIGN), bmap),         # eps (padded to 128 lanes)
        pl.BlockSpec((INPUT_DIM, HIDDEN), wmap),      # w1
        pl.BlockSpec((1, HIDDEN), wmap),              # b1
        pl.BlockSpec((HIDDEN, HEAD_PAD), wmap),       # w_head (mu | logvar)
        pl.BlockSpec((1, HEAD_PAD), wmap),            # b_head
        pl.BlockSpec((HEAD_ALIGN, HIDDEN), wmap),     # w3 (rows >= 20 zero)
        pl.BlockSpec((1, HIDDEN), wmap),              # b3
        pl.BlockSpec((HIDDEN, OUT_PAD), wmap),        # w4
        pl.BlockSpec((1, OUT_PAD), wmap),             # b4
    ]
    out_specs = [
        pl.BlockSpec((tb, OUT_PAD), bmap),            # recon (bf16, padded)
        pl.BlockSpec((tb, HEAD_PAD), bmap),           # fused mu|logvar head (f32)
    ]
    out_shape = [
        jax.ShapeDtypeStruct((Bp, OUT_PAD), jnp.bfloat16),
        jax.ShapeDtypeStruct((Bp, HEAD_PAD), jnp.float32),
    ]

    recon_p, head = pl.pallas_call(
        beta_vae_kernel,
        grid=(n_tiles,),
        in_specs=in_specs,
        out_specs=out_specs,
        out_shape=out_shape,
        compiler_params=pltpu.CompilerParams(
            dimension_semantics=("parallel",),
            # re-derived for tb<=512 (~15-20 MiB incl. temps); also overrides
            # v5e's 16 MiB scoped default, and fits v7x's 64 MiB physical VMEM.
            vmem_limit_bytes=32 * 1024 * 1024,
        ),
    )(x_p, eps_p, w1, b1, whead, bhead, w3, b3, w4, b4)
    return recon_p, head


def init_params(key):
    """Deterministic init, PyTorch-Linear-style uniform(-1/sqrt(fan_in), 1/sqrt(fan_in)).
    Weights are stored as (in, out)."""
    def linear(key, fan_in, fan_out):
        kw, kb = jax.random.split(key)
        bound = 1.0 / jnp.sqrt(jnp.float32(fan_in))
        w = jax.random.uniform(kw, (fan_in, fan_out), jnp.float32, -bound, bound)
        b = jax.random.uniform(kb, (1, fan_out), jnp.float32, -bound, bound)
        return w, b

    k1, k2, k3, k4, k5 = jax.random.split(key, 5)
    w1, b1 = linear(k1, INPUT_DIM, HIDDEN)
    w_mu, b_mu = linear(k2, HIDDEN, LATENT_DIM)
    w_lv, b_lv = linear(k3, HIDDEN, LATENT_DIM)
    w3, b3 = linear(k4, LATENT_DIM, HIDDEN)
    w4, b4 = linear(k5, HIDDEN, INPUT_DIM)
    return dict(w1=w1, b1=b1, w_mu=w_mu, b_mu=b_mu, w_lv=w_lv, b_lv=b_lv,
                w3=w3, b3=b3, w4=w4, b4=b4)


def reference_forward_f32(x, eps, p):
    """Original f32 semantics of the torch module."""
    h1 = jnp.maximum(x @ p["w1"] + p["b1"], 0.0)
    mu = h1 @ p["w_mu"] + p["b_mu"]
    logvar = h1 @ p["w_lv"] + p["b_lv"]
    z = mu + eps * jnp.exp(0.5 * logvar)
    h3 = jnp.maximum(z @ p["w3"] + p["b3"], 0.0)
    recon = jax.nn.sigmoid(h3 @ p["w4"] + p["b4"])
    return recon, mu, logvar


def reference_forward_bf16(x, eps, p):
    """Reference mirroring the kernel's bf16-operand / f32-accumulate recipe."""
    f32, bf16 = jnp.float32, jnp.bfloat16
    h1 = jnp.maximum(
        jnp.dot(x.astype(bf16), p["w1"].astype(bf16), preferred_element_type=f32)
        + p["b1"], 0.0).astype(bf16)
    mu = jnp.dot(h1, p["w_mu"].astype(bf16), preferred_element_type=f32) + p["b_mu"]
    logvar = jnp.dot(h1, p["w_lv"].astype(bf16), preferred_element_type=f32) + p["b_lv"]
    z = mu + eps * jnp.exp(0.5 * logvar)
    h3 = jnp.maximum(
        jnp.dot(z.astype(bf16), p["w3"].astype(bf16), preferred_element_type=f32)
        + p["b3"], 0.0)
    logits = jnp.dot(h3.astype(bf16), p["w4"].astype(bf16),
                     preferred_element_type=f32) + p["b4"]
    return jax.nn.sigmoid(logits), mu, logvar


if __name__ == "__main__":
    B = 256          # -> tb=128, two grid steps: both v7x TensorCores active
    key = jax.random.PRNGKey(0)
    k_params, k_x, k_eps = jax.random.split(key, 3)

    params = init_params(k_params)
    x = jax.random.uniform(k_x, (B, INPUT_DIM), jnp.float32)        # MNIST-like pixels
    eps = jax.random.normal(k_eps, (B, LATENT_DIM), jnp.float32)    # reparameterization noise

    recon_p, head = beta_vae_forward(x, eps, params)
    jax.block_until_ready((recon_p, head))

    # Consumer-side (lazy) crop -- only materialized here for the correctness check.
    recon = recon_p[:B, :INPUT_DIM].astype(jnp.float32)
    mu = head[:B, :LATENT_DIM]
    logvar = head[:B, HEAD_ALIGN:HEAD_ALIGN + LATENT_DIM]

    assert recon.shape == (B, INPUT_DIM)
    assert mu.shape == (B, LATENT_DIM) and logvar.shape == (B, LATENT_DIM)

    # Tight check against a reference using the same bf16/f32 mixed precision
    # (extra slack only from bf16 recon writeback + approx reciprocal, < 5e-3).
    r_b, mu_b, lv_b = reference_forward_bf16(x, eps, params)
    assert jnp.allclose(recon, r_b, atol=1e-2, rtol=1e-2)
    assert jnp.allclose(mu, mu_b, atol=1e-2, rtol=1e-2)
    assert jnp.allclose(logvar, lv_b, atol=1e-2, rtol=1e-2)

    # Looser check against the pure-f32 semantics of the original torch module.
    r_f, mu_f, lv_f = reference_forward_f32(x, eps, params)
    assert jnp.allclose(recon, r_f, atol=5e-2, rtol=5e-2)
    assert jnp.allclose(mu, mu_f, atol=5e-2, rtol=5e-2)
    assert jnp.allclose(logvar, lv_f, atol=5e-2, rtol=5e-2)

    print("KERNEL_OK")
</pallas_src>

<mosaic_0001>
module attributes {stable_mosaic.version = 11 : i64} {
  func.func @beta_vae_kernel(%arg0: i32, %arg1: memref<128x784xf32, #tpu.memory_space<vmem>>, %arg2: memref<128x128xf32, #tpu.memory_space<vmem>>, %arg3: memref<784x128xbf16, #tpu.memory_space<vmem>>, %arg4: memref<1x128xf32, #tpu.memory_space<vmem>>, %arg5: memref<128x256xbf16, #tpu.memory_space<vmem>>, %arg6: memref<1x256xf32, #tpu.memory_space<vmem>>, %arg7: memref<128x128xbf16, #tpu.memory_space<vmem>>, %arg8: memref<1x128xf32, #tpu.memory_space<vmem>>, %arg9: memref<128x896xbf16, #tpu.memory_space<vmem>>, %arg10: memref<1x896xf32, #tpu.memory_space<vmem>>, %arg11: memref<128x896xbf16, #tpu.memory_space<vmem>>, %arg12: memref<128x256xf32, #tpu.memory_space<vmem>>) attributes {dimension_semantics = [#tpu.dimension_semantics<parallel>], iteration_bounds = array<i64: 2>, scalar_prefetch = 0 : i64, scratch_operands = 0 : i64, tpu.core_type = #tpu.core_type<tc>, window_params = [{transform_indices = @transform_0, window_bounds = array<i64: 128, 784>}, {transform_indices = @transform_1, window_bounds = array<i64: 128, 128>}, {pipeline_mode = #tpu.pipeline_mode<synchronous>, transform_indices = @transform_2, window_bounds = array<i64: 784, 128>}, {pipeline_mode = #tpu.pipeline_mode<synchronous>, transform_indices = @transform_3, window_bounds = array<i64: 1, 128>}, {pipeline_mode = #tpu.pipeline_mode<synchronous>, transform_indices = @transform_4, window_bounds = array<i64: 128, 256>}, {pipeline_mode = #tpu.pipeline_mode<synchronous>, transform_indices = @transform_5, window_bounds = array<i64: 1, 256>}, {pipeline_mode = #tpu.pipeline_mode<synchronous>, transform_indices = @transform_6, window_bounds = array<i64: 128, 128>}, {pipeline_mode = #tpu.pipeline_mode<synchronous>, transform_indices = @transform_7, window_bounds = array<i64: 1, 128>}, {pipeline_mode = #tpu.pipeline_mode<synchronous>, transform_indices = @transform_8, window_bounds = array<i64: 128, 896>}, {pipeline_mode = #tpu.pipeline_mode<synchronous>, transform_indices = @transform_9, window_bounds = array<i64: 1, 896>}, {transform_indices = @transform_10, window_bounds = array<i64: 128, 896>}, {transform_indices = @transform_11, window_bounds = array<i64: 128, 256>}]} {
    %c0 = arith.constant 0 : index
    %c0_0 = arith.constant 0 : index
    %0 = vector.load %arg1[%c0, %c0_0] : memref<128x784xf32, #tpu.memory_space<vmem>>, vector<128x784xf32>
    %1 = arith.truncf %0 : vector<128x784xf32> to vector<128x784xbf16>
    %c0_1 = arith.constant 0 : index
    %c0_2 = arith.constant 0 : index
    %2 = vector.load %arg3[%c0_1, %c0_2] : memref<784x128xbf16, #tpu.memory_space<vmem>>, vector<784x128xbf16>
    %cst = arith.constant dense<0.000000e+00> : vector<128x128xf32>
    %3 = tpu.matmul %1, %2, %cst {dimension_numbers = #tpu.dot_dimension_numbers<[1], [0], [0], [1], [0, 0, 1, 1], [], []>} : vector<128x784xbf16>, vector<784x128xbf16>, vector<128x128xf32> -> vector<128x128xf32>
    %c0_3 = arith.constant 0 : index
    %c0_4 = arith.constant 0 : index
    %4 = vector.load %arg4[%c0_3, %c0_4] : memref<1x128xf32, #tpu.memory_space<vmem>>, vector<1x128xf32>
    %5 = vector.broadcast %4 : vector<1x128xf32> to vector<128x128xf32>
    %6 = arith.addf %3, %5 : vector<128x128xf32>
    %cst_5 = arith.constant 0.000000e+00 : f32
    %7 = vector.broadcast %cst_5 : f32 to vector<128x128xf32>
    %8 = arith.maximumf %6, %7 : vector<128x128xf32>
    %9 = arith.truncf %8 : vector<128x128xf32> to vector<128x128xbf16>
    %c0_6 = arith.constant 0 : index
    %c0_7 = arith.constant 0 : index
    %10 = vector.load %arg5[%c0_6, %c0_7] : memref<128x256xbf16, #tpu.memory_space<vmem>>, vector<128x256xbf16>
    %cst_8 = arith.constant dense<0.000000e+00> : vector<128x256xf32>
    %11 = tpu.matmul %9, %10, %cst_8 {dimension_numbers = #tpu.dot_dimension_numbers<[1], [0], [0], [1], [0, 0, 1, 1], [], []>} : vector<128x128xbf16>, vector<128x256xbf16>, vector<128x256xf32> -> vector<128x256xf32>
    %c0_9 = arith.constant 0 : index
    %c0_10 = arith.constant 0 : index
    %12 = vector.load %arg6[%c0_9, %c0_10] : memref<1x256xf32, #tpu.memory_space<vmem>>, vector<1x256xf32>
    %13 = vector.broadcast %12 : vector<1x256xf32> to vector<128x256xf32>
    %14 = arith.addf %11, %13 : vector<128x256xf32>
    %c0_11 = arith.constant 0 : index
    %c0_12 = arith.constant 0 : index
    %15 = vector.load %arg12[%c0_11, %c0_12] : memref<128x256xf32, #tpu.memory_space<vmem>>, vector<128x256xf32>
    tpu.vector_store %arg12[%c0_11, %c0_12], %14 {strides = array<i32>} : memref<128x256xf32, #tpu.memory_space<vmem>>, vector<128x256xf32>,
    %16 = vector.extract_strided_slice %14 {offsets = [0, 0], sizes = [128, 128], strides = [1, 1]} : vector<128x256xf32> to vector<128x128xf32>
    %17 = vector.extract_strided_slice %14 {offsets = [0, 128], sizes = [128, 128], strides = [1, 1]} : vector<128x256xf32> to vector<128x128xf32>
    %c0_13 = arith.constant 0 : index
    %c0_14 = arith.constant 0 : index
    %18 = vector.load %arg2[%c0_13, %c0_14] : memref<128x128xf32, #tpu.memory_space<vmem>>, vector<128x128xf32>
    %cst_15 = arith.constant 5.000000e-01 : f32
    %19 = vector.broadcast %cst_15 : f32 to vector<128x128xf32>
    %20 = arith.mulf %19, %17 : vector<128x128xf32>
    %21 = math.exp %20 : vector<128x128xf32>
    %22 = arith.mulf %18, %21 : vector<128x128xf32>
    %23 = arith.addf %16, %22 : vector<128x128xf32>
    %24 = arith.truncf %23 : vector<128x128xf32> to vector<128x128xbf16>
    %c0_16 = arith.constant 0 : index
    %c0_17 = arith.constant 0 : index
    %25 = vector.load %arg7[%c0_16, %c0_17] : memref<128x128xbf16, #tpu.memory_space<vmem>>, vector<128x128xbf16>
    %cst_18 = arith.constant dense<0.000000e+00> : vector<128x128xf32>
    %26 = tpu.matmul %24, %25, %cst_18 {dimension_numbers = #tpu.dot_dimension_numbers<[1], [0], [0], [1], [0, 0, 1, 1], [], []>} : vector<128x128xbf16>, vector<128x128xbf16>, vector<128x128xf32> -> vector<128x128xf32>
    %c0_19 = arith.constant 0 : index
    %c0_20 = arith.constant 0 : index
    %27 = vector.load %arg8[%c0_19, %c0_20] : memref<1x128xf32, #tpu.memory_space<vmem>>, vector<1x128xf32>
    %28 = vector.broadcast %27 : vector<1x128xf32> to vector<128x128xf32>
    %29 = arith.addf %26, %28 : vector<128x128xf32>
    %cst_21 = arith.constant 0.000000e+00 : f32
    %30 = vector.broadcast %cst_21 : f32 to vector<128x128xf32>
    %31 = arith.maximumf %29, %30 : vector<128x128xf32>
    %32 = arith.truncf %31 : vector<128x128xf32> to vector<128x128xbf16>
    %c0_22 = arith.constant 0 : index
    %c0_23 = arith.constant 0 : index
    %33 = vector.load %arg9[%c0_22, %c0_23] : memref<128x896xbf16, #tpu.memory_space<vmem>>, vector<128x896xbf16>
    %cst_24 = arith.constant dense<0.000000e+00> : vector<128x896xf32>
    %34 = tpu.matmul %32, %33, %cst_24 {dimension_numbers = #tpu.dot_dimension_numbers<[1], [0], [0], [1], [0, 0, 1, 1], [], []>} : vector<128x128xbf16>, vector<128x896xbf16>, vector<128x896xf32> -> vector<128x896xf32>
    %c0_25 = arith.constant 0 : index
    %c0_26 = arith.constant 0 : index
    %35 = vector.load %arg10[%c0_25, %c0_26] : memref<1x896xf32, #tpu.memory_space<vmem>>, vector<1x896xf32>
    %36 = vector.broadcast %35 : vector<1x896xf32> to vector<128x896xf32>
    %37 = arith.addf %34, %36 : vector<128x896xf32>
    %cst_27 = arith.constant 0.000000e+00 : f32
    %38 = vector.broadcast %cst_27 : f32 to vector<128x896xf32>
    %39 = arith.subf %38, %37 : vector<128x896xf32>
    %40 = math.exp %39 : vector<128x896xf32>
    %cst_28 = arith.constant 1.000000e+00 : f32
    %41 = vector.broadcast %cst_28 : f32 to vector<128x896xf32>
    %42 = arith.addf %41, %40 : vector<128x896xf32>
    %43 = tpu.reciprocal %42 {approx = true} : vector<128x896xf32> -> vector<128x896xf32>
    %44 = arith.truncf %43 : vector<128x896xf32> to vector<128x896xbf16>
    %c0_29 = arith.constant 0 : index
    %c0_30 = arith.constant 0 : index
    %45 = vector.load %arg11[%c0_29, %c0_30] : memref<128x896xbf16, #tpu.memory_space<vmem>>, vector<128x896xbf16>
    tpu.vector_store %arg11[%c0_29, %c0_30], %44 {strides = array<i32>} : memref<128x896xbf16, #tpu.memory_space<vmem>>, vector<128x896xbf16>,
    return
  }
  func.func @transform_0(%arg0: i32) -> (i32, i32) {
    %c0_i32 = arith.constant 0 : i32
    %c0_i32_0 = arith.constant 0 : i32
    return %arg0, %c0_i32 : i32, i32
  }
  func.func @transform_1(%arg0: i32) -> (i32, i32) {
    %c0_i32 = arith.constant 0 : i32
    %c0_i32_0 = arith.constant 0 : i32
    return %arg0, %c0_i32 : i32, i32
  }
  func.func @transform_2(%arg0: i32) -> (i32, i32) {
    %c0_i32 = arith.constant 0 : i32
    %c0_i32_0 = arith.constant 0 : i32
    %c0_i32_1 = arith.constant 0 : i32
    return %c0_i32, %c0_i32_0 : i32, i32
  }
  func.func @transform_3(%arg0: i32) -> (i32, i32) {
    %c0_i32 = arith.constant 0 : i32
    %c0_i32_0 = arith.constant 0 : i32
    %c0_i32_1 = arith.constant 0 : i32
    return %c0_i32, %c0_i32_0 : i32, i32
  }
  func.func @transform_4(%arg0: i32) -> (i32, i32) {
    %c0_i32 = arith.constant 0 : i32
    %c0_i32_0 = arith.constant 0 : i32
    %c0_i32_1 = arith.constant 0 : i32
    return %c0_i32, %c0_i32_0 : i32, i32
  }
  func.func @transform_5(%arg0: i32) -> (i32, i32) {
    %c0_i32 = arith.constant 0 : i32
    %c0_i32_0 = arith.constant 0 : i32
    %c0_i32_1 = arith.constant 0 : i32
    return %c0_i32, %c0_i32_0 : i32, i32
  }
  func.func @transform_6(%arg0: i32) -> (i32, i32) {
    %c0_i32 = arith.constant 0 : i32
    %c0_i32_0 = arith.constant 0 : i32
    %c0_i32_1 = arith.constant 0 : i32
    return %c0_i32, %c0_i32_0 : i32, i32
  }
  func.func @transform_7(%arg0: i32) -> (i32, i32) {
    %c0_i32 = arith.constant 0 : i32
    %c0_i32_0 = arith.constant 0 : i32
    %c0_i32_1 = arith.constant 0 : i32
    return %c0_i32, %c0_i32_0 : i32, i32
  }
  func.func @transform_8(%arg0: i32) -> (i32, i32) {
    %c0_i32 = arith.constant 0 : i32
    %c0_i32_0 = arith.constant 0 : i32
    %c0_i32_1 = arith.constant 0 : i32
    return %c0_i32, %c0_i32_0 : i32, i32
  }
  func.func @transform_9(%arg0: i32) -> (i32, i32) {
    %c0_i32 = arith.constant 0 : i32
    %c0_i32_0 = arith.constant 0 : i32
    %c0_i32_1 = arith.constant 0 : i32
    return %c0_i32, %c0_i32_0 : i32, i32
  }
  func.func @transform_10(%arg0: i32) -> (i32, i32) {
    %c0_i32 = arith.constant 0 : i32
    %c0_i32_0 = arith.constant 0 : i32
    return %arg0, %c0_i32 : i32, i32
  }
  func.func @transform_11(%arg0: i32) -> (i32, i32) {
    %c0_i32 = arith.constant 0 : i32
    %c0_i32_0 = arith.constant 0 : i32
    return %arg0, %c0_i32 : i32, i32
  }
}

</mosaic_0001>

<llo_original>
// kernel: tpu_custom_call.1
$region0: #{tpu_custom_call.1}
  #allocation0 [shape = 'u32[]', space=smem, size = 0x4, offset = 0x4, fixed_abs, tag = 'smem constant byte address 0x4 - core index']
  #allocation1 [shape = 'u32[72,128]{1,0:T(1,128)}', space=vmem, size = 0x9000, scoped, tag = 'internal scratch']
  %s0 = inlined_call_operand.vmem [shape: f32[256,784], index: 0, kind: input, shape index: {}]
  %s1 = inlined_call_operand.vmem [shape: f32[256,128], index: 1, kind: input, shape index: {}]
  %s2 = inlined_call_operand.vmem [shape: bf16[784,128], index: 2, kind: input, shape index: {}]
  %s3 = inlined_call_operand.vmem [shape: f32[1,128], index: 3, kind: input, shape index: {}]
  %s4 = inlined_call_operand.vmem [shape: bf16[128,256], index: 4, kind: input, shape index: {}]
  %s5 = inlined_call_operand.vmem [shape: f32[1,256], index: 5, kind: input, shape index: {}]
  %s6 = inlined_call_operand.vmem [shape: bf16[128,128], index: 6, kind: input, shape index: {}]
  %s7 = inlined_call_operand.vmem [shape: f32[1,128], index: 7, kind: input, shape index: {}]
  %s8 = inlined_call_operand.vmem [shape: bf16[128,896], index: 8, kind: input, shape index: {}]
  %s9 = inlined_call_operand.vmem [shape: f32[1,896], index: 9, kind: input, shape index: {}]
  %s10 = inlined_call_operand.hbm [shape: bf16[256,896], index: 10, kind: output, shape index: {0}]
  %s11 = inlined_call_operand.hbm [shape: f32[256,256], index: 11, kind: output, shape index: {1}]
  %12 = xla_tuple %s10, %s11
  %s13 = sld [smem:[#allocation0]]
  $region81: #{tpu_custom_call.1} parent=0
    _
  %s15 = ssub.s32 1, %s13
  %s16 = scalar_select 0, %s15, %s13
  $region1: #{tpu_custom_call.1} parent=0
    #allocation2 [shape = 'u8[458752]{0}', space=vmem, size = 0x70000, scoped, tag = 'output window, operand 0']
    #allocation3 [shape = 's32[2]{0}', space=sflag, size = 0x8, scoped, tag = 'scoped memory for tpu_custom_call.1']
    #allocation4 [shape = 'u8[262144]{0}', space=vmem, size = 0x40000, scoped, tag = 'output window, operand 1']
    #allocation5 [shape = 's32[2]{0}', space=sflag, size = 0x8, scoped, tag = 'scoped memory for tpu_custom_call.1']
    %17 = vsyncpa [#allocation3], 0
    %s18 = scalar_lea.sflag [#allocation3], 1
    %19 = vsyncpa %s18, 0
    %20 = vsyncpa [#allocation5], 0
    %s21 = scalar_lea.sflag [#allocation5], 1
    %22 = vsyncpa %s21, 0
    loop: start=0, step=1, limit=4
    $region2: #{tpu_custom_call.1} parent=1 // loop_pre_header
      _
    $region3: #{tpu_custom_call.1} parent=1 // loop_header
      %s24 = sphi 0, %s28
      %p25 = scmp.ge.s32.totalorder %s24, 4
      %s34 = sphi 0, %s36
      %s37 = sphi 0, %s34
      %s38 = sphi 0, %s37
      %s54 = sphi 0, %s38
      %s60 = sphi 0, %s62
      %s63 = sphi 0, %s60
      %s64 = sphi 0, %s63
      %s80 = sphi 0, %s64
      %s84 = sphi 0, %s84
      %s86 = sphi 0, %s84
      %s87 = sphi 0, %s86
      %s101 = sphi 0, %s87
      %s105 = sphi 0, %s105
      %s107 = sphi 0, %s105
      %s108 = sphi 0, %s107
      %s122 = sphi 0, %s108
      %s126 = sphi 0, %s126
      %s128 = sphi 0, %s126
      %s129 = sphi 0, %s128
      %s143 = sphi 0, %s129
      %s147 = sphi 0, %s147
      %s149 = sphi 0, %s147
      %s150 = sphi 0, %s149
      %s164 = sphi 0, %s150
      %s168 = sphi 0, %s168
      %s170 = sphi 0, %s168
      %s171 = sphi 0, %s170
      %s185 = sphi 0, %s171
      %s189 = sphi 0, %s189
      %s191 = sphi 0, %s189
      %s192 = sphi 0, %s191
      %s206 = sphi 0, %s192
      %s210 = sphi 0, %s210
      %s212 = sphi 0, %s210
      %s213 = sphi 0, %s212
      %s227 = sphi 0, %s213
      %s231 = sphi 0, %s231
      %s233 = sphi 0, %s231
      %s234 = sphi 0, %s233
      %s248 = sphi 0, %s234
      %s254 = sphi 0, %s256
      %s257 = sphi 0, %s254
      %s258 = sphi 0, %s257
      %s274 = sphi 0, %s258
      %s280 = sphi 0, %s282
      %s283 = sphi 0, %s280
      %s284 = sphi 0, %s283
      %s300 = sphi 0, %s284
    $region4: #{tpu_custom_call.1} parent=1 // loop_header_branch
      %27 = sbr.rel (%p25) target = $region8
    $region5: #{tpu_custom_call.1} parent=1 // loop_body
      %s29 = ssub.s32 %s24, 1
      %s30 = ssub.s32 %s24, 2
      %s31 = sadd.s32 %s24, 1
      %s32 = ssub.s32 %s24, %s31
      %p33 = scmp.eq.s32.totalorder %s32, 0
      %s35 = sadd.s32 %s34, 1
      %s36 = scalar_select %p33, %s34, %s35
      %p39 = pneg %p33
      %p40 = scmp.eq.s32.totalorder %s24, 1
      %p41 = por %p39, %p40
      %p42 = scmp.ne.s32.totalorder %s34, %s37
      %p43 = scmp.eq.s32.totalorder %s24, 0
      %p44 = por %p42, %p43
      %p45 = scmp.ne.s32.totalorder %s34, %s37
      %p46 = scmp.eq.s32.totalorder %s29, 1
      %p47 = por %p45, %p46
      %p48 = scmp.ne.s32.totalorder %s37, %s38
      %p49 = scmp.eq.s32.totalorder %s29, 0
      %p50 = por %p48, %p49
      %p51 = scmp.ne.s32.totalorder %s37, %s38
      %p52 = scmp.eq.s32.totalorder %s30, 1
      %p53 = por %p51, %p52
      %p55 = scmp.ne.s32.totalorder %s38, %s54
      %p56 = scmp.eq.s32.totalorder %s30, 0
      %p57 = por %p55, %p56
      %s58 = ssub.s32 %s24, %s31
      %p59 = scmp.eq.s32.totalorder %s58, 0
      %s61 = sadd.s32 %s60, 1
      %s62 = scalar_select %p59, %s60, %s61
      %p65 = pneg %p59
      %p66 = scmp.eq.s32.totalorder %s24, 1
      %p67 = por %p65, %p66
      %p68 = scmp.ne.s32.totalorder %s60, %s63
      %p69 = scmp.eq.s32.totalorder %s24, 0
      %p70 = por %p68, %p69
      %p71 = scmp.ne.s32.totalorder %s60, %s63
      %p72 = scmp.eq.s32.totalorder %s29, 1
      %p73 = por %p71, %p72
      %p74 = scmp.ne.s32.totalorder %s63, %s64
      %p75 = scmp.eq.s32.totalorder %s29, 0
      %p76 = por %p74, %p75
      %p77 = scmp.ne.s32.totalorder %s63, %s64
      %p78 = scmp.eq.s32.totalorder %s30, 1
      %p79 = por %p77, %p78
      %p81 = scmp.ne.s32.totalorder %s64, %s80
      %p82 = scmp.eq.s32.totalorder %s30, 0
      %p83 = por %p81, %p82
      %s85 = sadd.s32 %s84, 1
      %p88 = scmp.eq.s32.totalorder %s24, 1
      %p89 = scmp.ne.s32.totalorder %s84, %s86
      %p90 = scmp.eq.s32.totalorder %s24, 0
      %p91 = por %p89, %p90
      %p92 = scmp.ne.s32.totalorder %s84, %s86
      %p93 = scmp.eq.s32.totalorder %s29, 1
      %p94 = por %p92, %p93
      %p95 = scmp.ne.s32.totalorder %s86, %s87
      %p96 = scmp.eq.s32.totalorder %s29, 0
      %p97 = por %p95, %p96
      %p98 = scmp.ne.s32.totalorder %s86, %s87
      %p99 = scmp.eq.s32.totalorder %s30, 1
      %p100 = por %p98, %p99
      %p102 = scmp.ne.s32.totalorder %s87, %s101
      %p103 = scmp.eq.s32.totalorder %s30, 0
      %p104 = por %p102, %p103
      %s106 = sadd.s32 %s105, 1
      %p109 = scmp.eq.s32.totalorder %s24, 1
      %p110 = scmp.ne.s32.totalorder %s105, %s107
      %p111 = scmp.eq.s32.totalorder %s24, 0
      %p112 = por %p110, %p111
      %p113 = scmp.ne.s32.totalorder %s105, %s107
      %p114 = scmp.eq.s32.totalorder %s29, 1
      %p115 = por %p113, %p114
      %p116 = scmp.ne.s32.totalorder %s107, %s108
      %p117 = scmp.eq.s32.totalorder %s29, 0
      %p118 = por %p116, %p117
      %p119 = scmp.ne.s32.totalorder %s107, %s108
      %p120 = scmp.eq.s32.totalorder %s30, 1
      %p121 = por %p119, %p120
      %p123 = scmp.ne.s32.totalorder %s108, %s122
      %p124 = scmp.eq.s32.totalorder %s30, 0
      %p125 = por %p123, %p124
      %s127 = sadd.s32 %s126, 1
      %p130 = scmp.eq.s32.totalorder %s24, 1
      %p131 = scmp.ne.s32.totalorder %s126, %s128
      %p132 = scmp.eq.s32.totalorder %s24, 0
      %p133 = por %p131, %p132
      %p134 = scmp.ne.s32.totalorder %s126, %s128
      %p135 = scmp.eq.s32.totalorder %s29, 1
      %p136 = por %p134, %p135
      %p137 = scmp.ne.s32.totalorder %s128, %s129
      %p138 = scmp.eq.s32.totalorder %s29, 0
      %p139 = por %p137, %p138
      %p140 = scmp.ne.s32.totalorder %s128, %s129
      %p141 = scmp.eq.s32.totalorder %s30, 1
      %p142 = por %p140, %p141
      %p144 = scmp.ne.s32.totalorder %s129, %s143
      %p145 = scmp.eq.s32.totalorder %s30, 0
      %p146 = por %p144, %p145
      %s148 = sadd.s32 %s147, 1
      %p151 = scmp.eq.s32.totalorder %s24, 1
      %p152 = scmp.ne.s32.totalorder %s147, %s149
      %p153 = scmp.eq.s32.totalorder %s24, 0
      %p154 = por %p152, %p153
      %p155 = scmp.ne.s32.totalorder %s147, %s149
      %p156 = scmp.eq.s32.totalorder %s29, 1
      %p157 = por %p155, %p156
      %p158 = scmp.ne.s32.totalorder %s149, %s150
      %p159 = scmp.eq.s32.totalorder %s29, 0
      %p160 = por %p158, %p159
      %p161 = scmp.ne.s32.totalorder %s149, %s150
      %p162 = scmp.eq.s32.totalorder %s30, 1
      %p163 = por %p161, %p162
      %p165 = scmp.ne.s32.totalorder %s150, %s164
      %p166 = scmp.eq.s32.totalorder %s30, 0
      %p167 = por %p165, %p166
      %s169 = sadd.s32 %s168, 1
      %p172 = scmp.eq.s32.totalorder %s24, 1
      %p173 = scmp.ne.s32.totalorder %s168, %s170
      %p174 = scmp.eq.s32.totalorder %s24, 0
      %p175 = por %p173, %p174
      %p176 = scmp.ne.s32.totalorder %s168, %s170
      %p177 = scmp.eq.s32.totalorder %s29, 1
      %p178 = por %p176, %p177
      %p179 = scmp.ne.s32.totalorder %s170, %s171
      %p180 = scmp.eq.s32.totalorder %s29, 0
      %p181 = por %p179, %p180
      %p182 = scmp.ne.s32.totalorder %s170, %s171
      %p183 = scmp.eq.s32.totalorder %s30, 1
      %p184 = por %p182, %p183
      %p186 = scmp.ne.s32.totalorder %s171, %s185
      %p187 = scmp.eq.s32.totalorder %s30, 0
      %p188 = por %p186, %p187
      %s190 = sadd.s32 %s189, 1
      %p193 = scmp.eq.s32.totalorder %s24, 1
      %p194 = scmp.ne.s32.totalorder %s189, %s191
      %p195 = scmp.eq.s32.totalorder %s24, 0
      %p196 = por %p194, %p195
      %p197 = scmp.ne.s32.totalorder %s189, %s191
      %p198 = scmp.eq.s32.totalorder %s29, 1
      %p199 = por %p197, %p198
      %p200 = scmp.ne.s32.totalorder %s191, %s192
      %p201 = scmp.eq.s32.totalorder %s29, 0
      %p202 = por %p200, %p201
      %p203 = scmp.ne.s32.totalorder %s191, %s192
      %p204 = scmp.eq.s32.totalorder %s30, 1
      %p205 = por %p203, %p204
      %p207 = scmp.ne.s32.totalorder %s192, %s206
      %p208 = scmp.eq.s32.totalorder %s30, 0
      %p209 = por %p207, %p208
      %s211 = sadd.s32 %s210, 1
      %p214 = scmp.eq.s32.totalorder %s24, 1
      %p215 = scmp.ne.s32.totalorder %s210, %s212
      %p216 = scmp.eq.s32.totalorder %s24, 0
      %p217 = por %p215, %p216
      %p218 = scmp.ne.s32.totalorder %s210, %s212
      %p219 = scmp.eq.s32.totalorder %s29, 1
      %p220 = por %p218, %p219
      %p221 = scmp.ne.s32.totalorder %s212, %s213
      %p222 = scmp.eq.s32.totalorder %s29, 0
      %p223 = por %p221, %p222
      %p224 = scmp.ne.s32.totalorder %s212, %s213
      %p225 = scmp.eq.s32.totalorder %s30, 1
      %p226 = por %p224, %p225
      %p228 = scmp.ne.s32.totalorder %s213, %s227
      %p229 = scmp.eq.s32.totalorder %s30, 0
      %p230 = por %p228, %p229
      %s232 = sadd.s32 %s231, 1
      %p235 = scmp.eq.s32.totalorder %s24, 1
      %p236 = scmp.ne.s32.totalorder %s231, %s233
      %p237 = scmp.eq.s32.totalorder %s24, 0
      %p238 = por %p236, %p237
      %p239 = scmp.ne.s32.totalorder %s231, %s233
      %p240 = scmp.eq.s32.totalorder %s29, 1
      %p241 = por %p239, %p240
      %p242 = scmp.ne.s32.totalorder %s233, %s234
      %p243 = scmp.eq.s32.totalorder %s29, 0
      %p244 = por %p242, %p243
      %p245 = scmp.ne.s32.totalorder %s233, %s234
      %p246 = scmp.eq.s32.totalorder %s30, 1
      %p247 = por %p245, %p246
      %p249 = scmp.ne.s32.totalorder %s234, %s248
      %p250 = scmp.eq.s32.totalorder %s30, 0
      %p251 = por %p249, %p250
      %s252 = ssub.s32 %s24, %s31
      %p253 = scmp.eq.s32.totalorder %s252, 0
      %s255 = sadd.s32 %s254, 1
      %s256 = scalar_select %p253, %s254, %s255
      %p259 = pneg %p253
      %p260 = scmp.eq.s32.totalorder %s24, 1
      %p261 = por %p259, %p260
      %p262 = scmp.ne.s32.totalorder %s254, %s257
      %p263 = scmp.eq.s32.totalorder %s24, 0
      %p264 = por %p262, %p263
      %p265 = scmp.ne.s32.totalorder %s254, %s257
      %p266 = scmp.eq.s32.totalorder %s29, 1
      %p267 = por %p265, %p266
      %p268 = scmp.ne.s32.totalorder %s257, %s258
      %p269 = scmp.eq.s32.totalorder %s29, 0
      %p270 = por %p268, %p269
      %p271 = scmp.ne.s32.totalorder %s257, %s258
      %p272 = scmp.eq.s32.totalorder %s30, 1
      %p273 = por %p271, %p272
      %p275 = scmp.ne.s32.totalorder %s258, %s274
      %p276 = scmp.eq.s32.totalorder %s30, 0
      %p277 = por %p275, %p276
      %s278 = ssub.s32 %s24, %s31
      %p279 = scmp.eq.s32.totalorder %s278, 0
      %s281 = sadd.s32 %s280, 1
      %s282 = scalar_select %p279, %s280, %s281
      %p285 = pneg %p279
      %p286 = scmp.eq.s32.totalorder %s24, 1
      %p287 = por %p285, %p286
      %p288 = scmp.ne.s32.totalorder %s280, %s283
      %p289 = scmp.eq.s32.totalorder %s24, 0
      %p290 = por %p288, %p289
      %p291 = scmp.ne.s32.totalorder %s280, %s283
      %p292 = scmp.eq.s32.totalorder %s29, 1
      %p293 = por %p291, %p292
      %p294 = scmp.ne.s32.totalorder %s283, %s284
      %p295 = scmp.eq.s32.totalorder %s29, 0
      %p296 = por %p294, %p295
      %p297 = scmp.ne.s32.totalorder %s283, %s284
      %p298 = scmp.eq.s32.totalorder %s30, 1
      %p299 = por %p297, %p298
      %p301 = scmp.ne.s32.totalorder %s284, %s300
      %p302 = scmp.eq.s32.totalorder %s30, 0
      %p303 = por %p301, %p302
      %p304 = scmp.le.s32.totalorder 1, %s24
      %p305 = scmp.lt.s32.totalorder %s24, 3
      %p306 = pnand %p304, %p305
      %p307 = pneg %p306
      // Predicated region
      $region9: #{tpu_custom_call.1} parent=5 // pred_check
        _
      $region10: #{tpu_custom_call.1} parent=5 // pred_check_branch
        %309 = sbr.rel (%p306) target = $region12
      $region11: #{tpu_custom_call.1} parent=5 // pred_region
        %s310 = ssub.s32 %s24, 1
        // Predicated region
        $region13: #{tpu_custom_call.1} parent=11 // pred_check
          %p311 = pneg %p97
        $region14: #{tpu_custom_call.1} parent=11 // pred_check_branch
          %313 = sbr.rel (%p311) target = $region16
        $region15: #{tpu_custom_call.1} parent=11 // pred_region
          _
        $region16: #{tpu_custom_call.1} parent=11 // pred_fallthru
          _
        // Predicated region
        $region17: #{tpu_custom_call.1} parent=11 // pred_check
          %p314 = pneg %p118
        $region18: #{tpu_custom_call.1} parent=11 // pred_check_branch
          %316 = sbr.rel (%p314) target = $region20
        $region19: #{tpu_custom_call.1} parent=11 // pred_region
          _
        $region20: #{tpu_custom_call.1} parent=11 // pred_fallthru
          _
        // Predicated region
        $region21: #{tpu_custom_call.1} parent=11 // pred_check
          %p317 = pneg %p139
        $region22: #{tpu_custom_call.1} parent=11 // pred_check_branch
          %319 = sbr.rel (%p317) target = $region24
        $region23: #{tpu_custom_call.1} parent=11 // pred_region
          _
        $region24: #{tpu_custom_call.1} parent=11 // pred_fallthru
          _
        // Predicated region
        $region25: #{tpu_custom_call.1} parent=11 // pred_check
          %p320 = pneg %p160
        $region26: #{tpu_custom_call.1} parent=11 // pred_check_branch
          %322 = sbr.rel (%p320) target = $region28
        $region27: #{tpu_custom_call.1} parent=11 // pred_region
          _
        $region28: #{tpu_custom_call.1} parent=11 // pred_fallthru
          _
        // Predicated region
        $region29: #{tpu_custom_call.1} parent=11 // pred_check
          %p323 = pneg %p181
        $region30: #{tpu_custom_call.1} parent=11 // pred_check_branch
          %325 = sbr.rel (%p323) target = $region32
        $region31: #{tpu_custom_call.1} parent=11 // pred_region
          _
        $region32: #{tpu_custom_call.1} parent=11 // pred_fallthru
          _
        // Predicated region
        $region33: #{tpu_custom_call.1} parent=11 // pred_check
          %p326 = pneg %p202
        $region34: #{tpu_custom_call.1} parent=11 // pred_check_branch
          %328 = sbr.rel (%p326) target = $region36
        $region35: #{tpu_custom_call.1} parent=11 // pred_region
          _
        $region36: #{tpu_custom_call.1} parent=11 // pred_fallthru
          _
        // Predicated region
        $region37: #{tpu_custom_call.1} parent=11 // pred_check
          %p329 = pneg %p223
        $region38: #{tpu_custom_call.1} parent=11 // pred_check_branch
          %331 = sbr.rel (%p329) target = $region40
        $region39: #{tpu_custom_call.1} parent=11 // pred_region
          _
        $region40: #{tpu_custom_call.1} parent=11 // pred_fallthru
          _
        // Predicated region
        $region41: #{tpu_custom_call.1} parent=11 // pred_check
          %p332 = pneg %p244
        $region42: #{tpu_custom_call.1} parent=11 // pred_check_branch
          %334 = sbr.rel (%p332) target = $region44
        $region43: #{tpu_custom_call.1} parent=11 // pred_region
          _
        $region44: #{tpu_custom_call.1} parent=11 // pred_fallthru
          _
      $region12: #{tpu_custom_call.1} parent=5 // pred_fallthru
        _
      %p335 = scmp.lt.s32.totalorder %s24, 2
      // Predicated region
      $region45: #{tpu_custom_call.1} parent=5 // pred_check
        %p336 = pneg %p335
      $region46: #{tpu_custom_call.1} parent=5 // pred_check_branch
        %338 = sbr.rel (%p336) target = $region48
      $region47: #{tpu_custom_call.1} parent=5 // pred_region
        // Predicated region
        $region49: #{tpu_custom_call.1} parent=47 // pred_check
          %p339 = pneg %p44
        $region50: #{tpu_custom_call.1} parent=47 // pred_check_branch
          %341 = sbr.rel (%p339) target = $region52
        $region51: #{tpu_custom_call.1} parent=47 // pred_region
          %s342 = smul.u32 16, %s24
          %p343 = scmp.lt.s32.totalorder %s342, 31
          %s344 = scalar_select %p343, %s342, 31
          %s345 = smul.addr %s344, 7
          %s346 = smul.addr %s345, 8
          %s347 = scalar_lea.vmem %s0, %s346
          %s348 = smul.u32 16, %s24
        $region52: #{tpu_custom_call.1} parent=47 // pred_fallthru
          _
        // Predicated region
        $region53: #{tpu_custom_call.1} parent=47 // pred_check
          %p349 = pneg %p70
        $region54: #{tpu_custom_call.1} parent=47 // pred_check_branch
          %351 = sbr.rel (%p349) target = $region56
        $region55: #{tpu_custom_call.1} parent=47 // pred_region
          %s352 = smul.u32 16, %s24
          %p353 = scmp.lt.s32.totalorder %s352, 31
          %s354 = scalar_select %p353, %s352, 31
          %s355 = smul.addr %s354, 8
          %s356 = scalar_lea.vmem %s1, %s355
          %s357 = smul.u32 16, %s24
        $region56: #{tpu_custom_call.1} parent=47 // pred_fallthru
          _
      $region48: #{tpu_custom_call.1} parent=5 // pred_fallthru
        _
      %p358 = scmp.le.s32.totalorder 1, %s24
      %p359 = scmp.lt.s32.totalorder %s24, 3
      %p360 = pnand %p358, %p359
      %p361 = pneg %p360
      // Predicated region
      $region57: #{tpu_custom_call.1} parent=5 // pred_check
        _
      $region58: #{tpu_custom_call.1} parent=5 // pred_check_branch
        %363 = sbr.rel (%p360) target = $region60
      $region59: #{tpu_custom_call.1} parent=5 // pred_region
        %s364 = ssub.s32 %s24, 1
        %s365 = smul.u32 16, %s29
        %p366 = scmp.lt.s32.totalorder %s365, 31
        %s367 = scalar_select %p366, %s365, 31
        %s368 = smul.addr %s367, 7
        %s369 = smul.addr %s368, 8
        %s370 = scalar_lea.vmem %s0, %s369
        %p371 = pneg %p50
        %p372 = pneg %p47
        %s373 = smul.u32 16, %s29
        %p374 = scmp.lt.s32.totalorder %s373, 31
        %s375 = scalar_select %p374, %s373, 31
        %s376 = smul.addr %s375, 8
        %s377 = scalar_lea.vmem %s1, %s376
        %p378 = pneg %p76
        %p379 = pneg %p73
        %p380 = pneg %p97
        %p381 = pneg %p94
        %p382 = pneg %p118
        %p383 = pneg %p115
        %p384 = pneg %p139
        %p385 = pneg %p136
        %p386 = pneg %p160
        %p387 = pneg %p157
        %p388 = pneg %p181
        %p389 = pneg %p178
        %p390 = pneg %p202
        %p391 = pneg %p199
        %p392 = pneg %p223
        %p393 = pneg %p220
        %p394 = pneg %p244
        %p395 = pneg %p241
        %p396 = pneg %p270
        %p397 = pneg %p267
        %s398 = sand.u32 %s257, 1
        %s399 = scalar_lea.sflag [#allocation3], %s398
        %s400 = sand.u32 %s257, 1
        %s401 = smul.addr %s400, 448
        %s402 = scalar_lea.vmem [#allocation2], %s401
        %p403 = pneg %p296
        %p404 = pneg %p293
        %s405 = sand.u32 %s283, 1
        %s406 = scalar_lea.sflag [#allocation5], %s405
        %s407 = sand.u32 %s283, 1
        %s408 = smul.addr %s407, 256
        %s409 = scalar_lea.vmem [#allocation4], %s408
        %s410 = smul.u32 16, %s29
        %p411 = scmp.lt.s32.totalorder %s410, 31
        %s412 = scalar_select %p411, %s410, 31
        %s413 = smul.addr %s412, 7
        %s414 = smul.addr %s413, 8
        %s415 = scalar_lea.vmem %s0, %s414
        %s416 = smul.u32 16, %s29
        %s417 = smul.u32 16, %s29
        %p418 = scmp.lt.s32.totalorder %s417, 31
        %s419 = scalar_select %p418, %s417, 31
        %s420 = smul.addr %s419, 8
        %s421 = scalar_lea.vmem %s1, %s420
        %s422 = smul.u32 16, %s29
        %s423 = smul.u32 16, %s29
        %s424 = smul.u32 16, %s29
        %v426 = vld [vmem:[%s415] sm:$0xff]
        %v427 = vld [vmem:[%s415 + $0x8] sm:$0xff]
        %v428 = vld [vmem:[%s415 + $0x10] sm:$0xff]
        %v429 = vld [vmem:[%s415 + $0x18] sm:$0xff]
        %v430 = vld [vmem:[%s415 + $0x20] sm:$0xff]
        %v431 = vld [vmem:[%s415 + $0x28] sm:$0xff]
        %v432 = vld [vmem:[%s415 + $0x30] sm:$0xff]
        %v433 = vld [vmem:[%s415 + $0x38] sm:$0xff]
        %v434 = vld [vmem:[%s415 + $0x40] sm:$0xff]
        %v435 = vld [vmem:[%s415 + $0x48] sm:$0xff]
        %v436 = vld [vmem:[%s415 + $0x50] sm:$0xff]
        %v437 = vld [vmem:[%s415 + $0x58] sm:$0xff]
        %v438 = vld [vmem:[%s415 + $0x60] sm:$0xff]
        %v439 = vld [vmem:[%s415 + $0x68] sm:$0xff]
        %v440 = vld [vmem:[%s415 + $0x70] sm:$0xff]
        %v441 = vld [vmem:[%s415 + $0x78] sm:$0xff]
        %v442 = vld [vmem:[%s415 + $0x80] sm:$0xff]
        %v443 = vld [vmem:[%s415 + $0x88] sm:$0xff]
        %v444 = vld [vmem:[%s415 + $0x90] sm:$0xff]
        %v445 = vld [vmem:[%s415 + $0x98] sm:$0xff]
        %v446 = vld [vmem:[%s415 + $0xa0] sm:$0xff]
        %v447 = vld [vmem:[%s415 + $0xa8] sm:$0xff]
        %v448 = vld [vmem:[%s415 + $0xb0] sm:$0xff]
        %v449 = vld [vmem:[%s415 + $0xb8] sm:$0xff]
        %v450 = vld [vmem:[%s415 + $0xc0] sm:$0xff]
        %v451 = vld [vmem:[%s415 + $0xc8] sm:$0xff]
        %v452 = vld [vmem:[%s415 + $0xd0] sm:$0xff]
        %v453 = vld [vmem:[%s415 + $0xd8] sm:$0xff]
        %v454 = vld [vmem:[%s415 + $0xe0] sm:$0xff]
        %v455 = vld [vmem:[%s415 + $0xe8] sm:$0xff]
        %v456 = vld [vmem:[%s415 + $0xf0] sm:$0xff]
        %v457 = vld [vmem:[%s415 + $0xf8] sm:$0xff]
        %v458 = vld [vmem:[%s415 + $0x100] sm:$0xff]
        %v459 = vld [vmem:[%s415 + $0x108] sm:$0xff]
        %v460 = vld [vmem:[%s415 + $0x110] sm:$0xff]
        %v461 = vld [vmem:[%s415 + $0x118] sm:$0xff]
        %v462 = vld [vmem:[%s415 + $0x120] sm:$0xff]
        %v463 = vld [vmem:[%s415 + $0x128] sm:$0xff]
        %v464 = vld [vmem:[%s415 + $0x130] sm:$0xff]
        %v465 = vld [vmem:[%s415 + $0x138] sm:$0xff]
        %v466 = vld [vmem:[%s415 + $0x140] sm:$0xff]
        %v467 = vld [vmem:[%s415 + $0x148] sm:$0xff]
        %v468 = vld [vmem:[%s415 + $0x150] sm:$0xff]
        %v469 = vld [vmem:[%s415 + $0x158] sm:$0xff]
        %v470 = vld [vmem:[%s415 + $0x160] sm:$0xff]
        %v471 = vld [vmem:[%s415 + $0x168] sm:$0xff]
        %v472 = vld [vmem:[%s415 + $0x170] sm:$0xff]
        %v473 = vld [vmem:[%s415 + $0x178] sm:$0xff]
        %v474 = vld [vmem:[%s415 + $0x180] sm:$0xff]
        %v475 = vld [vmem:[%s415 + $0x188] sm:$0xff]
        %v476 = vld [vmem:[%s415 + $0x190] sm:$0xff]
        %v477 = vld [vmem:[%s415 + $0x198] sm:$0xff]
        %v478 = vld [vmem:[%s415 + $0x1a0] sm:$0xff]
        %v479 = vld [vmem:[%s415 + $0x1a8] sm:$0xff]
        %v480 = vld [vmem:[%s415 + $0x1b0] sm:$0xff]
        %v481 = vld [vmem:[%s415 + $0x1b8] sm:$0xff]
        %v482 = vld [vmem:[%s415 + $0x1c0] sm:$0xff]
        %v483 = vld [vmem:[%s415 + $0x1c8] sm:$0xff]
        %v484 = vld [vmem:[%s415 + $0x1d0] sm:$0xff]
        %v485 = vld [vmem:[%s415 + $0x1d8] sm:$0xff]
        %v486 = vld [vmem:[%s415 + $0x1e0] sm:$0xff]
        %v487 = vld [vmem:[%s415 + $0x1e8] sm:$0xff]
        %v488 = vld [vmem:[%s415 + $0x1f0] sm:$0xff]
        %v489 = vld [vmem:[%s415 + $0x1f8] sm:$0xff]
        %v490 = vld [vmem:[%s415 + $0x200] sm:$0xff]
        %v491 = vld [vmem:[%s415 + $0x208] sm:$0xff]
        %v492 = vld [vmem:[%s415 + $0x210] sm:$0xff]
        %v493 = vld [vmem:[%s415 + $0x218] sm:$0xff]
        %v494 = vld [vmem:[%s415 + $0x220] sm:$0xff]
        %v495 = vld [vmem:[%s415 + $0x228] sm:$0xff]
        %v496 = vld [vmem:[%s415 + $0x230] sm:$0xff]
        %v497 = vld [vmem:[%s415 + $0x238] sm:$0xff]
        %v498 = vld [vmem:[%s415 + $0x240] sm:$0xff]
        %v499 = vld [vmem:[%s415 + $0x248] sm:$0xff]
        %v500 = vld [vmem:[%s415 + $0x250] sm:$0xff]
        %v501 = vld [vmem:[%s415 + $0x258] sm:$0xff]
        %v502 = vld [vmem:[%s415 + $0x260] sm:$0xff]
        %v503 = vld [vmem:[%s415 + $0x268] sm:$0xff]
        %v504 = vld [vmem:[%s415 + $0x270] sm:$0xff]
        %v505 = vld [vmem:[%s415 + $0x278] sm:$0xff]
        %v506 = vld [vmem:[%s415 + $0x280] sm:$0xff]
        %v507 = vld [vmem:[%s415 + $0x288] sm:$0xff]
        %v508 = vld [vmem:[%s415 + $0x290] sm:$0xff]
        %v509 = vld [vmem:[%s415 + $0x298] sm:$0xff]
        %v510 = vld [vmem:[%s415 + $0x2a0] sm:$0xff]
        %v511 = vld [vmem:[%s415 + $0x2a8] sm:$0xff]
        %v512 = vld [vmem:[%s415 + $0x2b0] sm:$0xff]
        %v513 = vld [vmem:[%s415 + $0x2b8] sm:$0xff]
        %v514 = vld [vmem:[%s415 + $0x2c0] sm:$0xff]
        %v515 = vld [vmem:[%s415 + $0x2c8] sm:$0xff]
        %v516 = vld [vmem:[%s415 + $0x2d0] sm:$0xff]
        %v517 = vld [vmem:[%s415 + $0x2d8] sm:$0xff]
        %v518 = vld [vmem:[%s415 + $0x2e0] sm:$0xff]
        %v519 = vld [vmem:[%s415 + $0x2e8] sm:$0xff]
        %v520 = vld [vmem:[%s415 + $0x2f0] sm:$0xff]
        %v521 = vld [vmem:[%s415 + $0x2f8] sm:$0xff]
        %v522 = vld [vmem:[%s415 + $0x300] sm:$0xff]
        %v523 = vld [vmem:[%s415 + $0x308] sm:$0xff]
        %v524 = vld [vmem:[%s415 + $0x310] sm:$0xff]
        %v525 = vld [vmem:[%s415 + $0x318] sm:$0xff]
        %v526 = vld [vmem:[%s415 + $0x320] sm:$0xff]
        %v527 = vld [vmem:[%s415 + $0x328] sm:$0xff]
        %v528 = vld [vmem:[%s415 + $0x330] sm:$0xff]
        %v529 = vld [vmem:[%s415 + $0x338] sm:$0xff]
        %v530 = vld [vmem:[%s415 + $0x340] sm:$0xff]
        %v531 = vld [vmem:[%s415 + $0x348] sm:$0xff]
        %v532 = vld [vmem:[%s415 + $0x350] sm:$0xff]
        %v533 = vld [vmem:[%s415 + $0x358] sm:$0xff]
        %v534 = vld [vmem:[%s415 + $0x360] sm:$0xff]
        %v535 = vld [vmem:[%s415 + $0x368] sm:$0xff]
        %v536 = vld [vmem:[%s415 + $0x370] sm:$0xff]
        %v537 = vld [vmem:[%s415 + $0x378] sm:$0xff]
        %v538 = vpack.c.bf16 %v433, %v426
        %v539 = vpack.c.bf16 %v434, %v427
        %v540 = vpack.c.bf16 %v435, %v428
        %v541 = vpack.c.bf16 %v436, %v429
        %v542 = vpack.c.bf16 %v437, %v430
        %v543 = vpack.c.bf16 %v438, %v431
        %v544 = vpack.c.bf16 %v439, %v432
        %v545 = vpack.c.bf16 %v447, %v440
        %v546 = vpack.c.bf16 %v448, %v441
        %v547 = vpack.c.bf16 %v449, %v442
        %v548 = vpack.c.bf16 %v450, %v443
        %v549 = vpack.c.bf16 %v451, %v444
        %v550 = vpack.c.bf16 %v452, %v445
        %v551 = vpack.c.bf16 %v453, %v446
        %v552 = vpack.c.bf16 %v461, %v454
        %v553 = vpack.c.bf16 %v462, %v455
        %v554 = vpack.c.bf16 %v463, %v456
        %v555 = vpack.c.bf16 %v464, %v457
        %v556 = vpack.c.bf16 %v465, %v458
        %v557 = vpack.c.bf16 %v466, %v459
        %v558 = vpack.c.bf16 %v467, %v460
        %v559 = vpack.c.bf16 %v475, %v468
        %v560 = vpack.c.bf16 %v476, %v469
        %v561 = vpack.c.bf16 %v477, %v470
        %v562 = vpack.c.bf16 %v478, %v471
        %v563 = vpack.c.bf16 %v479, %v472
        %v564 = vpack.c.bf16 %v480, %v473
        %v565 = vpack.c.bf16 %v481, %v474
        %v566 = vpack.c.bf16 %v489, %v482
        %v567 = vpack.c.bf16 %v490, %v483
        %v568 = vpack.c.bf16 %v491, %v484
        %v569 = vpack.c.bf16 %v492, %v485
        %v570 = vpack.c.bf16 %v493, %v486
        %v571 = vpack.c.bf16 %v494, %v487
        %v572 = vpack.c.bf16 %v495, %v488
        %v573 = vpack.c.bf16 %v503, %v496
        %v574 = vpack.c.bf16 %v504, %v497
        %v575 = vpack.c.bf16 %v505, %v498
        %v576 = vpack.c.bf16 %v506, %v499
        %v577 = vpack.c.bf16 %v507, %v500
        %v578 = vpack.c.bf16 %v508, %v501
        %v579 = vpack.c.bf16 %v509, %v502
        %v580 = vpack.c.bf16 %v517, %v510
        %v581 = vpack.c.bf16 %v518, %v511
        %v582 = vpack.c.bf16 %v519, %v512
        %v583 = vpack.c.bf16 %v520, %v513
        %v584 = vpack.c.bf16 %v521, %v514
        %v585 = vpack.c.bf16 %v522, %v515
        %v586 = vpack.c.bf16 %v523, %v516
        %v587 = vpack.c.bf16 %v531, %v524
        %v588 = vpack.c.bf16 %v532, %v525
        %v589 = vpack.c.bf16 %v533, %v526
        %v590 = vpack.c.bf16 %v534, %v527
        %v591 = vpack.c.bf16 %v535, %v528
        %v592 = vpack.c.bf16 %v536, %v529
        %v593 = vpack.c.bf16 %v537, %v530
        %v594 = vld [vmem:[%s2] sm:$0xf]
        %v595 = vld [vmem:[%s2 + $0x4] sm:$0xf]
        %v596 = vld [vmem:[%s2 + $0x8] sm:$0xf]
        %v597 = vld [vmem:[%s2 + $0xc] sm:$0xf]
        %v598 = vld [vmem:[%s2 + $0x10] sm:$0xf]
        %v599 = vld [vmem:[%s2 + $0x14] sm:$0xf]
        %v600 = vld [vmem:[%s2 + $0x18] sm:$0xf]
        %v601 = vld [vmem:[%s2 + $0x1c] sm:$0xf]
        %v602 = vld [vmem:[%s2 + $0x20] sm:$0xf]
        %v603 = vld [vmem:[%s2 + $0x24] sm:$0xf]
        %v604 = vld [vmem:[%s2 + $0x28] sm:$0xf]
        %v605 = vld [vmem:[%s2 + $0x2c] sm:$0xf]
        %v606 = vld [vmem:[%s2 + $0x30] sm:$0xf]
        %v607 = vld [vmem:[%s2 + $0x34] sm:$0xf]
        %v608 = vld [vmem:[%s2 + $0x38] sm:$0xf]
        %v609 = vld [vmem:[%s2 + $0x3c] sm:$0xf]
        %v610 = vld [vmem:[%s2 + $0x40] sm:$0xf]
        %v611 = vld [vmem:[%s2 + $0x44] sm:$0xf]
        %v612 = vld [vmem:[%s2 + $0x48] sm:$0xf]
        %v613 = vld [vmem:[%s2 + $0x4c] sm:$0xf]
        %v614 = vld [vmem:[%s2 + $0x50] sm:$0xf]
        %v615 = vld [vmem:[%s2 + $0x54] sm:$0xf]
        %v616 = vld [vmem:[%s2 + $0x58] sm:$0xf]
        %v617 = vld [vmem:[%s2 + $0x5c] sm:$0xf]
        %v618 = vld [vmem:[%s2 + $0x60] sm:$0xf]
        %v619 = vld [vmem:[%s2 + $0x64] sm:$0xf]
        %v620 = vld [vmem:[%s2 + $0x68] sm:$0xf]
        %v621 = vld [vmem:[%s2 + $0x6c] sm:$0xf]
        %v622 = vld [vmem:[%s2 + $0x70] sm:$0xf]
        %v623 = vld [vmem:[%s2 + $0x74] sm:$0xf]
        %v624 = vld [vmem:[%s2 + $0x78] sm:$0xf]
        %v625 = vld [vmem:[%s2 + $0x7c] sm:$0xf]
        %v626 = vld [vmem:[%s2 + $0x80] sm:$0xf]
        %v627 = vld [vmem:[%s2 + $0x84] sm:$0xf]
        %v628 = vld [vmem:[%s2 + $0x88] sm:$0xf]
        %v629 = vld [vmem:[%s2 + $0x8c] sm:$0xf]
        %v630 = vld [vmem:[%s2 + $0x90] sm:$0xf]
        %v631 = vld [vmem:[%s2 + $0x94] sm:$0xf]
        %v632 = vld [vmem:[%s2 + $0x98] sm:$0xf]
        %v633 = vld [vmem:[%s2 + $0x9c] sm:$0xf]
        %v634 = vld [vmem:[%s2 + $0xa0] sm:$0xf]
        %v635 = vld [vmem:[%s2 + $0xa4] sm:$0xf]
        %v636 = vld [vmem:[%s2 + $0xa8] sm:$0xf]
        %v637 = vld [vmem:[%s2 + $0xac] sm:$0xf]
        %v638 = vld [vmem:[%s2 + $0xb0] sm:$0xf]
        %v639 = vld [vmem:[%s2 + $0xb4] sm:$0xf]
        %v640 = vld [vmem:[%s2 + $0xb8] sm:$0xf]
        %v641 = vld [vmem:[%s2 + $0xbc] sm:$0xf]
        %v642 = vld [vmem:[%s2 + $0xc0] sm:$0xf]
        %v643 = vld [vmem:[%s2 + $0xc4] sm:$0xf]
        %v644 = vld [vmem:[%s2 + $0xc8] sm:$0xf]
        %v645 = vld [vmem:[%s2 + $0xcc] sm:$0xf]
        %v646 = vld [vmem:[%s2 + $0xd0] sm:$0xf]
        %v647 = vld [vmem:[%s2 + $0xd4] sm:$0xf]
        %v648 = vld [vmem:[%s2 + $0xd8] sm:$0xf]
        %v649 = vld [vmem:[%s2 + $0xdc] sm:$0xf]
        %v650 = vld [vmem:[%s2 + $0xe0] sm:$0xf]
        %v651 = vld [vmem:[%s2 + $0xe4] sm:$0xf]
        %v652 = vld [vmem:[%s2 + $0xe8] sm:$0xf]
        %v653 = vld [vmem:[%s2 + $0xec] sm:$0xf]
        %v654 = vld [vmem:[%s2 + $0xf0] sm:$0xf]
        %v655 = vld [vmem:[%s2 + $0xf4] sm:$0xf]
        %v656 = vld [vmem:[%s2 + $0xf8] sm:$0xf]
        %v657 = vld [vmem:[%s2 + $0xfc] sm:$0xf]
        %v658 = vld [vmem:[%s2 + $0x100] sm:$0xf]
        %v659 = vld [vmem:[%s2 + $0x104] sm:$0xf]
        %v660 = vld [vmem:[%s2 + $0x108] sm:$0xf]
        %v661 = vld [vmem:[%s2 + $0x10c] sm:$0xf]
        %v662 = vld [vmem:[%s2 + $0x110] sm:$0xf]
        %v663 = vld [vmem:[%s2 + $0x114] sm:$0xf]
        %v664 = vld [vmem:[%s2 + $0x118] sm:$0xf]
        %v665 = vld [vmem:[%s2 + $0x11c] sm:$0xf]
        %v666 = vld [vmem:[%s2 + $0x120] sm:$0xf]
        %v667 = vld [vmem:[%s2 + $0x124] sm:$0xf]
        %v668 = vld [vmem:[%s2 + $0x128] sm:$0xf]
        %v669 = vld [vmem:[%s2 + $0x12c] sm:$0xf]
        %v670 = vld [vmem:[%s2 + $0x130] sm:$0xf]
        %v671 = vld [vmem:[%s2 + $0x134] sm:$0xf]
        %v672 = vld [vmem:[%s2 + $0x138] sm:$0xf]
        %v673 = vld [vmem:[%s2 + $0x13c] sm:$0xf]
        %v674 = vld [vmem:[%s2 + $0x140] sm:$0xf]
        %v675 = vld [vmem:[%s2 + $0x144] sm:$0xf]
        %v676 = vld [vmem:[%s2 + $0x148] sm:$0xf]
        %v677 = vld [vmem:[%s2 + $0x14c] sm:$0xf]
        %v678 = vld [vmem:[%s2 + $0x150] sm:$0xf]
        %v679 = vld [vmem:[%s2 + $0x154] sm:$0xf]
        %v680 = vld [vmem:[%s2 + $0x158] sm:$0xf]
        %v681 = vld [vmem:[%s2 + $0x15c] sm:$0xf]
        %v682 = vld [vmem:[%s2 + $0x160] sm:$0xf]
        %v683 = vld [vmem:[%s2 + $0x164] sm:$0xf]
        %v684 = vld [vmem:[%s2 + $0x168] sm:$0xf]
        %v685 = vld [vmem:[%s2 + $0x16c] sm:$0xf]
        %v686 = vld [vmem:[%s2 + $0x170] sm:$0xf]
        %v687 = vld [vmem:[%s2 + $0x174] sm:$0xf]
        %v688 = vld [vmem:[%s2 + $0x178] sm:$0xf]
        %v689 = vld [vmem:[%s2 + $0x17c] sm:$0xf]
        %v690 = vld [vmem:[%s2 + $0x180] sm:$0xf]
        %v691 = vld [vmem:[%s2 + $0x184] sm:$0xf]
        %v692 = vld [vmem:[%s3] sm:$0x1]
        %v694 = vperm.slane %v692, 0
        %v794 = vunpack.c.l.b16 %v594
        %v795 = vunpack.c.l.b16 %v595
        %v796 = vunpack.c.l.b16 %v596
        %v797 = vunpack.c.l.b16 %v597
        %v798 = vunpack.c.l.b16 %v598
        %v799 = vunpack.c.l.b16 %v599
        %v800 = vunpack.c.l.b16 %v600
        %v801 = vunpack.c.l.b16 %v601
        %v802 = vunpack.c.l.b16 %v602
        %v803 = vunpack.c.l.b16 %v603
        %v804 = vunpack.c.l.b16 %v604
        %v805 = vunpack.c.l.b16 %v605
        %v806 = vunpack.c.l.b16 %v606
        %v807 = vunpack.c.l.b16 %v607
        %v808 = vunpack.c.l.b16 %v608
        %v809 = vunpack.c.l.b16 %v609
        %v810 = vunpack.c.l.b16 %v610
        %v811 = vunpack.c.l.b16 %v611
        %v812 = vunpack.c.l.b16 %v612
        %v813 = vunpack.c.l.b16 %v613
        %v814 = vunpack.c.l.b16 %v614
        %v815 = vunpack.c.l.b16 %v615
        %v816 = vunpack.c.l.b16 %v616
        %v817 = vunpack.c.l.b16 %v617
        %v818 = vunpack.c.l.b16 %v618
        %v819 = vunpack.c.l.b16 %v619
        %v820 = vunpack.c.l.b16 %v620
        %v821 = vunpack.c.l.b16 %v621
        %v822 = vunpack.c.l.b16 %v622
        %v823 = vunpack.c.l.b16 %v623
        %v824 = vunpack.c.l.b16 %v624
        %v825 = vunpack.c.l.b16 %v625
        %v826 = vunpack.c.l.b16 %v626
        %v827 = vunpack.c.l.b16 %v627
        %v828 = vunpack.c.l.b16 %v628
        %v829 = vunpack.c.l.b16 %v629
        %v830 = vunpack.c.l.b16 %v630
        %v831 = vunpack.c.l.b16 %v631
        %v832 = vunpack.c.l.b16 %v632
        %v833 = vunpack.c.l.b16 %v633
        %v834 = vunpack.c.l.b16 %v634
        %v835 = vunpack.c.l.b16 %v635
        %v836 = vunpack.c.l.b16 %v636
        %v837 = vunpack.c.l.b16 %v637
        %v838 = vunpack.c.l.b16 %v638
        %v839 = vunpack.c.l.b16 %v639
        %v840 = vunpack.c.l.b16 %v640
        %v841 = vunpack.c.l.b16 %v641
        %v842 = vunpack.c.l.b16 %v642
        %v843 = vunpack.c.l.b16 %v643
        %v844 = vunpack.c.l.b16 %v644
        %v845 = vunpack.c.l.b16 %v645
        %v846 = vunpack.c.l.b16 %v646
        %v847 = vunpack.c.l.b16 %v647
        %v848 = vunpack.c.l.b16 %v648
        %v849 = vunpack.c.l.b16 %v649
        %v850 = vunpack.c.l.b16 %v650
        %v851 = vunpack.c.l.b16 %v651
        %v852 = vunpack.c.l.b16 %v652
        %v853 = vunpack.c.l.b16 %v653
        %v854 = vunpack.c.l.b16 %v654
        %v855 = vunpack.c.l.b16 %v655
        %v856 = vunpack.c.l.b16 %v656
        %v857 = vunpack.c.l.b16 %v657
        %v858 = vunpack.c.l.b16 %v658
        %v859 = vunpack.c.l.b16 %v659
        %v860 = vunpack.c.l.b16 %v660
        %v861 = vunpack.c.l.b16 %v661
        %v862 = vunpack.c.l.b16 %v662
        %v863 = vunpack.c.l.b16 %v663
        %v864 = vunpack.c.l.b16 %v664
        %v865 = vunpack.c.l.b16 %v665
        %v866 = vunpack.c.l.b16 %v666
        %v867 = vunpack.c.l.b16 %v667
        %v868 = vunpack.c.l.b16 %v668
        %v869 = vunpack.c.l.b16 %v669
        %v870 = vunpack.c.l.b16 %v670
        %v871 = vunpack.c.l.b16 %v671
        %v872 = vunpack.c.l.b16 %v672
        %v873 = vunpack.c.l.b16 %v673
        %v874 = vunpack.c.l.b16 %v674
        %v875 = vunpack.c.l.b16 %v675
        %v876 = vunpack.c.l.b16 %v676
        %v877 = vunpack.c.l.b16 %v677
        %v878 = vunpack.c.l.b16 %v678
        %v879 = vunpack.c.l.b16 %v679
        %v880 = vunpack.c.l.b16 %v680
        %v881 = vunpack.c.l.b16 %v681
        %v882 = vunpack.c.l.b16 %v682
        %v883 = vunpack.c.l.b16 %v683
        %v884 = vunpack.c.l.b16 %v684
        %v885 = vunpack.c.l.b16 %v685
        %v886 = vunpack.c.l.b16 %v686
        %v887 = vunpack.c.l.b16 %v687
        %v888 = vunpack.c.l.b16 %v688
        %v889 = vunpack.c.l.b16 %v689
        %v890 = vunpack.c.l.b16 %v690
        %v891 = vunpack.c.l.b16 %v691
        %v892 = vpack.c.b16 %v795, %v794
        %v893 = vpack.c.b16 %v797, %v796
        %v894 = vpack.c.b16 %v799, %v798
        %v895 = vpack.c.b16 %v801, %v800
        %v896 = vpack.c.b16 %v803, %v802
        %v897 = vpack.c.b16 %v805, %v804
        %v898 = vpack.c.b16 %v807, %v806
        %v899 = vpack.c.b16 %v809, %v808
        %v900 = vpack.c.b16 %v811, %v810
        %v901 = vpack.c.b16 %v813, %v812
        %v902 = vpack.c.b16 %v815, %v814
        %v903 = vpack.c.b16 %v817, %v816
        %v904 = vpack.c.b16 %v819, %v818
        %v905 = vpack.c.b16 %v821, %v820
        %v906 = vpack.c.b16 %v823, %v822
        %v907 = vpack.c.b16 %v825, %v824
        %v908 = vpack.c.b16 %v827, %v826
        %v909 = vpack.c.b16 %v829, %v828
        %v910 = vpack.c.b16 %v831, %v830
        %v911 = vpack.c.b16 %v833, %v832
        %v912 = vpack.c.b16 %v835, %v834
        %v913 = vpack.c.b16 %v837, %v836
        %v914 = vpack.c.b16 %v839, %v838
        %v915 = vpack.c.b16 %v841, %v840
        %v916 = vpack.c.b16 %v843, %v842
        %v917 = vpack.c.b16 %v845, %v844
        %v918 = vpack.c.b16 %v847, %v846
        %v919 = vpack.c.b16 %v849, %v848
        %v920 = vpack.c.b16 %v851, %v850
        %v921 = vpack.c.b16 %v853, %v852
        %v922 = vpack.c.b16 %v855, %v854
        %v923 = vpack.c.b16 %v857, %v856
        %v924 = vpack.c.b16 %v859, %v858
        %v925 = vpack.c.b16 %v861, %v860
        %v926 = vpack.c.b16 %v863, %v862
        %v927 = vpack.c.b16 %v865, %v864
        %v928 = vpack.c.b16 %v867, %v866
        %v929 = vpack.c.b16 %v869, %v868
        %v930 = vpack.c.b16 %v871, %v870
        %v931 = vpack.c.b16 %v873, %v872
        %v932 = vpack.c.b16 %v875, %v874
        %v933 = vpack.c.b16 %v877, %v876
        %v934 = vpack.c.b16 %v879, %v878
        %v935 = vpack.c.b16 %v881, %v880
        %v936 = vpack.c.b16 %v883, %v882
        %v937 = vpack.c.b16 %v885, %v884
        %v938 = vpack.c.b16 %v887, %v886
        %v939 = vpack.c.b16 %v889, %v888
        %v940 = vpack.c.b16 %v891, %v890
        %vm990 = vcmask 130048
        %v992 = vsel %vm990, %v544, 0
        %v995 = vsel %vm990, %v551, 0
        %v998 = vsel %vm990, %v558, 0
        %v1001 = vsel %vm990, %v565, 0
        %v1004 = vsel %vm990, %v572, 0
        %v1007 = vsel %vm990, %v579, 0
        %v1010 = vsel %vm990, %v586, 0
        %v1013 = vsel %vm990, %v593, 0
        %1015 = vmatpush.bf16.msra.mxu0 %v899
        %1016 = vmatpush.bf16.msra.mxu0 %v898
        %1017 = vmatpush.bf16.msra.mxu0 %v897
        %1018 = vmatpush.bf16.msra.mxu0 %v896
        %1019 = vmatpush.bf16.msra.mxu0 %v895
        %1020 = vmatpush.bf16.msra.mxu0 %v894
        %1021 = vmatpush.bf16.msra.mxu0 %v893
        %1022 = vmatpush.bf16.msra.mxu0 %v892
        %1023 = vmatmul.bf16.gmra.mxu0 %v538
        %v1024 = vpop.f32.mrf.mxu0
        %v1025 = vadd.f32 %v694, %v1024
        %v1026 = vpop.f32.mrf.mxu0
        %v1027 = vadd.f32 %v694, %v1026
        %1028 = vmatmul.bf16.gmra.mxu0 %v545
        %v1029 = vpop.f32.mrf.mxu0
        %v1030 = vadd.f32 %v694, %v1029
        %v1031 = vpop.f32.mrf.mxu0
        %v1032 = vadd.f32 %v694, %v1031
        %1033 = vmatmul.bf16.gmra.mxu0 %v552
        %v1034 = vpop.f32.mrf.mxu0
        %v1035 = vadd.f32 %v694, %v1034
        %v1036 = vpop.f32.mrf.mxu0
        %v1037 = vadd.f32 %v694, %v1036
        %1038 = vmatmul.bf16.gmra.mxu0 %v559
        %v1039 = vpop.f32.mrf.mxu0
        %v1040 = vadd.f32 %v694, %v1039
        %v1041 = vpop.f32.mrf.mxu0
        %v1042 = vadd.f32 %v694, %v1041
        %1043 = vmatmul.bf16.gmra.mxu0 %v566
        %v1044 = vpop.f32.mrf.mxu0
        %v1045 = vadd.f32 %v694, %v1044
        %v1046 = vpop.f32.mrf.mxu0
        %v1047 = vadd.f32 %v694, %v1046
        %1048 = vmatmul.bf16.gmra.mxu0 %v573
        %v1049 = vpop.f32.mrf.mxu0
        %v1050 = vadd.f32 %v694, %v1049
        %v1051 = vpop.f32.mrf.mxu0
        %v1052 = vadd.f32 %v694, %v1051
        %1053 = vmatmul.bf16.gmra.mxu0 %v580
        %v1054 = vpop.f32.mrf.mxu0
        %v1055 = vadd.f32 %v694, %v1054
        %v1056 = vpop.f32.mrf.mxu0
        %v1057 = vadd.f32 %v694, %v1056
        %1058 = vmatmul.bf16.gmra.mxu0 %v587
        %v1059 = vpop.f32.mrf.mxu0
        %v1060 = vadd.f32 %v694, %v1059
        %v1061 = vpop.f32.mrf.mxu0
        %v1062 = vadd.f32 %v694, %v1061
        %1063 = vdwg.mxu0
        %1064 = vmatpush.bf16.msra.mxu0 %v907
        %1065 = vmatpush.bf16.msra.mxu0 %v906
        %1066 = vmatpush.bf16.msra.mxu0 %v905
        %1067 = vmatpush.bf16.msra.mxu0 %v904
        %1068 = vmatpush.bf16.msra.mxu0 %v903
        %1069 = vmatpush.bf16.msra.mxu0 %v902
        %1070 = vmatpush.bf16.msra.mxu0 %v901
        %1071 = vmatpush.bf16.msra.mxu0 %v900
        %1072 = vmatmul.bf16.gmra.mxu0 %v539
        %v1073 = vpop.f32.mrf.mxu0
        %v1074 = vadd.f32 %v1025, %v1073
        %v1075 = vpop.f32.mrf.mxu0
        %v1076 = vadd.f32 %v1027, %v1075
        %1077 = vmatmul.bf16.gmra.mxu0 %v546
        %v1078 = vpop.f32.mrf.mxu0
        %v1079 = vadd.f32 %v1030, %v1078
        %v1080 = vpop.f32.mrf.mxu0
        %v1081 = vadd.f32 %v1032, %v1080
        %1082 = vmatmul.bf16.gmra.mxu0 %v553
        %v1083 = vpop.f32.mrf.mxu0
        %v1084 = vadd.f32 %v1035, %v1083
        %v1085 = vpop.f32.mrf.mxu0
        %v1086 = vadd.f32 %v1037, %v1085
        %1087 = vmatmul.bf16.gmra.mxu0 %v560
        %v1088 = vpop.f32.mrf.mxu0
        %v1089 = vadd.f32 %v1040, %v1088
        %v1090 = vpop.f32.mrf.mxu0
        %v1091 = vadd.f32 %v1042, %v1090
        %1092 = vmatmul.bf16.gmra.mxu0 %v567
        %v1093 = vpop.f32.mrf.mxu0
        %v1094 = vadd.f32 %v1045, %v1093
        %v1095 = vpop.f32.mrf.mxu0
        %v1096 = vadd.f32 %v1047, %v1095
        %1097 = vmatmul.bf16.gmra.mxu0 %v574
        %v1098 = vpop.f32.mrf.mxu0
        %v1099 = vadd.f32 %v1050, %v1098
        %v1100 = vpop.f32.mrf.mxu0
        %v1101 = vadd.f32 %v1052, %v1100
        %1102 = vmatmul.bf16.gmra.mxu0 %v581
        %v1103 = vpop.f32.mrf.mxu0
        %v1104 = vadd.f32 %v1055, %v1103
        %v1105 = vpop.f32.mrf.mxu0
        %v1106 = vadd.f32 %v1057, %v1105
        %1107 = vmatmul.bf16.gmra.mxu0 %v588
        %v1108 = vpop.f32.mrf.mxu0
        %v1109 = vadd.f32 %v1060, %v1108
        %v1110 = vpop.f32.mrf.mxu0
        %v1111 = vadd.f32 %v1062, %v1110
        %1112 = vdwg.mxu0
        %1113 = vmatpush.bf16.msra.mxu0 %v915
        %1114 = vmatpush.bf16.msra.mxu0 %v914
        %1115 = vmatpush.bf16.msra.mxu0 %v913
        %1116 = vmatpush.bf16.msra.mxu0 %v912
        %1117 = vmatpush.bf16.msra.mxu0 %v911
        %1118 = vmatpush.bf16.msra.mxu0 %v910
        %1119 = vmatpush.bf16.msra.mxu0 %v909
        %1120 = vmatpush.bf16.msra.mxu0 %v908
        %1121 = vmatmul.bf16.gmra.mxu0 %v540
        %v1122 = vpop.f32.mrf.mxu0
        %v1123 = vadd.f32 %v1074, %v1122
        %v1124 = vpop.f32.mrf.mxu0
        %v1125 = vadd.f32 %v1076, %v1124
        %1126 = vmatmul.bf16.gmra.mxu0 %v547
        %v1127 = vpop.f32.mrf.mxu0
        %v1128 = vadd.f32 %v1079, %v1127
        %v1129 = vpop.f32.mrf.mxu0
        %v1130 = vadd.f32 %v1081, %v1129
        %1131 = vmatmul.bf16.gmra.mxu0 %v554
        %v1132 = vpop.f32.mrf.mxu0
        %v1133 = vadd.f32 %v1084, %v1132
        %v1134 = vpop.f32.mrf.mxu0
        %v1135 = vadd.f32 %v1086, %v1134
        %1136 = vmatmul.bf16.gmra.mxu0 %v561
        %v1137 = vpop.f32.mrf.mxu0
        %v1138 = vadd.f32 %v1089, %v1137
        %v1139 = vpop.f32.mrf.mxu0
        %v1140 = vadd.f32 %v1091, %v1139
        %1141 = vmatmul.bf16.gmra.mxu0 %v568
        %v1142 = vpop.f32.mrf.mxu0
        %v1143 = vadd.f32 %v1094, %v1142
        %v1144 = vpop.f32.mrf.mxu0
        %v1145 = vadd.f32 %v1096, %v1144
        %1146 = vmatmul.bf16.gmra.mxu0 %v575
        %v1147 = vpop.f32.mrf.mxu0
        %v1148 = vadd.f32 %v1099, %v1147
        %v1149 = vpop.f32.mrf.mxu0
        %v1150 = vadd.f32 %v1101, %v1149
        %1151 = vmatmul.bf16.gmra.mxu0 %v582
        %v1152 = vpop.f32.mrf.mxu0
        %v1153 = vadd.f32 %v1104, %v1152
        %v1154 = vpop.f32.mrf.mxu0
        %v1155 = vadd.f32 %v1106, %v1154
        %1156 = vmatmul.bf16.gmra.mxu0 %v589
        %v1157 = vpop.f32.mrf.mxu0
        %v1158 = vadd.f32 %v1109, %v1157
        %v1159 = vpop.f32.mrf.mxu0
        %v1160 = vadd.f32 %v1111, %v1159
        %1161 = vdwg.mxu0
        %1162 = vmatpush.bf16.msra.mxu0 %v923
        %1163 = vmatpush.bf16.msra.mxu0 %v922
        %1164 = vmatpush.bf16.msra.mxu0 %v921
        %1165 = vmatpush.bf16.msra.mxu0 %v920
        %1166 = vmatpush.bf16.msra.mxu0 %v919
        %1167 = vmatpush.bf16.msra.mxu0 %v918
        %1168 = vmatpush.bf16.msra.mxu0 %v917
        %1169 = vmatpush.bf16.msra.mxu0 %v916
        %1170 = vmatmul.bf16.gmra.mxu0 %v541
        %v1171 = vpop.f32.mrf.mxu0
        %v1172 = vadd.f32 %v1123, %v1171
        %v1173 = vpop.f32.mrf.mxu0
        %v1174 = vadd.f32 %v1125, %v1173
        %1175 = vmatmul.bf16.gmra.mxu0 %v548
        %v1176 = vpop.f32.mrf.mxu0
        %v1177 = vadd.f32 %v1128, %v1176
        %v1178 = vpop.f32.mrf.mxu0
        %v1179 = vadd.f32 %v1130, %v1178
        %1180 = vmatmul.bf16.gmra.mxu0 %v555
        %v1181 = vpop.f32.mrf.mxu0
        %v1182 = vadd.f32 %v1133, %v1181
        %v1183 = vpop.f32.mrf.mxu0
        %v1184 = vadd.f32 %v1135, %v1183
        %1185 = vmatmul.bf16.gmra.mxu0 %v562
        %v1186 = vpop.f32.mrf.mxu0
        %v1187 = vadd.f32 %v1138, %v1186
        %v1188 = vpop.f32.mrf.mxu0
        %v1189 = vadd.f32 %v1140, %v1188
        %1190 = vmatmul.bf16.gmra.mxu0 %v569
        %v1191 = vpop.f32.mrf.mxu0
        %v1192 = vadd.f32 %v1143, %v1191
        %v1193 = vpop.f32.mrf.mxu0
        %v1194 = vadd.f32 %v1145, %v1193
        %1195 = vmatmul.bf16.gmra.mxu0 %v576
        %v1196 = vpop.f32.mrf.mxu0
        %v1197 = vadd.f32 %v1148, %v1196
        %v1198 = vpop.f32.mrf.mxu0
        %v1199 = vadd.f32 %v1150, %v1198
        %1200 = vmatmul.bf16.gmra.mxu0 %v583
        %v1201 = vpop.f32.mrf.mxu0
        %v1202 = vadd.f32 %v1153, %v1201
        %v1203 = vpop.f32.mrf.mxu0
        %v1204 = vadd.f32 %v1155, %v1203
        %1205 = vmatmul.bf16.gmra.mxu0 %v590
        %v1206 = vpop.f32.mrf.mxu0
        %v1207 = vadd.f32 %v1158, %v1206
        %v1208 = vpop.f32.mrf.mxu0
        %v1209 = vadd.f32 %v1160, %v1208
        %1210 = vdwg.mxu0
        %1211 = vmatpush.bf16.msra.mxu0 %v931
        %1212 = vmatpush.bf16.msra.mxu0 %v930
        %1213 = vmatpush.bf16.msra.mxu0 %v929
        %1214 = vmatpush.bf16.msra.mxu0 %v928
        %1215 = vmatpush.bf16.msra.mxu0 %v927
        %1216 = vmatpush.bf16.msra.mxu0 %v926
        %1217 = vmatpush.bf16.msra.mxu0 %v925
        %1218 = vmatpush.bf16.msra.mxu0 %v924
        %1219 = vmatmul.bf16.gmra.mxu0 %v542
        %v1220 = vpop.f32.mrf.mxu0
        %v1221 = vadd.f32 %v1172, %v1220
        %v1222 = vpop.f32.mrf.mxu0
        %v1223 = vadd.f32 %v1174, %v1222
        %1224 = vmatmul.bf16.gmra.mxu0 %v549
        %v1225 = vpop.f32.mrf.mxu0
        %v1226 = vadd.f32 %v1177, %v1225
        %v1227 = vpop.f32.mrf.mxu0
        %v1228 = vadd.f32 %v1179, %v1227
        %1229 = vmatmul.bf16.gmra.mxu0 %v556
        %v1230 = vpop.f32.mrf.mxu0
        %v1231 = vadd.f32 %v1182, %v1230
        %v1232 = vpop.f32.mrf.mxu0
        %v1233 = vadd.f32 %v1184, %v1232
        %1234 = vmatmul.bf16.gmra.mxu0 %v563
        %v1235 = vpop.f32.mrf.mxu0
        %v1236 = vadd.f32 %v1187, %v1235
        %v1237 = vpop.f32.mrf.mxu0
        %v1238 = vadd.f32 %v1189, %v1237
        %1239 = vmatmul.bf16.gmra.mxu0 %v570
        %v1240 = vpop.f32.mrf.mxu0
        %v1241 = vadd.f32 %v1192, %v1240
        %v1242 = vpop.f32.mrf.mxu0
        %v1243 = vadd.f32 %v1194, %v1242
        %1244 = vmatmul.bf16.gmra.mxu0 %v577
        %v1245 = vpop.f32.mrf.mxu0
        %v1246 = vadd.f32 %v1197, %v1245
        %v1247 = vpop.f32.mrf.mxu0
        %v1248 = vadd.f32 %v1199, %v1247
        %1249 = vmatmul.bf16.gmra.mxu0 %v584
        %v1250 = vpop.f32.mrf.mxu0
        %v1251 = vadd.f32 %v1202, %v1250
        %v1252 = vpop.f32.mrf.mxu0
        %v1253 = vadd.f32 %v1204, %v1252
        %1254 = vmatmul.bf16.gmra.mxu0 %v591
        %v1255 = vpop.f32.mrf.mxu0
        %v1256 = vadd.f32 %v1207, %v1255
        %v1257 = vpop.f32.mrf.mxu0
        %v1258 = vadd.f32 %v1209, %v1257
        %1259 = vdwg.mxu0
        %1260 = vmatpush.bf16.msra.mxu0 %v939
        %1261 = vmatpush.bf16.msra.mxu0 %v938
        %1262 = vmatpush.bf16.msra.mxu0 %v937
        %1263 = vmatpush.bf16.msra.mxu0 %v936
        %1264 = vmatpush.bf16.msra.mxu0 %v935
        %1265 = vmatpush.bf16.msra.mxu0 %v934
        %1266 = vmatpush.bf16.msra.mxu0 %v933
        %1267 = vmatpush.bf16.msra.mxu0 %v932
        %1268 = vmatmul.bf16.gmra.mxu0 %v543
        %v1269 = vpop.f32.mrf.mxu0
        %v1270 = vadd.f32 %v1221, %v1269
        %v1271 = vpop.f32.mrf.mxu0
        %v1272 = vadd.f32 %v1223, %v1271
        %1273 = vmatmul.bf16.gmra.mxu0 %v550
        %v1274 = vpop.f32.mrf.mxu0
        %v1275 = vadd.f32 %v1226, %v1274
        %v1276 = vpop.f32.mrf.mxu0
        %v1277 = vadd.f32 %v1228, %v1276
        %1278 = vmatmul.bf16.gmra.mxu0 %v557
        %v1279 = vpop.f32.mrf.mxu0
        %v1280 = vadd.f32 %v1231, %v1279
        %v1281 = vpop.f32.mrf.mxu0
        %v1282 = vadd.f32 %v1233, %v1281
        %1283 = vmatmul.bf16.gmra.mxu0 %v564
        %v1284 = vpop.f32.mrf.mxu0
        %v1285 = vadd.f32 %v1236, %v1284
        %v1286 = vpop.f32.mrf.mxu0
        %v1287 = vadd.f32 %v1238, %v1286
        %1288 = vmatmul.bf16.gmra.mxu0 %v571
        %v1289 = vpop.f32.mrf.mxu0
        %v1290 = vadd.f32 %v1241, %v1289
        %v1291 = vpop.f32.mrf.mxu0
        %v1292 = vadd.f32 %v1243, %v1291
        %1293 = vmatmul.bf16.gmra.mxu0 %v578
        %v1294 = vpop.f32.mrf.mxu0
        %v1295 = vadd.f32 %v1246, %v1294
        %v1296 = vpop.f32.mrf.mxu0
        %v1297 = vadd.f32 %v1248, %v1296
        %1298 = vmatmul.bf16.gmra.mxu0 %v585
        %v1299 = vpop.f32.mrf.mxu0
        %v1300 = vadd.f32 %v1251, %v1299
        %v1301 = vpop.f32.mrf.mxu0
        %v1302 = vadd.f32 %v1253, %v1301
        %1303 = vmatmul.bf16.gmra.mxu0 %v592
        %v1304 = vpop.f32.mrf.mxu0
        %v1305 = vadd.f32 %v1256, %v1304
        %v1306 = vpop.f32.mrf.mxu0
        %v1307 = vadd.f32 %v1258, %v1306
        %1308 = vdwg.mxu0
        %1309 = vmatpush.bf16.msra.mxu0 0
        %1310 = vmatpush.bf16.msra.mxu0 0
        %1311 = vmatpush.bf16.msra.mxu0 0
        %1312 = vmatpush.bf16.msra.mxu0 0
        %1313 = vmatpush.bf16.msra.mxu0 0
        %1314 = vmatpush.bf16.msra.mxu0 0
        %1315 = vmatpush.bf16.msra.mxu0 0
        %1316 = vmatpush.bf16.msra.mxu0 %v940
        %1317 = vmatmul.bf16.gmra.mxu0 %v992
        %v1318 = vpop.f32.mrf.mxu0
        %v1319 = vadd.f32 %v1270, %v1318
        %v1320 = vpop.f32.mrf.mxu0
        %v1321 = vadd.f32 %v1272, %v1320
        %1322 = vmatmul.bf16.gmra.mxu0 %v995
        %v1323 = vpop.f32.mrf.mxu0
        %v1324 = vadd.f32 %v1275, %v1323
        %v1325 = vpop.f32.mrf.mxu0
        %v1326 = vadd.f32 %v1277, %v1325
        %1327 = vmatmul.bf16.gmra.mxu0 %v998
        %v1328 = vpop.f32.mrf.mxu0
        %v1329 = vadd.f32 %v1280, %v1328
        %v1330 = vpop.f32.mrf.mxu0
        %v1331 = vadd.f32 %v1282, %v1330
        %1332 = vmatmul.bf16.gmra.mxu0 %v1001
        %v1333 = vpop.f32.mrf.mxu0
        %v1334 = vadd.f32 %v1285, %v1333
        %v1335 = vpop.f32.mrf.mxu0
        %v1336 = vadd.f32 %v1287, %v1335
        %1337 = vmatmul.bf16.gmra.mxu0 %v1004
        %v1338 = vpop.f32.mrf.mxu0
        %v1339 = vadd.f32 %v1290, %v1338
        %v1340 = vpop.f32.mrf.mxu0
        %v1341 = vadd.f32 %v1292, %v1340
        %1342 = vmatmul.bf16.gmra.mxu0 %v1007
        %v1343 = vpop.f32.mrf.mxu0
        %v1344 = vadd.f32 %v1295, %v1343
        %v1345 = vpop.f32.mrf.mxu0
        %v1346 = vadd.f32 %v1297, %v1345
        %1347 = vmatmul.bf16.gmra.mxu0 %v1010
        %v1348 = vpop.f32.mrf.mxu0
        %v1349 = vadd.f32 %v1300, %v1348
        %v1350 = vpop.f32.mrf.mxu0
        %v1351 = vadd.f32 %v1302, %v1350
        %1352 = vmatmul.bf16.gmra.mxu0 %v1013
        %v1353 = vpop.f32.mrf.mxu0
        %v1354 = vadd.f32 %v1305, %v1353
        %v1355 = vpop.f32.mrf.mxu0
        %v1356 = vadd.f32 %v1307, %v1355
        %1357 = vdwg.mxu0
        %v1358 = vmax.f32 %v1319, 0.0
        %v1359 = vmax.f32 %v1321, 0.0
        %v1360 = vmax.f32 %v1324, 0.0
        %v1361 = vmax.f32 %v1326, 0.0
        %v1362 = vmax.f32 %v1329, 0.0
        %v1363 = vmax.f32 %v1331, 0.0
        %v1364 = vmax.f32 %v1334, 0.0
        %v1365 = vmax.f32 %v1336, 0.0
        %v1366 = vmax.f32 %v1339, 0.0
        %v1367 = vmax.f32 %v1341, 0.0
        %v1368 = vmax.f32 %v1344, 0.0
        %v1369 = vmax.f32 %v1346, 0.0
        %v1370 = vmax.f32 %v1349, 0.0
        %v1371 = vmax.f32 %v1351, 0.0
        %v1372 = vmax.f32 %v1354, 0.0
        %v1373 = vmax.f32 %v1356, 0.0
        %v1374 = vpack.c.bf16 %v1359, %v1358
        %v1375 = vpack.c.bf16 %v1361, %v1360
        %v1376 = vpack.c.bf16 %v1363, %v1362
        %v1377 = vpack.c.bf16 %v1365, %v1364
        %v1378 = vpack.c.bf16 %v1367, %v1366
        %v1379 = vpack.c.bf16 %v1369, %v1368
        %v1380 = vpack.c.bf16 %v1371, %v1370
        %v1381 = vpack.c.bf16 %v1373, %v1372
        %v1382 = vld [vmem:[%s4] sm:$0xff]
        %v1383 = vld [vmem:[%s4 + $0x8] sm:$0xff]
        %v1384 = vld [vmem:[%s4 + $0x10] sm:$0xff]
        %v1385 = vld [vmem:[%s4 + $0x18] sm:$0xff]
        %v1386 = vld [vmem:[%s4 + $0x20] sm:$0xff]
        %v1387 = vld [vmem:[%s4 + $0x28] sm:$0xff]
        %v1388 = vld [vmem:[%s4 + $0x30] sm:$0xff]
        %v1389 = vld [vmem:[%s4 + $0x38] sm:$0xff]
        %v1390 = vld [vmem:[%s4 + $0x40] sm:$0xff]
        %v1391 = vld [vmem:[%s4 + $0x48] sm:$0xff]
        %v1392 = vld [vmem:[%s4 + $0x50] sm:$0xff]
        %v1393 = vld [vmem:[%s4 + $0x58] sm:$0xff]
        %v1394 = vld [vmem:[%s4 + $0x60] sm:$0xff]
        %v1395 = vld [vmem:[%s4 + $0x68] sm:$0xff]
        %v1396 = vld [vmem:[%s4 + $0x70] sm:$0xff]
        %v1397 = vld [vmem:[%s4 + $0x78] sm:$0xff]
        %v1398 = vld [vmem:[%s5] sm:$0x3]
        %v1400 = vperm.slane %v1398, 0
        %v1401 = vperm.slane %v1398, 1
        %v1420 = vunpack.c.l.b16 %v1382
        %v1421 = vunpack.c.h.b16 %v1382
        %v1422 = vunpack.c.l.b16 %v1383
        %v1423 = vunpack.c.h.b16 %v1383
        %v1424 = vunpack.c.l.b16 %v1384
        %v1425 = vunpack.c.h.b16 %v1384
        %v1426 = vunpack.c.l.b16 %v1385
        %v1427 = vunpack.c.h.b16 %v1385
        %v1428 = vunpack.c.l.b16 %v1386
        %v1429 = vunpack.c.h.b16 %v1386
        %v1430 = vunpack.c.l.b16 %v1387
        %v1431 = vunpack.c.h.b16 %v1387
        %v1432 = vunpack.c.l.b16 %v1388
        %v1433 = vunpack.c.h.b16 %v1388
        %v1434 = vunpack.c.l.b16 %v1389
        %v1435 = vunpack.c.h.b16 %v1389
        %v1436 = vunpack.c.l.b16 %v1390
        %v1437 = vunpack.c.h.b16 %v1390
        %v1438 = vunpack.c.l.b16 %v1391
        %v1439 = vunpack.c.h.b16 %v1391
        %v1440 = vunpack.c.l.b16 %v1392
        %v1441 = vunpack.c.h.b16 %v1392
        %v1442 = vunpack.c.l.b16 %v1393
        %v1443 = vunpack.c.h.b16 %v1393
        %v1444 = vunpack.c.l.b16 %v1394
        %v1445 = vunpack.c.h.b16 %v1394
        %v1446 = vunpack.c.l.b16 %v1395
        %v1447 = vunpack.c.h.b16 %v1395
        %v1448 = vunpack.c.l.b16 %v1396
        %v1449 = vunpack.c.h.b16 %v1396
        %v1450 = vunpack.c.l.b16 %v1397
        %v1451 = vunpack.c.h.b16 %v1397
        %v1452 = vpack.c.b16 %v1422, %v1420
        %v1453 = vpack.c.b16 %v1423, %v1421
        %v1454 = vpack.c.b16 %v1426, %v1424
        %v1455 = vpack.c.b16 %v1427, %v1425
        %v1456 = vpack.c.b16 %v1430, %v1428
        %v1457 = vpack.c.b16 %v1431, %v1429
        %v1458 = vpack.c.b16 %v1434, %v1432
        %v1459 = vpack.c.b16 %v1435, %v1433
        %v1460 = vpack.c.b16 %v1438, %v1436
        %v1461 = vpack.c.b16 %v1439, %v1437
        %v1462 = vpack.c.b16 %v1442, %v1440
        %v1463 = vpack.c.b16 %v1443, %v1441
        %v1464 = vpack.c.b16 %v1446, %v1444
        %v1465 = vpack.c.b16 %v1447, %v1445
        %v1466 = vpack.c.b16 %v1450, %v1448
        %v1467 = vpack.c.b16 %v1451, %v1449
        %1484 = vmatpush.bf16.msra.mxu0 %v1466
        %1485 = vmatpush.bf16.msra.mxu0 %v1464
        %1486 = vmatpush.bf16.msra.mxu0 %v1462
        %1487 = vmatpush.bf16.msra.mxu0 %v1460
        %1488 = vmatpush.bf16.msra.mxu0 %v1458
        %1489 = vmatpush.bf16.msra.mxu0 %v1456
        %1490 = vmatpush.bf16.msra.mxu0 %v1454
        %1491 = vmatpush.bf16.msra.mxu0 %v1452
        %1492 = vmatmul.bf16.gmra.mxu0 %v1374
        %v1493 = vpop.f32.mrf.mxu0
        %v1494 = vadd.f32 %v1400, %v1493
        %v1495 = vpop.f32.mrf.mxu0
        %v1496 = vadd.f32 %v1400, %v1495
        %1497 = vmatmul.bf16.gmra.mxu0 %v1375
        %v1498 = vpop.f32.mrf.mxu0
        %v1499 = vadd.f32 %v1400, %v1498
        %v1500 = vpop.f32.mrf.mxu0
        %v1501 = vadd.f32 %v1400, %v1500
        %1502 = vmatmul.bf16.gmra.mxu0 %v1376
        %v1503 = vpop.f32.mrf.mxu0
        %v1504 = vadd.f32 %v1400, %v1503
        %v1505 = vpop.f32.mrf.mxu0
        %v1506 = vadd.f32 %v1400, %v1505
        %1507 = vmatmul.bf16.gmra.mxu0 %v1377
        %v1508 = vpop.f32.mrf.mxu0
        %v1509 = vadd.f32 %v1400, %v1508
        %v1510 = vpop.f32.mrf.mxu0
        %v1511 = vadd.f32 %v1400, %v1510
        %1512 = vmatmul.bf16.gmra.mxu0 %v1378
        %v1513 = vpop.f32.mrf.mxu0
        %v1514 = vadd.f32 %v1400, %v1513
        %v1515 = vpop.f32.mrf.mxu0
        %v1516 = vadd.f32 %v1400, %v1515
        %1517 = vmatmul.bf16.gmra.mxu0 %v1379
        %v1518 = vpop.f32.mrf.mxu0
        %v1519 = vadd.f32 %v1400, %v1518
        %v1520 = vpop.f32.mrf.mxu0
        %v1521 = vadd.f32 %v1400, %v1520
        %1522 = vmatmul.bf16.gmra.mxu0 %v1380
        %v1523 = vpop.f32.mrf.mxu0
        %v1524 = vadd.f32 %v1400, %v1523
        %v1525 = vpop.f32.mrf.mxu0
        %v1526 = vadd.f32 %v1400, %v1525
        %1527 = vmatmul.bf16.gmra.mxu0 %v1381
        %v1528 = vpop.f32.mrf.mxu0
        %v1529 = vadd.f32 %v1400, %v1528
        %v1530 = vpop.f32.mrf.mxu0
        %v1531 = vadd.f32 %v1400, %v1530
        %1532 = vdwg.mxu0
        %1533 = vmatpush.bf16.msra.mxu0 %v1467
        %1534 = vmatpush.bf16.msra.mxu0 %v1465
        %1535 = vmatpush.bf16.msra.mxu0 %v1463
        %1536 = vmatpush.bf16.msra.mxu0 %v1461
        %1537 = vmatpush.bf16.msra.mxu0 %v1459
        %1538 = vmatpush.bf16.msra.mxu0 %v1457
        %1539 = vmatpush.bf16.msra.mxu0 %v1455
        %1540 = vmatpush.bf16.msra.mxu0 %v1453
        %1541 = vmatmul.bf16.gmra.mxu0 %v1374
        %v1542 = vpop.f32.mrf.mxu0
        %v1543 = vadd.f32 %v1401, %v1542
        %v1544 = vpop.f32.mrf.mxu0
        %v1545 = vadd.f32 %v1401, %v1544
        %1546 = vmatmul.bf16.gmra.mxu0 %v1375
        %v1547 = vpop.f32.mrf.mxu0
        %v1548 = vadd.f32 %v1401, %v1547
        %v1549 = vpop.f32.mrf.mxu0
        %v1550 = vadd.f32 %v1401, %v1549
        %1551 = vmatmul.bf16.gmra.mxu0 %v1376
        %v1552 = vpop.f32.mrf.mxu0
        %v1553 = vadd.f32 %v1401, %v1552
        %v1554 = vpop.f32.mrf.mxu0
        %v1555 = vadd.f32 %v1401, %v1554
        %1556 = vmatmul.bf16.gmra.mxu0 %v1377
        %v1557 = vpop.f32.mrf.mxu0
        %v1558 = vadd.f32 %v1401, %v1557
        %v1559 = vpop.f32.mrf.mxu0
        %v1560 = vadd.f32 %v1401, %v1559
        %1561 = vmatmul.bf16.gmra.mxu0 %v1378
        %v1562 = vpop.f32.mrf.mxu0
        %v1563 = vadd.f32 %v1401, %v1562
        %v1564 = vpop.f32.mrf.mxu0
        %v1565 = vadd.f32 %v1401, %v1564
        %1566 = vmatmul.bf16.gmra.mxu0 %v1379
        %v1567 = vpop.f32.mrf.mxu0
        %v1568 = vadd.f32 %v1401, %v1567
        %v1569 = vpop.f32.mrf.mxu0
        %v1570 = vadd.f32 %v1401, %v1569
        %1571 = vmatmul.bf16.gmra.mxu0 %v1380
        %v1572 = vpop.f32.mrf.mxu0
        %v1573 = vadd.f32 %v1401, %v1572
        %v1574 = vpop.f32.mrf.mxu0
        %v1575 = vadd.f32 %v1401, %v1574
        %1576 = vmatmul.bf16.gmra.mxu0 %v1381
        %v1577 = vpop.f32.mrf.mxu0
        %v1578 = vadd.f32 %v1401, %v1577
        %v1579 = vpop.f32.mrf.mxu0
        %v1580 = vadd.f32 %v1401, %v1579
        %1581 = vdwg.mxu0
        %1582 = vst [vmem:[%s409] sm:$0xff] %v1494
        %1583 = vst [vmem:[%s409 + $0x8] sm:$0xff] %v1543
        %1584 = vst [vmem:[%s409 + $0x10] sm:$0xff] %v1496
        %1585 = vst [vmem:[%s409 + $0x18] sm:$0xff] %v1545
        %1586 = vst [vmem:[%s409 + $0x20] sm:$0xff] %v1499
        %1587 = vst [vmem:[%s409 + $0x28] sm:$0xff] %v1548
        %1588 = vst [vmem:[%s409 + $0x30] sm:$0xff] %v1501
        %1589 = vst [vmem:[%s409 + $0x38] sm:$0xff] %v1550
        %1590 = vst [vmem:[%s409 + $0x40] sm:$0xff] %v1504
        %1591 = vst [vmem:[%s409 + $0x48] sm:$0xff] %v1553
        %1592 = vst [vmem:[%s409 + $0x50] sm:$0xff] %v1506
        %1593 = vst [vmem:[%s409 + $0x58] sm:$0xff] %v1555
        %1594 = vst [vmem:[%s409 + $0x60] sm:$0xff] %v1509
        %1595 = vst [vmem:[%s409 + $0x68] sm:$0xff] %v1558
        %1596 = vst [vmem:[%s409 + $0x70] sm:$0xff] %v1511
        %1597 = vst [vmem:[%s409 + $0x78] sm:$0xff] %v1560
        %1598 = vst [vmem:[%s409 + $0x80] sm:$0xff] %v1514
        %1599 = vst [vmem:[%s409 + $0x88] sm:$0xff] %v1563
        %1600 = vst [vmem:[%s409 + $0x90] sm:$0xff] %v1516
        %1601 = vst [vmem:[%s409 + $0x98] sm:$0xff] %v1565
        %1602 = vst [vmem:[%s409 + $0xa0] sm:$0xff] %v1519
        %1603 = vst [vmem:[%s409 + $0xa8] sm:$0xff] %v1568
        %1604 = vst [vmem:[%s409 + $0xb0] sm:$0xff] %v1521
        %1605 = vst [vmem:[%s409 + $0xb8] sm:$0xff] %v1570
        %1606 = vst [vmem:[%s409 + $0xc0] sm:$0xff] %v1524
        %1607 = vst [vmem:[%s409 + $0xc8] sm:$0xff] %v1573
        %1608 = vst [vmem:[%s409 + $0xd0] sm:$0xff] %v1526
        %1609 = vst [vmem:[%s409 + $0xd8] sm:$0xff] %v1575
        %1610 = vst [vmem:[%s409 + $0xe0] sm:$0xff] %v1529
        %1611 = vst [vmem:[%s409 + $0xe8] sm:$0xff] %v1578
        %1612 = vst [vmem:[%s409 + $0xf0] sm:$0xff] %v1531
        %1613 = vst [vmem:[%s409 + $0xf8] sm:$0xff] %v1580
        %v1614 = vld [vmem:[%s421] sm:$0xff]
        %v1615 = vld [vmem:[%s421 + $0x8] sm:$0xff]
        %v1616 = vld [vmem:[%s421 + $0x10] sm:$0xff]
        %v1617 = vld [vmem:[%s421 + $0x18] sm:$0xff]
        %v1618 = vld [vmem:[%s421 + $0x20] sm:$0xff]
        %v1619 = vld [vmem:[%s421 + $0x28] sm:$0xff]
        %v1620 = vld [vmem:[%s421 + $0x30] sm:$0xff]
        %v1621 = vld [vmem:[%s421 + $0x38] sm:$0xff]
        %v1622 = vld [vmem:[%s421 + $0x40] sm:$0xff]
        %v1623 = vld [vmem:[%s421 + $0x48] sm:$0xff]
        %v1624 = vld [vmem:[%s421 + $0x50] sm:$0xff]
        %v1625 = vld [vmem:[%s421 + $0x58] sm:$0xff]
        %v1626 = vld [vmem:[%s421 + $0x60] sm:$0xff]
        %v1627 = vld [vmem:[%s421 + $0x68] sm:$0xff]
        %v1628 = vld [vmem:[%s421 + $0x70] sm:$0xff]
        %v1629 = vld [vmem:[%s421 + $0x78] sm:$0xff]
        %v1630 = vmul.f32 %v1543, 0.5
        %v1631 = vmul.f32 %v1545, 0.5
        %v1632 = vmul.f32 %v1548, 0.5
        %v1633 = vmul.f32 %v1550, 0.5
        %v1634 = vmul.f32 %v1553, 0.5
        %v1635 = vmul.f32 %v1555, 0.5
        %v1636 = vmul.f32 %v1558, 0.5
        %v1637 = vmul.f32 %v1560, 0.5
        %v1638 = vmul.f32 %v1563, 0.5
        %v1639 = vmul.f32 %v1565, 0.5
        %v1640 = vmul.f32 %v1568, 0.5
        %v1641 = vmul.f32 %v1570, 0.5
        %v1642 = vmul.f32 %v1573, 0.5
        %v1643 = vmul.f32 %v1575, 0.5
        %v1644 = vmul.f32 %v1578, 0.5
        %v1645 = vmul.f32 %v1580, 0.5
        %v1646 = vmul.f32 %v1630, 1.442695
        %v1647 = vpow.pop %v1646
        %v1648 = vmul.f32 %v1631, 1.442695
        %v1649 = vpow.pop %v1648
        %v1650 = vmul.f32 %v1632, 1.442695
        %v1651 = vpow.pop %v1650
        %v1652 = vmul.f32 %v1633, 1.442695
        %v1653 = vpow.pop %v1652
        %v1654 = vmul.f32 %v1634, 1.442695
        %v1655 = vpow.pop %v1654
        %v1656 = vmul.f32 %v1635, 1.442695
        %v1657 = vpow.pop %v1656
        %v1658 = vmul.f32 %v1636, 1.442695
        %v1659 = vpow.pop %v1658
        %v1660 = vmul.f32 %v1637, 1.442695
        %v1661 = vpow.pop %v1660
        %v1662 = vmul.f32 %v1638, 1.442695
        %v1663 = vpow.pop %v1662
        %v1664 = vmul.f32 %v1639, 1.442695
        %v1665 = vpow.pop %v1664
        %v1666 = vmul.f32 %v1640, 1.442695
        %v1667 = vpow.pop %v1666
        %v1668 = vmul.f32 %v1641, 1.442695
        %v1669 = vpow.pop %v1668
        %v1670 = vmul.f32 %v1642, 1.442695
        %v1671 = vpow.pop %v1670
        %v1672 = vmul.f32 %v1643, 1.442695
        %v1673 = vpow.pop %v1672
        %v1674 = vmul.f32 %v1644, 1.442695
        %v1675 = vpow.pop %v1674
        %v1676 = vmul.f32 %v1645, 1.442695
        %v1677 = vpow.pop %v1676
        %v1678 = vmul.f32 %v1614, %v1647
        %v1679 = vmul.f32 %v1615, %v1649
        %v1680 = vmul.f32 %v1616, %v1651
        %v1681 = vmul.f32 %v1617, %v1653
        %v1682 = vmul.f32 %v1618, %v1655
        %v1683 = vmul.f32 %v1619, %v1657
        %v1684 = vmul.f32 %v1620, %v1659
        %v1685 = vmul.f32 %v1621, %v1661
        %v1686 = vmul.f32 %v1622, %v1663
        %v1687 = vmul.f32 %v1623, %v1665
        %v1688 = vmul.f32 %v1624, %v1667
        %v1689 = vmul.f32 %v1625, %v1669
        %v1690 = vmul.f32 %v1626, %v1671
        %v1691 = vmul.f32 %v1627, %v1673
        %v1692 = vmul.f32 %v1628, %v1675
        %v1693 = vmul.f32 %v1629, %v1677
        %v1694 = vadd.f32 %v1494, %v1678
        %v1695 = vadd.f32 %v1496, %v1679
        %v1696 = vadd.f32 %v1499, %v1680
        %v1697 = vadd.f32 %v1501, %v1681
        %v1698 = vadd.f32 %v1504, %v1682
        %v1699 = vadd.f32 %v1506, %v1683
        %v1700 = vadd.f32 %v1509, %v1684
        %v1701 = vadd.f32 %v1511, %v1685
        %v1702 = vadd.f32 %v1514, %v1686
        %v1703 = vadd.f32 %v1516, %v1687
        %v1704 = vadd.f32 %v1519, %v1688
        %v1705 = vadd.f32 %v1521, %v1689
        %v1706 = vadd.f32 %v1524, %v1690
        %v1707 = vadd.f32 %v1526, %v1691
        %v1708 = vadd.f32 %v1529, %v1692
        %v1709 = vadd.f32 %v1531, %v1693
        %v1710 = vpack.c.bf16 %v1695, %v1694
        %v1711 = vpack.c.bf16 %v1697, %v1696
        %v1712 = vpack.c.bf16 %v1699, %v1698
        %v1713 = vpack.c.bf16 %v1701, %v1700
        %v1714 = vpack.c.bf16 %v1703, %v1702
        %v1715 = vpack.c.bf16 %v1705, %v1704
        %v1716 = vpack.c.bf16 %v1707, %v1706
        %v1717 = vpack.c.bf16 %v1709, %v1708
        %v1718 = vld [vmem:[%s6] sm:$0xf]
        %v1719 = vld [vmem:[%s6 + $0x4] sm:$0xf]
        %v1720 = vld [vmem:[%s6 + $0x8] sm:$0xf]
        %v1721 = vld [vmem:[%s6 + $0xc] sm:$0xf]
        %v1722 = vld [vmem:[%s6 + $0x10] sm:$0xf]
        %v1723 = vld [vmem:[%s6 + $0x14] sm:$0xf]
        %v1724 = vld [vmem:[%s6 + $0x18] sm:$0xf]
        %v1725 = vld [vmem:[%s6 + $0x1c] sm:$0xf]
        %v1726 = vld [vmem:[%s6 + $0x20] sm:$0xf]
        %v1727 = vld [vmem:[%s6 + $0x24] sm:$0xf]
        %v1728 = vld [vmem:[%s6 + $0x28] sm:$0xf]
        %v1729 = vld [vmem:[%s6 + $0x2c] sm:$0xf]
        %v1730 = vld [vmem:[%s6 + $0x30] sm:$0xf]
        %v1731 = vld [vmem:[%s6 + $0x34] sm:$0xf]
        %v1732 = vld [vmem:[%s6 + $0x38] sm:$0xf]
        %v1733 = vld [vmem:[%s6 + $0x3c] sm:$0xf]
        %v1734 = vld [vmem:[%s7] sm:$0x1]
        %v1736 = vperm.slane %v1734, 0
        %v1754 = vunpack.c.l.b16 %v1718
        %v1755 = vunpack.c.l.b16 %v1719
        %v1756 = vunpack.c.l.b16 %v1720
        %v1757 = vunpack.c.l.b16 %v1721
        %v1758 = vunpack.c.l.b16 %v1722
        %v1759 = vunpack.c.l.b16 %v1723
        %v1760 = vunpack.c.l.b16 %v1724
        %v1761 = vunpack.c.l.b16 %v1725
        %v1762 = vunpack.c.l.b16 %v1726
        %v1763 = vunpack.c.l.b16 %v1727
        %v1764 = vunpack.c.l.b16 %v1728
        %v1765 = vunpack.c.l.b16 %v1729
        %v1766 = vunpack.c.l.b16 %v1730
        %v1767 = vunpack.c.l.b16 %v1731
        %v1768 = vunpack.c.l.b16 %v1732
        %v1769 = vunpack.c.l.b16 %v1733
        %v1770 = vpack.c.b16 %v1755, %v1754
        %v1771 = vpack.c.b16 %v1757, %v1756
        %v1772 = vpack.c.b16 %v1759, %v1758
        %v1773 = vpack.c.b16 %v1761, %v1760
        %v1774 = vpack.c.b16 %v1763, %v1762
        %v1775 = vpack.c.b16 %v1765, %v1764
        %v1776 = vpack.c.b16 %v1767, %v1766
        %v1777 = vpack.c.b16 %v1769, %v1768
        %1786 = vmatpush.bf16.msra.mxu0 %v1777
        %1787 = vmatpush.bf16.msra.mxu0 %v1776
        %1788 = vmatpush.bf16.msra.mxu0 %v1775
        %1789 = vmatpush.bf16.msra.mxu0 %v1774
        %1790 = vmatpush.bf16.msra.mxu0 %v1773
        %1791 = vmatpush.bf16.msra.mxu0 %v1772
        %1792 = vmatpush.bf16.msra.mxu0 %v1771
        %1793 = vmatpush.bf16.msra.mxu0 %v1770
        %1794 = vmatmul.bf16.gmra.mxu0 %v1710
        %v1795 = vpop.f32.mrf.mxu0
        %v1796 = vadd.f32 %v1736, %v1795
        %v1797 = vpop.f32.mrf.mxu0
        %v1798 = vadd.f32 %v1736, %v1797
        %1799 = vmatmul.bf16.gmra.mxu0 %v1711
        %v1800 = vpop.f32.mrf.mxu0
        %v1801 = vadd.f32 %v1736, %v1800
        %v1802 = vpop.f32.mrf.mxu0
        %v1803 = vadd.f32 %v1736, %v1802
        %1804 = vmatmul.bf16.gmra.mxu0 %v1712
        %v1805 = vpop.f32.mrf.mxu0
        %v1806 = vadd.f32 %v1736, %v1805
        %v1807 = vpop.f32.mrf.mxu0
        %v1808 = vadd.f32 %v1736, %v1807
        %1809 = vmatmul.bf16.gmra.mxu0 %v1713
        %v1810 = vpop.f32.mrf.mxu0
        %v1811 = vadd.f32 %v1736, %v1810
        %v1812 = vpop.f32.mrf.mxu0
        %v1813 = vadd.f32 %v1736, %v1812
        %1814 = vmatmul.bf16.gmra.mxu0 %v1714
        %v1815 = vpop.f32.mrf.mxu0
        %v1816 = vadd.f32 %v1736, %v1815
        %v1817 = vpop.f32.mrf.mxu0
        %v1818 = vadd.f32 %v1736, %v1817
        %1819 = vmatmul.bf16.gmra.mxu0 %v1715
        %v1820 = vpop.f32.mrf.mxu0
        %v1821 = vadd.f32 %v1736, %v1820
        %v1822 = vpop.f32.mrf.mxu0
        %v1823 = vadd.f32 %v1736, %v1822
        %1824 = vmatmul.bf16.gmra.mxu0 %v1716
        %v1825 = vpop.f32.mrf.mxu0
        %v1826 = vadd.f32 %v1736, %v1825
        %v1827 = vpop.f32.mrf.mxu0
        %v1828 = vadd.f32 %v1736, %v1827
        %1829 = vmatmul.bf16.gmra.mxu0 %v1717
        %v1830 = vpop.f32.mrf.mxu0
        %v1831 = vadd.f32 %v1736, %v1830
        %v1832 = vpop.f32.mrf.mxu0
        %v1833 = vadd.f32 %v1736, %v1832
        %1834 = vdwg.mxu0
        %v1835 = vmax.f32 %v1796, 0.0
        %v1836 = vmax.f32 %v1798, 0.0
        %v1837 = vmax.f32 %v1801, 0.0
        %v1838 = vmax.f32 %v1803, 0.0
        %v1839 = vmax.f32 %v1806, 0.0
        %v1840 = vmax.f32 %v1808, 0.0
        %v1841 = vmax.f32 %v1811, 0.0
        %v1842 = vmax.f32 %v1813, 0.0
        %v1843 = vmax.f32 %v1816, 0.0
        %v1844 = vmax.f32 %v1818, 0.0
        %v1845 = vmax.f32 %v1821, 0.0
        %v1846 = vmax.f32 %v1823, 0.0
        %v1847 = vmax.f32 %v1826, 0.0
        %v1848 = vmax.f32 %v1828, 0.0
        %v1849 = vmax.f32 %v1831, 0.0
        %v1850 = vmax.f32 %v1833, 0.0
        %v1851 = vpack.c.bf16 %v1836, %v1835
        %v1852 = vpack.c.bf16 %v1838, %v1837
        %v1853 = vpack.c.bf16 %v1840, %v1839
        %v1854 = vpack.c.bf16 %v1842, %v1841
        %v1855 = vpack.c.bf16 %v1844, %v1843
        %v1856 = vpack.c.bf16 %v1846, %v1845
        %v1857 = vpack.c.bf16 %v1848, %v1847
        %v1858 = vpack.c.bf16 %v1850, %v1849
        %v1859 = vld [vmem:[%s8] sm:$0xff]
        %v1860 = vld [vmem:[%s8 + $0x8] sm:$0xff]
        %v1861 = vld [vmem:[%s8 + $0x10] sm:$0xff]
        %v1862 = vld [vmem:[%s8 + $0x18] sm:$0xf]
        %v1863 = vld [vmem:[%s8 + $0x1c] sm:$0xff]
        %v1864 = vld [vmem:[%s8 + $0x24] sm:$0xff]
        %v1865 = vld [vmem:[%s8 + $0x2c] sm:$0xff]
        %v1866 = vld [vmem:[%s8 + $0x34] sm:$0xf]
        %v1867 = vld [vmem:[%s8 + $0x38] sm:$0xff]
        %v1868 = vld [vmem:[%s8 + $0x40] sm:$0xff]
        %v1869 = vld [vmem:[%s8 + $0x48] sm:$0xff]
        %v1870 = vld [vmem:[%s8 + $0x50] sm:$0xf]
        %v1871 = vld [vmem:[%s8 + $0x54] sm:$0xff]
        %v1872 = vld [vmem:[%s8 + $0x5c] sm:$0xff]
        %v1873 = vld [vmem:[%s8 + $0x64] sm:$0xff]
        %v1874 = vld [vmem:[%s8 + $0x6c] sm:$0xf]
        %v1875 = vld [vmem:[%s8 + $0x70] sm:$0xff]
        %v1876 = vld [vmem:[%s8 + $0x78] sm:$0xff]
        %v1877 = vld [vmem:[%s8 + $0x80] sm:$0xff]
        %v1878 = vld [vmem:[%s8 + $0x88] sm:$0xf]
        %v1879 = vld [vmem:[%s8 + $0x8c] sm:$0xff]
        %v1880 = vld [vmem:[%s8 + $0x94] sm:$0xff]
        %v1881 = vld [vmem:[%s8 + $0x9c] sm:$0xff]
        %v1882 = vld [vmem:[%s8 + $0xa4] sm:$0xf]
        %v1883 = vld [vmem:[%s8 + $0xa8] sm:$0xff]
        %v1884 = vld [vmem:[%s8 + $0xb0] sm:$0xff]
        %v1885 = vld [vmem:[%s8 + $0xb8] sm:$0xff]
        %v1886 = vld [vmem:[%s8 + $0xc0] sm:$0xf]
        %v1887 = vld [vmem:[%s8 + $0xc4] sm:$0xff]
        %v1888 = vld [vmem:[%s8 + $0xcc] sm:$0xff]
        %v1889 = vld [vmem:[%s8 + $0xd4] sm:$0xff]
        %v1890 = vld [vmem:[%s8 + $0xdc] sm:$0xf]
        %v1891 = vld [vmem:[%s8 + $0xe0] sm:$0xff]
        %v1892 = vld [vmem:[%s8 + $0xe8] sm:$0xff]
        %v1893 = vld [vmem:[%s8 + $0xf0] sm:$0xff]
        %v1894 = vld [vmem:[%s8 + $0xf8] sm:$0xf]
        %v1895 = vld [vmem:[%s8 + $0xfc] sm:$0xff]
        %v1896 = vld [vmem:[%s8 + $0x104] sm:$0xff]
        %v1897 = vld [vmem:[%s8 + $0x10c] sm:$0xff]
        %v1898 = vld [vmem:[%s8 + $0x114] sm:$0xf]
        %v1899 = vld [vmem:[%s8 + $0x118] sm:$0xff]
        %v1900 = vld [vmem:[%s8 + $0x120] sm:$0xff]
        %v1901 = vld [vmem:[%s8 + $0x128] sm:$0xff]
        %v1902 = vld [vmem:[%s8 + $0x130] sm:$0xf]
        %v1903 = vld [vmem:[%s8 + $0x134] sm:$0xff]
        %v1904 = vld [vmem:[%s8 + $0x13c] sm:$0xff]
        %v1905 = vld [vmem:[%s8 + $0x144] sm:$0xff]
        %v1906 = vld [vmem:[%s8 + $0x14c] sm:$0xf]
        %v1907 = vld [vmem:[%s8 + $0x150] sm:$0xff]
        %v1908 = vld [vmem:[%s8 + $0x158] sm:$0xff]
        %v1909 = vld [vmem:[%s8 + $0x160] sm:$0xff]
        %v1910 = vld [vmem:[%s8 + $0x168] sm:$0xf]
        %v1911 = vld [vmem:[%s8 + $0x16c] sm:$0xff]
        %v1912 = vld [vmem:[%s8 + $0x174] sm:$0xff]
        %v1913 = vld [vmem:[%s8 + $0x17c] sm:$0xff]
        %v1914 = vld [vmem:[%s8 + $0x184] sm:$0xf]
        %v1915 = vld [vmem:[%s8 + $0x188] sm:$0xff]
        %v1916 = vld [vmem:[%s8 + $0x190] sm:$0xff]
        %v1917 = vld [vmem:[%s8 + $0x198] sm:$0xff]
        %v1918 = vld [vmem:[%s8 + $0x1a0] sm:$0xf]
        %v1919 = vld [vmem:[%s8 + $0x1a4] sm:$0xff]
        %v1920 = vld [vmem:[%s8 + $0x1ac] sm:$0xff]
        %v1921 = vld [vmem:[%s8 + $0x1b4] sm:$0xff]
        %v1922 = vld [vmem:[%s8 + $0x1bc] sm:$0xf]
        %v1923 = vld [vmem:[%s9] sm:$0xff]
        %v1925 = vperm.slane %v1923, 0
        %v1926 = vperm.slane %v1923, 1
        %v1927 = vperm.slane %v1923, 2
        %v1928 = vperm.slane %v1923, 3
        %v1929 = vperm.slane %v1923, 4
        %v1930 = vperm.slane %v1923, 5
        %v1931 = vperm.slane %v1923, 6
        %v2003 = vunpack.c.l.b16 %v1859
        %v2004 = vunpack.c.h.b16 %v1859
        %v2005 = vunpack.c.l.b16 %v1860
        %v2006 = vunpack.c.h.b16 %v1860
        %v2007 = vunpack.c.l.b16 %v1861
        %v2008 = vunpack.c.h.b16 %v1861
        %v2009 = vunpack.c.l.b16 %v1862
        %v2010 = vunpack.c.l.b16 %v1863
        %v2011 = vunpack.c.h.b16 %v1863
        %v2012 = vunpack.c.l.b16 %v1864
        %v2013 = vunpack.c.h.b16 %v1864
        %v2014 = vunpack.c.l.b16 %v1865
        %v2015 = vunpack.c.h.b16 %v1865
        %v2016 = vunpack.c.l.b16 %v1866
        %v2017 = vunpack.c.l.b16 %v1867
        %v2018 = vunpack.c.h.b16 %v1867
        %v2019 = vunpack.c.l.b16 %v1868
        %v2020 = vunpack.c.h.b16 %v1868
        %v2021 = vunpack.c.l.b16 %v1869
        %v2022 = vunpack.c.h.b16 %v1869
        %v2023 = vunpack.c.l.b16 %v1870
        %v2024 = vunpack.c.l.b16 %v1871
        %v2025 = vunpack.c.h.b16 %v1871
        %v2026 = vunpack.c.l.b16 %v1872
        %v2027 = vunpack.c.h.b16 %v1872
        %v2028 = vunpack.c.l.b16 %v1873
        %v2029 = vunpack.c.h.b16 %v1873
        %v2030 = vunpack.c.l.b16 %v1874
        %v2031 = vunpack.c.l.b16 %v1875
        %v2032 = vunpack.c.h.b16 %v1875
        %v2033 = vunpack.c.l.b16 %v1876
        %v2034 = vunpack.c.h.b16 %v1876
        %v2035 = vunpack.c.l.b16 %v1877
        %v2036 = vunpack.c.h.b16 %v1877
        %v2037 = vunpack.c.l.b16 %v1878
        %v2038 = vunpack.c.l.b16 %v1879
        %v2039 = vunpack.c.h.b16 %v1879
        %v2040 = vunpack.c.l.b16 %v1880
        %v2041 = vunpack.c.h.b16 %v1880
        %v2042 = vunpack.c.l.b16 %v1881
        %v2043 = vunpack.c.h.b16 %v1881
        %v2044 = vunpack.c.l.b16 %v1882
        %v2045 = vunpack.c.l.b16 %v1883
        %v2046 = vunpack.c.h.b16 %v1883
        %v2047 = vunpack.c.l.b16 %v1884
        %v2048 = vunpack.c.h.b16 %v1884
        %v2049 = vunpack.c.l.b16 %v1885
        %v2050 = vunpack.c.h.b16 %v1885
        %v2051 = vunpack.c.l.b16 %v1886
        %v2052 = vunpack.c.l.b16 %v1887
        %v2053 = vunpack.c.h.b16 %v1887
        %v2054 = vunpack.c.l.b16 %v1888
        %v2055 = vunpack.c.h.b16 %v1888
        %v2056 = vunpack.c.l.b16 %v1889
        %v2057 = vunpack.c.h.b16 %v1889
        %v2058 = vunpack.c.l.b16 %v1890
        %v2059 = vunpack.c.l.b16 %v1891
        %v2060 = vunpack.c.h.b16 %v1891
        %v2061 = vunpack.c.l.b16 %v1892
        %v2062 = vunpack.c.h.b16 %v1892
        %v2063 = vunpack.c.l.b16 %v1893
        %v2064 = vunpack.c.h.b16 %v1893
        %v2065 = vunpack.c.l.b16 %v1894
        %v2066 = vunpack.c.l.b16 %v1895
        %v2067 = vunpack.c.h.b16 %v1895
        %v2068 = vunpack.c.l.b16 %v1896
        %v2069 = vunpack.c.h.b16 %v1896
        %v2070 = vunpack.c.l.b16 %v1897
        %v2071 = vunpack.c.h.b16 %v1897
        %v2072 = vunpack.c.l.b16 %v1898
        %v2073 = vunpack.c.l.b16 %v1899
        %v2074 = vunpack.c.h.b16 %v1899
        %v2075 = vunpack.c.l.b16 %v1900
        %v2076 = vunpack.c.h.b16 %v1900
        %v2077 = vunpack.c.l.b16 %v1901
        %v2078 = vunpack.c.h.b16 %v1901
        %v2079 = vunpack.c.l.b16 %v1902
        %v2080 = vunpack.c.l.b16 %v1903
        %v2081 = vunpack.c.h.b16 %v1903
        %v2082 = vunpack.c.l.b16 %v1904
        %v2083 = vunpack.c.h.b16 %v1904
        %v2084 = vunpack.c.l.b16 %v1905
        %v2085 = vunpack.c.h.b16 %v1905
        %v2086 = vunpack.c.l.b16 %v1906
        %v2087 = vunpack.c.l.b16 %v1907
        %v2088 = vunpack.c.h.b16 %v1907
        %v2089 = vunpack.c.l.b16 %v1908
        %v2090 = vunpack.c.h.b16 %v1908
        %v2091 = vunpack.c.l.b16 %v1909
        %v2092 = vunpack.c.h.b16 %v1909
        %v2093 = vunpack.c.l.b16 %v1910
        %v2094 = vunpack.c.l.b16 %v1911
        %v2095 = vunpack.c.h.b16 %v1911
        %v2096 = vunpack.c.l.b16 %v1912
        %v2097 = vunpack.c.h.b16 %v1912
        %v2098 = vunpack.c.l.b16 %v1913
        %v2099 = vunpack.c.h.b16 %v1913
        %v2100 = vunpack.c.l.b16 %v1914
        %v2101 = vunpack.c.l.b16 %v1915
        %v2102 = vunpack.c.h.b16 %v1915
        %v2103 = vunpack.c.l.b16 %v1916
        %v2104 = vunpack.c.h.b16 %v1916
        %v2105 = vunpack.c.l.b16 %v1917
        %v2106 = vunpack.c.h.b16 %v1917
        %v2107 = vunpack.c.l.b16 %v1918
        %v2108 = vunpack.c.l.b16 %v1919
        %v2109 = vunpack.c.h.b16 %v1919
        %v2110 = vunpack.c.l.b16 %v1920
        %v2111 = vunpack.c.h.b16 %v1920
        %v2112 = vunpack.c.l.b16 %v1921
        %v2113 = vunpack.c.h.b16 %v1921
        %v2114 = vunpack.c.l.b16 %v1922
        %v2115 = vpack.c.b16 %v2010, %v2003
        %v2116 = vpack.c.b16 %v2011, %v2004
        %v2117 = vpack.c.b16 %v2012, %v2005
        %v2118 = vpack.c.b16 %v2013, %v2006
        %v2119 = vpack.c.b16 %v2014, %v2007
        %v2120 = vpack.c.b16 %v2015, %v2008
        %v2121 = vpack.c.b16 %v2016, %v2009
        %v2122 = vpack.c.b16 %v2024, %v2017
        %v2123 = vpack.c.b16 %v2025, %v2018
        %v2124 = vpack.c.b16 %v2026, %v2019
        %v2125 = vpack.c.b16 %v2027, %v2020
        %v2126 = vpack.c.b16 %v2028, %v2021
        %v2127 = vpack.c.b16 %v2029, %v2022
        %v2128 = vpack.c.b16 %v2030, %v2023
        %v2129 = vpack.c.b16 %v2038, %v2031
        %v2130 = vpack.c.b16 %v2039, %v2032
        %v2131 = vpack.c.b16 %v2040, %v2033
        %v2132 = vpack.c.b16 %v2041, %v2034
        %v2133 = vpack.c.b16 %v2042, %v2035
        %v2134 = vpack.c.b16 %v2043, %v2036
        %v2135 = vpack.c.b16 %v2044, %v2037
        %v2136 = vpack.c.b16 %v2052, %v2045
        %v2137 = vpack.c.b16 %v2053, %v2046
        %v2138 = vpack.c.b16 %v2054, %v2047
        %v2139 = vpack.c.b16 %v2055, %v2048
        %v2140 = vpack.c.b16 %v2056, %v2049
        %v2141 = vpack.c.b16 %v2057, %v2050
        %v2142 = vpack.c.b16 %v2058, %v2051
        %v2143 = vpack.c.b16 %v2066, %v2059
        %v2144 = vpack.c.b16 %v2067, %v2060
        %v2145 = vpack.c.b16 %v2068, %v2061
        %v2146 = vpack.c.b16 %v2069, %v2062
        %v2147 = vpack.c.b16 %v2070, %v2063
        %v2148 = vpack.c.b16 %v2071, %v2064
        %v2149 = vpack.c.b16 %v2072, %v2065
        %v2150 = vpack.c.b16 %v2080, %v2073
        %v2151 = vpack.c.b16 %v2081, %v2074
        %v2152 = vpack.c.b16 %v2082, %v2075
        %v2153 = vpack.c.b16 %v2083, %v2076
        %v2154 = vpack.c.b16 %v2084, %v2077
        %v2155 = vpack.c.b16 %v2085, %v2078
        %v2156 = vpack.c.b16 %v2086, %v2079
        %v2157 = vpack.c.b16 %v2094, %v2087
        %v2158 = vpack.c.b16 %v2095, %v2088
        %v2159 = vpack.c.b16 %v2096, %v2089
        %v2160 = vpack.c.b16 %v2097, %v2090
        %v2161 = vpack.c.b16 %v2098, %v2091
        %v2162 = vpack.c.b16 %v2099, %v2092
        %v2163 = vpack.c.b16 %v2100, %v2093
        %v2164 = vpack.c.b16 %v2108, %v2101
        %v2165 = vpack.c.b16 %v2109, %v2102
        %v2166 = vpack.c.b16 %v2110, %v2103
        %v2167 = vpack.c.b16 %v2111, %v2104
        %v2168 = vpack.c.b16 %v2112, %v2105
        %v2169 = vpack.c.b16 %v2113, %v2106
        %v2170 = vpack.c.b16 %v2114, %v2107
        %2227 = vmatpush.bf16.msra.mxu0 %v2164
        %2228 = vmatpush.bf16.msra.mxu0 %v2157
        %2229 = vmatpush.bf16.msra.mxu0 %v2150
        %2230 = vmatpush.bf16.msra.mxu0 %v2143
        %2231 = vmatpush.bf16.msra.mxu0 %v2136
        %2232 = vmatpush.bf16.msra.mxu0 %v2129
        %2233 = vmatpush.bf16.msra.mxu0 %v2122
        %2234 = vmatpush.bf16.msra.mxu0 %v2115
        %2235 = vmatmul.bf16.gmra.mxu0 %v1851
        %v2236 = vpop.f32.mrf.mxu0
        %v2237 = vadd.f32 %v1925, %v2236
        %v2238 = vpop.f32.mrf.mxu0
        %v2239 = vadd.f32 %v1925, %v2238
        %2240 = vmatmul.bf16.gmra.mxu0 %v1852
        %v2241 = vpop.f32.mrf.mxu0
        %v2242 = vadd.f32 %v1925, %v2241
        %v2243 = vpop.f32.mrf.mxu0
        %v2244 = vadd.f32 %v1925, %v2243
        %2245 = vmatmul.bf16.gmra.mxu0 %v1853
        %v2246 = vpop.f32.mrf.mxu0
        %v2247 = vadd.f32 %v1925, %v2246
        %v2248 = vpop.f32.mrf.mxu0
        %v2249 = vadd.f32 %v1925, %v2248
        %2250 = vmatmul.bf16.gmra.mxu0 %v1854
        %v2251 = vpop.f32.mrf.mxu0
        %v2252 = vadd.f32 %v1925, %v2251
        %v2253 = vpop.f32.mrf.mxu0
        %v2254 = vadd.f32 %v1925, %v2253
        %2255 = vmatmul.bf16.gmra.mxu0 %v1855
        %v2256 = vpop.f32.mrf.mxu0
        %v2257 = vadd.f32 %v1925, %v2256
        %v2258 = vpop.f32.mrf.mxu0
        %v2259 = vadd.f32 %v1925, %v2258
        %2260 = vmatmul.bf16.gmra.mxu0 %v1856
        %v2261 = vpop.f32.mrf.mxu0
        %v2262 = vadd.f32 %v1925, %v2261
        %v2263 = vpop.f32.mrf.mxu0
        %v2264 = vadd.f32 %v1925, %v2263
        %2265 = vmatmul.bf16.gmra.mxu0 %v1857
        %v2266 = vpop.f32.mrf.mxu0
        %v2267 = vadd.f32 %v1925, %v2266
        %v2268 = vpop.f32.mrf.mxu0
        %v2269 = vadd.f32 %v1925, %v2268
        %2270 = vmatmul.bf16.gmra.mxu0 %v1858
        %v2271 = vpop.f32.mrf.mxu0
        %v2272 = vadd.f32 %v1925, %v2271
        %v2273 = vpop.f32.mrf.mxu0
        %v2274 = vadd.f32 %v1925, %v2273
        %2275 = vdwg.mxu0
        %2276 = vmatpush.bf16.msra.mxu0 %v2165
        %2277 = vmatpush.bf16.msra.mxu0 %v2158
        %2278 = vmatpush.bf16.msra.mxu0 %v2151
        %2279 = vmatpush.bf16.msra.mxu0 %v2144
        %2280 = vmatpush.bf16.msra.mxu0 %v2137
        %2281 = vmatpush.bf16.msra.mxu0 %v2130
        %2282 = vmatpush.bf16.msra.mxu0 %v2123
        %2283 = vmatpush.bf16.msra.mxu0 %v2116
        %2284 = vmatmul.bf16.gmra.mxu0 %v1851
        %v2285 = vpop.f32.mrf.mxu0
        %v2286 = vadd.f32 %v1926, %v2285
        %v2287 = vpop.f32.mrf.mxu0
        %v2288 = vadd.f32 %v1926, %v2287
        %2289 = vmatmul.bf16.gmra.mxu0 %v1852
        %v2290 = vpop.f32.mrf.mxu0
        %v2291 = vadd.f32 %v1926, %v2290
        %v2292 = vpop.f32.mrf.mxu0
        %v2293 = vadd.f32 %v1926, %v2292
        %2294 = vmatmul.bf16.gmra.mxu0 %v1853
        %v2295 = vpop.f32.mrf.mxu0
        %v2296 = vadd.f32 %v1926, %v2295
        %v2297 = vpop.f32.mrf.mxu0
        %v2298 = vadd.f32 %v1926, %v2297
        %2299 = vmatmul.bf16.gmra.mxu0 %v1854
        %v2300 = vpop.f32.mrf.mxu0
        %v2301 = vadd.f32 %v1926, %v2300
        %v2302 = vpop.f32.mrf.mxu0
        %v2303 = vadd.f32 %v1926, %v2302
        %2304 = vmatmul.bf16.gmra.mxu0 %v1855
        %v2305 = vpop.f32.mrf.mxu0
        %v2306 = vadd.f32 %v1926, %v2305
        %v2307 = vpop.f32.mrf.mxu0
        %v2308 = vadd.f32 %v1926, %v2307
        %2309 = vmatmul.bf16.gmra.mxu0 %v1856
        %v2310 = vpop.f32.mrf.mxu0
        %v2311 = vadd.f32 %v1926, %v2310
        %v2312 = vpop.f32.mrf.mxu0
        %v2313 = vadd.f32 %v1926, %v2312
        %2314 = vmatmul.bf16.gmra.mxu0 %v1857
        %v2315 = vpop.f32.mrf.mxu0
        %v2316 = vadd.f32 %v1926, %v2315
        %v2317 = vpop.f32.mrf.mxu0
        %v2318 = vadd.f32 %v1926, %v2317
        %2319 = vmatmul.bf16.gmra.mxu0 %v1858
        %v2320 = vpop.f32.mrf.mxu0
        %v2321 = vadd.f32 %v1926, %v2320
        %v2322 = vpop.f32.mrf.mxu0
        %v2323 = vadd.f32 %v1926, %v2322
        %2324 = vdwg.mxu0
        %2325 = vmatpush.bf16.msra.mxu0 %v2166
        %2326 = vmatpush.bf16.msra.mxu0 %v2159
        %2327 = vmatpush.bf16.msra.mxu0 %v2152
        %2328 = vmatpush.bf16.msra.mxu0 %v2145
        %2329 = vmatpush.bf16.msra.mxu0 %v2138
        %2330 = vmatpush.bf16.msra.mxu0 %v2131
        %2331 = vmatpush.bf16.msra.mxu0 %v2124
        %2332 = vmatpush.bf16.msra.mxu0 %v2117
        %2333 = vmatmul.bf16.gmra.mxu0 %v1851
        %v2334 = vpop.f32.mrf.mxu0
        %v2335 = vadd.f32 %v1927, %v2334
        %v2336 = vpop.f32.mrf.mxu0
        %v2337 = vadd.f32 %v1927, %v2336
        %2338 = vmatmul.bf16.gmra.mxu0 %v1852
        %v2339 = vpop.f32.mrf.mxu0
        %v2340 = vadd.f32 %v1927, %v2339
        %v2341 = vpop.f32.mrf.mxu0
        %v2342 = vadd.f32 %v1927, %v2341
        %2343 = vmatmul.bf16.gmra.mxu0 %v1853
        %v2344 = vpop.f32.mrf.mxu0
        %v2345 = vadd.f32 %v1927, %v2344
        %v2346 = vpop.f32.mrf.mxu0
        %v2347 = vadd.f32 %v1927, %v2346
        %2348 = vmatmul.bf16.gmra.mxu0 %v1854
        %v2349 = vpop.f32.mrf.mxu0
        %v2350 = vadd.f32 %v1927, %v2349
        %v2351 = vpop.f32.mrf.mxu0
        %v2352 = vadd.f32 %v1927, %v2351
        %2353 = vmatmul.bf16.gmra.mxu0 %v1855
        %v2354 = vpop.f32.mrf.mxu0
        %v2355 = vadd.f32 %v1927, %v2354
        %v2356 = vpop.f32.mrf.mxu0
        %v2357 = vadd.f32 %v1927, %v2356
        %2358 = vmatmul.bf16.gmra.mxu0 %v1856
        %v2359 = vpop.f32.mrf.mxu0
        %v2360 = vadd.f32 %v1927, %v2359
        %v2361 = vpop.f32.mrf.mxu0
        %v2362 = vadd.f32 %v1927, %v2361
        %2363 = vmatmul.bf16.gmra.mxu0 %v1857
        %v2364 = vpop.f32.mrf.mxu0
        %v2365 = vadd.f32 %v1927, %v2364
        %v2366 = vpop.f32.mrf.mxu0
        %v2367 = vadd.f32 %v1927, %v2366
        %2368 = vmatmul.bf16.gmra.mxu0 %v1858
        %v2369 = vpop.f32.mrf.mxu0
        %v2370 = vadd.f32 %v1927, %v2369
        %v2371 = vpop.f32.mrf.mxu0
        %v2372 = vadd.f32 %v1927, %v2371
        %2373 = vdwg.mxu0
        %2374 = vmatpush.bf16.msra.mxu0 %v2167
        %2375 = vmatpush.bf16.msra.mxu0 %v2160
        %2376 = vmatpush.bf16.msra.mxu0 %v2153
        %2377 = vmatpush.bf16.msra.mxu0 %v2146
        %2378 = vmatpush.bf16.msra.mxu0 %v2139
        %2379 = vmatpush.bf16.msra.mxu0 %v2132
        %2380 = vmatpush.bf16.msra.mxu0 %v2125
        %2381 = vmatpush.bf16.msra.mxu0 %v2118
        %2382 = vmatmul.bf16.gmra.mxu0 %v1851
        %v2383 = vpop.f32.mrf.mxu0
        %v2384 = vadd.f32 %v1928, %v2383
        %v2385 = vpop.f32.mrf.mxu0
        %v2386 = vadd.f32 %v1928, %v2385
        %2387 = vmatmul.bf16.gmra.mxu0 %v1852
        %v2388 = vpop.f32.mrf.mxu0
        %v2389 = vadd.f32 %v1928, %v2388
        %v2390 = vpop.f32.mrf.mxu0
        %v2391 = vadd.f32 %v1928, %v2390
        %2392 = vmatmul.bf16.gmra.mxu0 %v1853
        %v2393 = vpop.f32.mrf.mxu0
        %v2394 = vadd.f32 %v1928, %v2393
        %v2395 = vpop.f32.mrf.mxu0
        %v2396 = vadd.f32 %v1928, %v2395
        %2397 = vmatmul.bf16.gmra.mxu0 %v1854
        %v2398 = vpop.f32.mrf.mxu0
        %v2399 = vadd.f32 %v1928, %v2398
        %v2400 = vpop.f32.mrf.mxu0
        %v2401 = vadd.f32 %v1928, %v2400
        %2402 = vmatmul.bf16.gmra.mxu0 %v1855
        %v2403 = vpop.f32.mrf.mxu0
        %v2404 = vadd.f32 %v1928, %v2403
        %v2405 = vpop.f32.mrf.mxu0
        %v2406 = vadd.f32 %v1928, %v2405
        %2407 = vmatmul.bf16.gmra.mxu0 %v1856
        %v2408 = vpop.f32.mrf.mxu0
        %v2409 = vadd.f32 %v1928, %v2408
        %v2410 = vpop.f32.mrf.mxu0
        %v2411 = vadd.f32 %v1928, %v2410
        %2412 = vmatmul.bf16.gmra.mxu0 %v1857
        %v2413 = vpop.f32.mrf.mxu0
        %v2414 = vadd.f32 %v1928, %v2413
        %v2415 = vpop.f32.mrf.mxu0
        %v2416 = vadd.f32 %v1928, %v2415
        %2417 = vmatmul.bf16.gmra.mxu0 %v1858
        %v2418 = vpop.f32.mrf.mxu0
        %v2419 = vadd.f32 %v1928, %v2418
        %v2420 = vpop.f32.mrf.mxu0
        %v2421 = vadd.f32 %v1928, %v2420
        %2422 = vdwg.mxu0
        %2423 = vmatpush.bf16.msra.mxu0 %v2168
        %2424 = vmatpush.bf16.msra.mxu0 %v2161
        %2425 = vmatpush.bf16.msra.mxu0 %v2154
        %2426 = vmatpush.bf16.msra.mxu0 %v2147
        %2427 = vmatpush.bf16.msra.mxu0 %v2140
        %2428 = vmatpush.bf16.msra.mxu0 %v2133
        %2429 = vmatpush.bf16.msra.mxu0 %v2126
        %2430 = vmatpush.bf16.msra.mxu0 %v2119
        %2431 = vmatmul.bf16.gmra.mxu0 %v1851
        %v2432 = vpop.f32.mrf.mxu0
        %v2433 = vadd.f32 %v1929, %v2432
        %v2434 = vpop.f32.mrf.mxu0
        %v2435 = vadd.f32 %v1929, %v2434
        %2436 = vmatmul.bf16.gmra.mxu0 %v1852
        %v2437 = vpop.f32.mrf.mxu0
        %v2438 = vadd.f32 %v1929, %v2437
        %v2439 = vpop.f32.mrf.mxu0
        %v2440 = vadd.f32 %v1929, %v2439
        %2441 = vmatmul.bf16.gmra.mxu0 %v1853
        %v2442 = vpop.f32.mrf.mxu0
        %v2443 = vadd.f32 %v1929, %v2442
        %v2444 = vpop.f32.mrf.mxu0
        %v2445 = vadd.f32 %v1929, %v2444
        %2446 = vmatmul.bf16.gmra.mxu0 %v1854
        %v2447 = vpop.f32.mrf.mxu0
        %v2448 = vadd.f32 %v1929, %v2447
        %v2449 = vpop.f32.mrf.mxu0
        %v2450 = vadd.f32 %v1929, %v2449
        %2451 = vmatmul.bf16.gmra.mxu0 %v1855
        %v2452 = vpop.f32.mrf.mxu0
        %v2453 = vadd.f32 %v1929, %v2452
        %v2454 = vpop.f32.mrf.mxu0
        %v2455 = vadd.f32 %v1929, %v2454
        %2456 = vmatmul.bf16.gmra.mxu0 %v1856
        %v2457 = vpop.f32.mrf.mxu0
        %v2458 = vadd.f32 %v1929, %v2457
        %v2459 = vpop.f32.mrf.mxu0
        %v2460 = vadd.f32 %v1929, %v2459
        %2461 = vmatmul.bf16.gmra.mxu0 %v1857
        %v2462 = vpop.f32.mrf.mxu0
        %v2463 = vadd.f32 %v1929, %v2462
        %v2464 = vpop.f32.mrf.mxu0
        %v2465 = vadd.f32 %v1929, %v2464
        %2466 = vmatmul.bf16.gmra.mxu0 %v1858
        %v2467 = vpop.f32.mrf.mxu0
        %v2468 = vadd.f32 %v1929, %v2467
        %v2469 = vpop.f32.mrf.mxu0
        %v2470 = vadd.f32 %v1929, %v2469
        %2471 = vdwg.mxu0
        %2472 = vmatpush.bf16.msra.mxu0 %v2169
        %2473 = vmatpush.bf16.msra.mxu0 %v2162
        %2474 = vmatpush.bf16.msra.mxu0 %v2155
        %2475 = vmatpush.bf16.msra.mxu0 %v2148
        %2476 = vmatpush.bf16.msra.mxu0 %v2141
        %2477 = vmatpush.bf16.msra.mxu0 %v2134
        %2478 = vmatpush.bf16.msra.mxu0 %v2127
        %2479 = vmatpush.bf16.msra.mxu0 %v2120
        %2480 = vmatmul.bf16.gmra.mxu0 %v1851
        %v2481 = vpop.f32.mrf.mxu0
        %v2482 = vadd.f32 %v1930, %v2481
        %v2483 = vpop.f32.mrf.mxu0
        %v2484 = vadd.f32 %v1930, %v2483
        %2485 = vmatmul.bf16.gmra.mxu0 %v1852
        %v2486 = vpop.f32.mrf.mxu0
        %v2487 = vadd.f32 %v1930, %v2486
        %v2488 = vpop.f32.mrf.mxu0
        %v2489 = vadd.f32 %v1930, %v2488
        %2490 = vmatmul.bf16.gmra.mxu0 %v1853
        %v2491 = vpop.f32.mrf.mxu0
        %v2492 = vadd.f32 %v1930, %v2491
        %v2493 = vpop.f32.mrf.mxu0
        %v2494 = vadd.f32 %v1930, %v2493
        %2495 = vmatmul.bf16.gmra.mxu0 %v1854
        %v2496 = vpop.f32.mrf.mxu0
        %v2497 = vadd.f32 %v1930, %v2496
        %v2498 = vpop.f32.mrf.mxu0
        %v2499 = vadd.f32 %v1930, %v2498
        %2500 = vmatmul.bf16.gmra.mxu0 %v1855
        %v2501 = vpop.f32.mrf.mxu0
        %v2502 = vadd.f32 %v1930, %v2501
        %v2503 = vpop.f32.mrf.mxu0
        %v2504 = vadd.f32 %v1930, %v2503
        %2505 = vmatmul.bf16.gmra.mxu0 %v1856
        %v2506 = vpop.f32.mrf.mxu0
        %v2507 = vadd.f32 %v1930, %v2506
        %v2508 = vpop.f32.mrf.mxu0
        %v2509 = vadd.f32 %v1930, %v2508
        %2510 = vmatmul.bf16.gmra.mxu0 %v1857
        %v2511 = vpop.f32.mrf.mxu0
        %v2512 = vadd.f32 %v1930, %v2511
        %v2513 = vpop.f32.mrf.mxu0
        %v2514 = vadd.f32 %v1930, %v2513
        %2515 = vmatmul.bf16.gmra.mxu0 %v1858
        %v2516 = vpop.f32.mrf.mxu0
        %v2517 = vadd.f32 %v1930, %v2516
        %v2518 = vpop.f32.mrf.mxu0
        %v2519 = vadd.f32 %v1930, %v2518
        %2520 = vdwg.mxu0
        %2521 = vmatpush.bf16.msra.mxu0 %v2170
        %2522 = vmatpush.bf16.msra.mxu0 %v2163
        %2523 = vmatpush.bf16.msra.mxu0 %v2156
        %2524 = vmatpush.bf16.msra.mxu0 %v2149
        %2525 = vmatpush.bf16.msra.mxu0 %v2142
        %2526 = vmatpush.bf16.msra.mxu0 %v2135
        %2527 = vmatpush.bf16.msra.mxu0 %v2128
        %2528 = vmatpush.bf16.msra.mxu0 %v2121
        %2529 = vmatmul.bf16.gmra.mxu0 %v1851
        %v2530 = vpop.f32.mrf.mxu0
        %v2531 = vadd.f32 %v1931, %v2530
        %v2532 = vpop.f32.mrf.mxu0
        %v2533 = vadd.f32 %v1931, %v2532
        %2534 = vmatmul.bf16.gmra.mxu0 %v1852
        %v2535 = vpop.f32.mrf.mxu0
        %v2536 = vadd.f32 %v1931, %v2535
        %v2537 = vpop.f32.mrf.mxu0
        %v2538 = vadd.f32 %v1931, %v2537
        %2539 = vmatmul.bf16.gmra.mxu0 %v1853
        %v2540 = vpop.f32.mrf.mxu0
        %v2541 = vadd.f32 %v1931, %v2540
        %v2542 = vpop.f32.mrf.mxu0
        %v2543 = vadd.f32 %v1931, %v2542
        %2544 = vmatmul.bf16.gmra.mxu0 %v1854
        %v2545 = vpop.f32.mrf.mxu0
        %v2546 = vadd.f32 %v1931, %v2545
        %v2547 = vpop.f32.mrf.mxu0
        %v2548 = vadd.f32 %v1931, %v2547
        %2549 = vmatmul.bf16.gmra.mxu0 %v1855
        %v2550 = vpop.f32.mrf.mxu0
        %v2551 = vadd.f32 %v1931, %v2550
        %v2552 = vpop.f32.mrf.mxu0
        %v2553 = vadd.f32 %v1931, %v2552
        %2554 = vmatmul.bf16.gmra.mxu0 %v1856
        %v2555 = vpop.f32.mrf.mxu0
        %v2556 = vadd.f32 %v1931, %v2555
        %v2557 = vpop.f32.mrf.mxu0
        %v2558 = vadd.f32 %v1931, %v2557
        %2559 = vmatmul.bf16.gmra.mxu0 %v1857
        %v2560 = vpop.f32.mrf.mxu0
        %v2561 = vadd.f32 %v1931, %v2560
        %v2562 = vpop.f32.mrf.mxu0
        %v2563 = vadd.f32 %v1931, %v2562
        %2564 = vmatmul.bf16.gmra.mxu0 %v1858
        %v2565 = vpop.f32.mrf.mxu0
        %v2566 = vadd.f32 %v1931, %v2565
        %v2567 = vpop.f32.mrf.mxu0
        %v2568 = vadd.f32 %v1931, %v2567
        %2569 = vdwg.mxu0
        %v2570 = vsub.f32 0.0, %v2237
        %v2571 = vsub.f32 0.0, %v2286
        %v2572 = vsub.f32 0.0, %v2335
        %v2573 = vsub.f32 0.0, %v2384
        %v2574 = vsub.f32 0.0, %v2433
        %v2575 = vsub.f32 0.0, %v2482
        %v2576 = vsub.f32 0.0, %v2531
        %v2577 = vsub.f32 0.0, %v2239
        %v2578 = vsub.f32 0.0, %v2288
        %v2579 = vsub.f32 0.0, %v2337
        %v2580 = vsub.f32 0.0, %v2386
        %v2581 = vsub.f32 0.0, %v2435
        %v2582 = vsub.f32 0.0, %v2484
        %v2583 = vsub.f32 0.0, %v2533
        %v2584 = vsub.f32 0.0, %v2242
        %v2585 = vsub.f32 0.0, %v2291
        %v2586 = vsub.f32 0.0, %v2340
        %v2587 = vsub.f32 0.0, %v2389
        %v2588 = vsub.f32 0.0, %v2438
        %v2589 = vsub.f32 0.0, %v2487
        %v2590 = vsub.f32 0.0, %v2536
        %v2591 = vsub.f32 0.0, %v2244
        %v2592 = vsub.f32 0.0, %v2293
        %v2593 = vsub.f32 0.0, %v2342
        %v2594 = vsub.f32 0.0, %v2391
        %v2595 = vsub.f32 0.0, %v2440
        %v2596 = vsub.f32 0.0, %v2489
        %v2597 = vsub.f32 0.0, %v2538
        %v2598 = vsub.f32 0.0, %v2247
        %v2599 = vsub.f32 0.0, %v2296
        %v2600 = vsub.f32 0.0, %v2345
        %v2601 = vsub.f32 0.0, %v2394
        %v2602 = vsub.f32 0.0, %v2443
        %v2603 = vsub.f32 0.0, %v2492
        %v2604 = vsub.f32 0.0, %v2541
        %v2605 = vsub.f32 0.0, %v2249
        %v2606 = vsub.f32 0.0, %v2298
        %v2607 = vsub.f32 0.0, %v2347
        %v2608 = vsub.f32 0.0, %v2396
        %v2609 = vsub.f32 0.0, %v2445
        %v2610 = vsub.f32 0.0, %v2494
        %v2611 = vsub.f32 0.0, %v2543
        %v2612 = vsub.f32 0.0, %v2252
        %v2613 = vsub.f32 0.0, %v2301
        %v2614 = vsub.f32 0.0, %v2350
        %v2615 = vsub.f32 0.0, %v2399
        %v2616 = vsub.f32 0.0, %v2448
        %v2617 = vsub.f32 0.0, %v2497
        %v2618 = vsub.f32 0.0, %v2546
        %v2619 = vsub.f32 0.0, %v2254
        %v2620 = vsub.f32 0.0, %v2303
        %v2621 = vsub.f32 0.0, %v2352
        %v2622 = vsub.f32 0.0, %v2401
        %v2623 = vsub.f32 0.0, %v2450
        %v2624 = vsub.f32 0.0, %v2499
        %v2625 = vsub.f32 0.0, %v2548
        %v2626 = vsub.f32 0.0, %v2257
        %v2627 = vsub.f32 0.0, %v2306
        %v2628 = vsub.f32 0.0, %v2355
        %v2629 = vsub.f32 0.0, %v2404
        %v2630 = vsub.f32 0.0, %v2453
        %v2631 = vsub.f32 0.0, %v2502
        %v2632 = vsub.f32 0.0, %v2551
        %v2633 = vsub.f32 0.0, %v2259
        %v2634 = vsub.f32 0.0, %v2308
        %v2635 = vsub.f32 0.0, %v2357
        %v2636 = vsub.f32 0.0, %v2406
        %v2637 = vsub.f32 0.0, %v2455
        %v2638 = vsub.f32 0.0, %v2504
        %v2639 = vsub.f32 0.0, %v2553
        %v2640 = vsub.f32 0.0, %v2262
        %v2641 = vsub.f32 0.0, %v2311
        %v2642 = vsub.f32 0.0, %v2360
        %v2643 = vsub.f32 0.0, %v2409
        %v2644 = vsub.f32 0.0, %v2458
        %v2645 = vsub.f32 0.0, %v2507
        %v2646 = vsub.f32 0.0, %v2556
        %v2647 = vsub.f32 0.0, %v2264
        %v2648 = vsub.f32 0.0, %v2313
        %v2649 = vsub.f32 0.0, %v2362
        %v2650 = vsub.f32 0.0, %v2411
        %v2651 = vsub.f32 0.0, %v2460
        %v2652 = vsub.f32 0.0, %v2509
        %v2653 = vsub.f32 0.0, %v2558
        %v2654 = vsub.f32 0.0, %v2267
        %v2655 = vsub.f32 0.0, %v2316
        %v2656 = vsub.f32 0.0, %v2365
        %v2657 = vsub.f32 0.0, %v2414
        %v2658 = vsub.f32 0.0, %v2463
        %v2659 = vsub.f32 0.0, %v2512
        %v2660 = vsub.f32 0.0, %v2561
        %v2661 = vsub.f32 0.0, %v2269
        %v2662 = vsub.f32 0.0, %v2318
        %v2663 = vsub.f32 0.0, %v2367
        %v2664 = vsub.f32 0.0, %v2416
        %v2665 = vsub.f32 0.0, %v2465
        %v2666 = vsub.f32 0.0, %v2514
        %v2667 = vsub.f32 0.0, %v2563
        %v2668 = vsub.f32 0.0, %v2272
        %v2669 = vsub.f32 0.0, %v2321
        %v2670 = vsub.f32 0.0, %v2370
        %v2671 = vsub.f32 0.0, %v2419
        %v2672 = vsub.f32 0.0, %v2468
        %v2673 = vsub.f32 0.0, %v2517
        %v2674 = vsub.f32 0.0, %v2566
        %v2675 = vsub.f32 0.0, %v2274
        %v2676 = vsub.f32 0.0, %v2323
        %v2677 = vsub.f32 0.0, %v2372
        %v2678 = vsub.f32 0.0, %v2421
        %v2679 = vsub.f32 0.0, %v2470
        %v2680 = vsub.f32 0.0, %v2519
        %v2681 = vsub.f32 0.0, %v2568
        %v2682 = vmul.f32 %v2570, 1.442695
        %v2683 = vpow.pop %v2682
        %v2684 = vmul.f32 %v2571, 1.442695
        %v2685 = vpow.pop %v2684
        %v2686 = vmul.f32 %v2572, 1.442695
        %v2687 = vpow.pop %v2686
        %v2688 = vmul.f32 %v2573, 1.442695
        %v2689 = vpow.pop %v2688
        %v2690 = vmul.f32 %v2574, 1.442695
        %v2691 = vpow.pop %v2690
        %v2692 = vmul.f32 %v2575, 1.442695
        %v2693 = vpow.pop %v2692
        %v2694 = vmul.f32 %v2576, 1.442695
        %v2695 = vpow.pop %v2694
        %v2696 = vmul.f32 %v2577, 1.442695
        %v2697 = vpow.pop %v2696
        %v2698 = vmul.f32 %v2578, 1.442695
        %v2699 = vpow.pop %v2698
        %v2700 = vmul.f32 %v2579, 1.442695
        %v2701 = vpow.pop %v2700
        %v2702 = vmul.f32 %v2580, 1.442695
        %v2703 = vpow.pop %v2702
        %v2704 = vmul.f32 %v2581, 1.442695
        %v2705 = vpow.pop %v2704
        %v2706 = vmul.f32 %v2582, 1.442695
        %v2707 = vpow.pop %v2706
        %v2708 = vmul.f32 %v2583, 1.442695
        %v2709 = vpow.pop %v2708
        %v2710 = vmul.f32 %v2584, 1.442695
        %v2711 = vpow.pop %v2710
        %v2712 = vmul.f32 %v2585, 1.442695
        %v2713 = vpow.pop %v2712
        %v2714 = vmul.f32 %v2586, 1.442695
        %v2715 = vpow.pop %v2714
        %v2716 = vmul.f32 %v2587, 1.442695
        %v2717 = vpow.pop %v2716
        %v2718 = vmul.f32 %v2588, 1.442695
        %v2719 = vpow.pop %v2718
        %v2720 = vmul.f32 %v2589, 1.442695
        %v2721 = vpow.pop %v2720
        %v2722 = vmul.f32 %v2590, 1.442695
        %v2723 = vpow.pop %v2722
        %v2724 = vmul.f32 %v2591, 1.442695
        %v2725 = vpow.pop %v2724
        %v2726 = vmul.f32 %v2592, 1.442695
        %v2727 = vpow.pop %v2726
        %v2728 = vmul.f32 %v2593, 1.442695
        %v2729 = vpow.pop %v2728
        %v2730 = vmul.f32 %v2594, 1.442695
        %v2731 = vpow.pop %v2730
        %v2732 = vmul.f32 %v2595, 1.442695
        %v2733 = vpow.pop %v2732
        %v2734 = vmul.f32 %v2596, 1.442695
        %v2735 = vpow.pop %v2734
        %v2736 = vmul.f32 %v2597, 1.442695
        %v2737 = vpow.pop %v2736
        %v2738 = vmul.f32 %v2598, 1.442695
        %v2739 = vpow.pop %v2738
        %v2740 = vmul.f32 %v2599, 1.442695
        %v2741 = vpow.pop %v2740
        %v2742 = vmul.f32 %v2600, 1.442695
        %v2743 = vpow.pop %v2742
        %v2744 = vmul.f32 %v2601, 1.442695
        %v2745 = vpow.pop %v2744
        %v2746 = vmul.f32 %v2602, 1.442695
        %v2747 = vpow.pop %v2746
        %v2748 = vmul.f32 %v2603, 1.442695
        %v2749 = vpow.pop %v2748
        %v2750 = vmul.f32 %v2604, 1.442695
        %v2751 = vpow.pop %v2750
        %v2752 = vmul.f32 %v2605, 1.442695
        %v2753 = vpow.pop %v2752
        %v2754 = vmul.f32 %v2606, 1.442695
        %v2755 = vpow.pop %v2754
        %v2756 = vmul.f32 %v2607, 1.442695
        %v2757 = vpow.pop %v2756
        %v2758 = vmul.f32 %v2608, 1.442695
        %v2759 = vpow.pop %v2758
        %v2760 = vmul.f32 %v2609, 1.442695
        %v2761 = vpow.pop %v2760
        %v2762 = vmul.f32 %v2610, 1.442695
        %v2763 = vpow.pop %v2762
        %v2764 = vmul.f32 %v2611, 1.442695
        %v2765 = vpow.pop %v2764
        %v2766 = vmul.f32 %v2612, 1.442695
        %v2767 = vpow.pop %v2766
        %v2768 = vmul.f32 %v2613, 1.442695
        %v2769 = vpow.pop %v2768
        %v2770 = vmul.f32 %v2614, 1.442695
        %v2771 = vpow.pop %v2770
        %v2772 = vmul.f32 %v2615, 1.442695
        %v2773 = vpow.pop %v2772
        %v2774 = vmul.f32 %v2616, 1.442695
        %v2775 = vpow.pop %v2774
        %v2776 = vmul.f32 %v2617, 1.442695
        %v2777 = vpow.pop %v2776
        %v2778 = vmul.f32 %v2618, 1.442695
        %v2779 = vpow.pop %v2778
        %v2780 = vmul.f32 %v2619, 1.442695
        %v2781 = vpow.pop %v2780
        %v2782 = vmul.f32 %v2620, 1.442695
        %v2783 = vpow.pop %v2782
        %v2784 = vmul.f32 %v2621, 1.442695
        %v2785 = vpow.pop %v2784
        %v2786 = vmul.f32 %v2622, 1.442695
        %v2787 = vpow.pop %v2786
        %v2788 = vmul.f32 %v2623, 1.442695
        %v2789 = vpow.pop %v2788
        %v2790 = vmul.f32 %v2624, 1.442695
        %v2791 = vpow.pop %v2790
        %v2792 = vmul.f32 %v2625, 1.442695
        %v2793 = vpow.pop %v2792
        %v2794 = vmul.f32 %v2626, 1.442695
        %v2795 = vpow.pop %v2794
        %v2796 = vmul.f32 %v2627, 1.442695
        %v2797 = vpow.pop %v2796
        %v2798 = vmul.f32 %v2628, 1.442695
        %v2799 = vpow.pop %v2798
        %v2800 = vmul.f32 %v2629, 1.442695
        %v2801 = vpow.pop %v2800
        %v2802 = vmul.f32 %v2630, 1.442695
        %v2803 = vpow.pop %v2802
        %v2804 = vmul.f32 %v2631, 1.442695
        %v2805 = vpow.pop %v2804
        %v2806 = vmul.f32 %v2632, 1.442695
        %v2807 = vpow.pop %v2806
        %v2808 = vmul.f32 %v2633, 1.442695
        %v2809 = vpow.pop %v2808
        %v2810 = vmul.f32 %v2634, 1.442695
        %v2811 = vpow.pop %v2810
        %v2812 = vmul.f32 %v2635, 1.442695
        %v2813 = vpow.pop %v2812
        %v2814 = vmul.f32 %v2636, 1.442695
        %v2815 = vpow.pop %v2814
        %v2816 = vmul.f32 %v2637, 1.442695
        %v2817 = vpow.pop %v2816
        %v2818 = vmul.f32 %v2638, 1.442695
        %v2819 = vpow.pop %v2818
        %v2820 = vmul.f32 %v2639, 1.442695
        %v2821 = vpow.pop %v2820
        %v2822 = vmul.f32 %v2640, 1.442695
        %v2823 = vpow.pop %v2822
        %v2824 = vmul.f32 %v2641, 1.442695
        %v2825 = vpow.pop %v2824
        %v2826 = vmul.f32 %v2642, 1.442695
        %v2827 = vpow.pop %v2826
        %v2828 = vmul.f32 %v2643, 1.442695
        %v2829 = vpow.pop %v2828
        %v2830 = vmul.f32 %v2644, 1.442695
        %v2831 = vpow.pop %v2830
        %v2832 = vmul.f32 %v2645, 1.442695
        %v2833 = vpow.pop %v2832
        %v2834 = vmul.f32 %v2646, 1.442695
        %v2835 = vpow.pop %v2834
        %v2836 = vmul.f32 %v2647, 1.442695
        %v2837 = vpow.pop %v2836
        %v2838 = vmul.f32 %v2648, 1.442695
        %v2839 = vpow.pop %v2838
        %v2840 = vmul.f32 %v2649, 1.442695
        %v2841 = vpow.pop %v2840
        %v2842 = vmul.f32 %v2650, 1.442695
        %v2843 = vpow.pop %v2842
        %v2844 = vmul.f32 %v2651, 1.442695
        %v2845 = vpow.pop %v2844
        %v2846 = vmul.f32 %v2652, 1.442695
        %v2847 = vpow.pop %v2846
        %v2848 = vmul.f32 %v2653, 1.442695
        %v2849 = vpow.pop %v2848
        %v2850 = vmul.f32 %v2654, 1.442695
        %v2851 = vpow.pop %v2850
        %v2852 = vmul.f32 %v2655, 1.442695
        %v2853 = vpow.pop %v2852
        %v2854 = vmul.f32 %v2656, 1.442695
        %v2855 = vpow.pop %v2854
        %v2856 = vmul.f32 %v2657, 1.442695
        %v2857 = vpow.pop %v2856
        %v2858 = vmul.f32 %v2658, 1.442695
        %v2859 = vpow.pop %v2858
        %v2860 = vmul.f32 %v2659, 1.442695
        %v2861 = vpow.pop %v2860
        %v2862 = vmul.f32 %v2660, 1.442695
        %v2863 = vpow.pop %v2862
        %v2864 = vmul.f32 %v2661, 1.442695
        %v2865 = vpow.pop %v2864
        %v2866 = vmul.f32 %v2662, 1.442695
        %v2867 = vpow.pop %v2866
        %v2868 = vmul.f32 %v2663, 1.442695
        %v2869 = vpow.pop %v2868
        %v2870 = vmul.f32 %v2664, 1.442695
        %v2871 = vpow.pop %v2870
        %v2872 = vmul.f32 %v2665, 1.442695
        %v2873 = vpow.pop %v2872
        %v2874 = vmul.f32 %v2666, 1.442695
        %v2875 = vpow.pop %v2874
        %v2876 = vmul.f32 %v2667, 1.442695
        %v2877 = vpow.pop %v2876
        %v2878 = vmul.f32 %v2668, 1.442695
        %v2879 = vpow.pop %v2878
        %v2880 = vmul.f32 %v2669, 1.442695
        %v2881 = vpow.pop %v2880
        %v2882 = vmul.f32 %v2670, 1.442695
        %v2883 = vpow.pop %v2882
        %v2884 = vmul.f32 %v2671, 1.442695
        %v2885 = vpow.pop %v2884
        %v2886 = vmul.f32 %v2672, 1.442695
        %v2887 = vpow.pop %v2886
        %v2888 = vmul.f32 %v2673, 1.442695
        %v2889 = vpow.pop %v2888
        %v2890 = vmul.f32 %v2674, 1.442695
        %v2891 = vpow.pop %v2890
        %v2892 = vmul.f32 %v2675, 1.442695
        %v2893 = vpow.pop %v2892
        %v2894 = vmul.f32 %v2676, 1.442695
        %v2895 = vpow.pop %v2894
        %v2896 = vmul.f32 %v2677, 1.442695
        %v2897 = vpow.pop %v2896
        %v2898 = vmul.f32 %v2678, 1.442695
        %v2899 = vpow.pop %v2898
        %v2900 = vmul.f32 %v2679, 1.442695
        %v2901 = vpow.pop %v2900
        %v2902 = vmul.f32 %v2680, 1.442695
        %v2903 = vpow.pop %v2902
        %v2904 = vmul.f32 %v2681, 1.442695
        %v2905 = vpow.pop %v2904
        %v2906 = vadd.f32 %v2683, 1.0
        %v2907 = vadd.f32 %v2685, 1.0
        %v2908 = vadd.f32 %v2687, 1.0
        %v2909 = vadd.f32 %v2689, 1.0
        %v2910 = vadd.f32 %v2691, 1.0
        %v2911 = vadd.f32 %v2693, 1.0
        %v2912 = vadd.f32 %v2695, 1.0
        %v2913 = vadd.f32 %v2697, 1.0
        %v2914 = vadd.f32 %v2699, 1.0
        %v2915 = vadd.f32 %v2701, 1.0
        %v2916 = vadd.f32 %v2703, 1.0
        %v2917 = vadd.f32 %v2705, 1.0
        %v2918 = vadd.f32 %v2707, 1.0
        %v2919 = vadd.f32 %v2709, 1.0
        %v2920 = vadd.f32 %v2711, 1.0
        %v2921 = vadd.f32 %v2713, 1.0
        %v2922 = vadd.f32 %v2715, 1.0
        %v2923 = vadd.f32 %v2717, 1.0
        %v2924 = vadd.f32 %v2719, 1.0
        %v2925 = vadd.f32 %v2721, 1.0
        %v2926 = vadd.f32 %v2723, 1.0
        %v2927 = vadd.f32 %v2725, 1.0
        %v2928 = vadd.f32 %v2727, 1.0
        %v2929 = vadd.f32 %v2729, 1.0
        %v2930 = vadd.f32 %v2731, 1.0
        %v2931 = vadd.f32 %v2733, 1.0
        %v2932 = vadd.f32 %v2735, 1.0
        %v2933 = vadd.f32 %v2737, 1.0
        %v2934 = vadd.f32 %v2739, 1.0
        %v2935 = vadd.f32 %v2741, 1.0
        %v2936 = vadd.f32 %v2743, 1.0
        %v2937 = vadd.f32 %v2745, 1.0
        %v2938 = vadd.f32 %v2747, 1.0
        %v2939 = vadd.f32 %v2749, 1.0
        %v2940 = vadd.f32 %v2751, 1.0
        %v2941 = vadd.f32 %v2753, 1.0
        %v2942 = vadd.f32 %v2755, 1.0
        %v2943 = vadd.f32 %v2757, 1.0
        %v2944 = vadd.f32 %v2759, 1.0
        %v2945 = vadd.f32 %v2761, 1.0
        %v2946 = vadd.f32 %v2763, 1.0
        %v2947 = vadd.f32 %v2765, 1.0
        %v2948 = vadd.f32 %v2767, 1.0
        %v2949 = vadd.f32 %v2769, 1.0
        %v2950 = vadd.f32 %v2771, 1.0
        %v2951 = vadd.f32 %v2773, 1.0
        %v2952 = vadd.f32 %v2775, 1.0
        %v2953 = vadd.f32 %v2777, 1.0
        %v2954 = vadd.f32 %v2779, 1.0
        %v2955 = vadd.f32 %v2781, 1.0
        %v2956 = vadd.f32 %v2783, 1.0
        %v2957 = vadd.f32 %v2785, 1.0
        %v2958 = vadd.f32 %v2787, 1.0
        %v2959 = vadd.f32 %v2789, 1.0
        %v2960 = vadd.f32 %v2791, 1.0
        %v2961 = vadd.f32 %v2793, 1.0
        %v2962 = vadd.f32 %v2795, 1.0
        %v2963 = vadd.f32 %v2797, 1.0
        %v2964 = vadd.f32 %v2799, 1.0
        %v2965 = vadd.f32 %v2801, 1.0
        %v2966 = vadd.f32 %v2803, 1.0
        %v2967 = vadd.f32 %v2805, 1.0
        %v2968 = vadd.f32 %v2807, 1.0
        %v2969 = vadd.f32 %v2809, 1.0
        %v2970 = vadd.f32 %v2811, 1.0
        %v2971 = vadd.f32 %v2813, 1.0
        %v2972 = vadd.f32 %v2815, 1.0
        %v2973 = vadd.f32 %v2817, 1.0
        %v2974 = vadd.f32 %v2819, 1.0
        %v2975 = vadd.f32 %v2821, 1.0
        %v2976 = vadd.f32 %v2823, 1.0
        %v2977 = vadd.f32 %v2825, 1.0
        %v2978 = vadd.f32 %v2827, 1.0
        %v2979 = vadd.f32 %v2829, 1.0
        %v2980 = vadd.f32 %v2831, 1.0
        %v2981 = vadd.f32 %v2833, 1.0
        %v2982 = vadd.f32 %v2835, 1.0
        %v2983 = vadd.f32 %v2837, 1.0
        %v2984 = vadd.f32 %v2839, 1.0
        %v2985 = vadd.f32 %v2841, 1.0
        %v2986 = vadd.f32 %v2843, 1.0
        %v2987 = vadd.f32 %v2845, 1.0
        %v2988 = vadd.f32 %v2847, 1.0
        %v2989 = vadd.f32 %v2849, 1.0
        %v2990 = vadd.f32 %v2851, 1.0
        %v2991 = vadd.f32 %v2853, 1.0
        %v2992 = vadd.f32 %v2855, 1.0
        %v2993 = vadd.f32 %v2857, 1.0
        %v2994 = vadd.f32 %v2859, 1.0
        %v2995 = vadd.f32 %v2861, 1.0
        %v2996 = vadd.f32 %v2863, 1.0
        %v2997 = vadd.f32 %v2865, 1.0
        %v2998 = vadd.f32 %v2867, 1.0
        %v2999 = vadd.f32 %v2869, 1.0
        %v3000 = vadd.f32 %v2871, 1.0
        %v3001 = vadd.f32 %v2873, 1.0
        %v3002 = vadd.f32 %v2875, 1.0
        %v3003 = vadd.f32 %v2877, 1.0
        %v3004 = vadd.f32 %v2879, 1.0
        %v3005 = vadd.f32 %v2881, 1.0
        %v3006 = vadd.f32 %v2883, 1.0
        %v3007 = vadd.f32 %v2885, 1.0
        %v3008 = vadd.f32 %v2887, 1.0
        %v3009 = vadd.f32 %v2889, 1.0
        %v3010 = vadd.f32 %v2891, 1.0
        %v3011 = vadd.f32 %v2893, 1.0
        %v3012 = vadd.f32 %v2895, 1.0
        %v3013 = vadd.f32 %v2897, 1.0
        %v3014 = vadd.f32 %v2899, 1.0
        %v3015 = vadd.f32 %v2901, 1.0
        %v3016 = vadd.f32 %v2903, 1.0
        %v3017 = vadd.f32 %v2905, 1.0
        %v3018 = vrcp.pop %v2906
        %v3019 = vrcp.pop %v2907
        %v3020 = vrcp.pop %v2908
        %v3021 = vrcp.pop %v2909
        %v3022 = vrcp.pop %v2910
        %v3023 = vrcp.pop %v2911
        %v3024 = vrcp.pop %v2912
        %v3025 = vrcp.pop %v2913
        %v3026 = vrcp.pop %v2914
        %v3027 = vrcp.pop %v2915
        %v3028 = vrcp.pop %v2916
        %v3029 = vrcp.pop %v2917
        %v3030 = vrcp.pop %v2918
        %v3031 = vrcp.pop %v2919
        %v3032 = vrcp.pop %v2920
        %v3033 = vrcp.pop %v2921
        %v3034 = vrcp.pop %v2922
        %v3035 = vrcp.pop %v2923
        %v3036 = vrcp.pop %v2924
        %v3037 = vrcp.pop %v2925
        %v3038 = vrcp.pop %v2926
        %v3039 = vrcp.pop %v2927
        %v3040 = vrcp.pop %v2928
        %v3041 = vrcp.pop %v2929
        %v3042 = vrcp.pop %v2930
        %v3043 = vrcp.pop %v2931
        %v3044 = vrcp.pop %v2932
        %v3045 = vrcp.pop %v2933
        %v3046 = vrcp.pop %v2934
        %v3047 = vrcp.pop %v2935
        %v3048 = vrcp.pop %v2936
        %v3049 = vrcp.pop %v2937
        %v3050 = vrcp.pop %v2938
        %v3051 = vrcp.pop %v2939
        %v3052 = vrcp.pop %v2940
        %v3053 = vrcp.pop %v2941
        %v3054 = vrcp.pop %v2942
        %v3055 = vrcp.pop %v2943
        %v3056 = vrcp.pop %v2944
        %v3057 = vrcp.pop %v2945
        %v3058 = vrcp.pop %v2946
        %v3059 = vrcp.pop %v2947
        %v3060 = vrcp.pop %v2948
        %v3061 = vrcp.pop %v2949
        %v3062 = vrcp.pop %v2950
        %v3063 = vrcp.pop %v2951
        %v3064 = vrcp.pop %v2952
        %v3065 = vrcp.pop %v2953
        %v3066 = vrcp.pop %v2954
        %v3067 = vrcp.pop %v2955
        %v3068 = vrcp.pop %v2956
        %v3069 = vrcp.pop %v2957
        %v3070 = vrcp.pop %v2958
        %v3071 = vrcp.pop %v2959
        %v3072 = vrcp.pop %v2960
        %v3073 = vrcp.pop %v2961
        %v3074 = vrcp.pop %v2962
        %v3075 = vrcp.pop %v2963
        %v3076 = vrcp.pop %v2964
        %v3077 = vrcp.pop %v2965
        %v3078 = vrcp.pop %v2966
        %v3079 = vrcp.pop %v2967
        %v3080 = vrcp.pop %v2968
        %v3081 = vrcp.pop %v2969
        %v3082 = vrcp.pop %v2970
        %v3083 = vrcp.pop %v2971
        %v3084 = vrcp.pop %v2972
        %v3085 = vrcp.pop %v2973
        %v3086 = vrcp.pop %v2974
        %v3087 = vrcp.pop %v2975
        %v3088 = vrcp.pop %v2976
        %v3089 = vrcp.pop %v2977
        %v3090 = vrcp.pop %v2978
        %v3091 = vrcp.pop %v2979
        %v3092 = vrcp.pop %v2980
        %v3093 = vrcp.pop %v2981
        %v3094 = vrcp.pop %v2982
        %v3095 = vrcp.pop %v2983
        %v3096 = vrcp.pop %v2984
        %v3097 = vrcp.pop %v2985
        %v3098 = vrcp.pop %v2986
        %v3099 = vrcp.pop %v2987
        %v3100 = vrcp.pop %v2988
        %v3101 = vrcp.pop %v2989
        %v3102 = vrcp.pop %v2990
        %v3103 = vrcp.pop %v2991
        %v3104 = vrcp.pop %v2992
        %v3105 = vrcp.pop %v2993
        %v3106 = vrcp.pop %v2994
        %v3107 = vrcp.pop %v2995
        %v3108 = vrcp.pop %v2996
        %v3109 = vrcp.pop %v2997
        %v3110 = vrcp.pop %v2998
        %v3111 = vrcp.pop %v2999
        %v3112 = vrcp.pop %v3000
        %v3113 = vrcp.pop %v3001
        %v3114 = vrcp.pop %v3002
        %v3115 = vrcp.pop %v3003
        %v3116 = vrcp.pop %v3004
        %v3117 = vrcp.pop %v3005
        %v3118 = vrcp.pop %v3006
        %v3119 = vrcp.pop %v3007
        %v3120 = vrcp.pop %v3008
        %v3121 = vrcp.pop %v3009
        %v3122 = vrcp.pop %v3010
        %v3123 = vrcp.pop %v3011
        %v3124 = vrcp.pop %v3012
        %v3125 = vrcp.pop %v3013
        %v3126 = vrcp.pop %v3014
        %v3127 = vrcp.pop %v3015
        %v3128 = vrcp.pop %v3016
        %v3129 = vrcp.pop %v3017
        %v3130 = vpack.c.bf16 %v3019, %v3018
        %v3131 = vpack.c.bf16 %v3021, %v3020
        %v3132 = vpack.c.bf16 %v3023, %v3022
        %v3133 = vpack.c.bf16 %v3024, %v3024
        %v3134 = vpack.c.bf16 %v3026, %v3025
        %v3135 = vpack.c.bf16 %v3028, %v3027
        %v3136 = vpack.c.bf16 %v3030, %v3029
        %v3137 = vpack.c.bf16 %v3031, %v3031
        %v3138 = vpack.c.bf16 %v3033, %v3032
        %v3139 = vpack.c.bf16 %v3035, %v3034
        %v3140 = vpack.c.bf16 %v3037, %v3036
        %v3141 = vpack.c.bf16 %v3038, %v3038
        %v3142 = vpack.c.bf16 %v3040, %v3039
        %v3143 = vpack.c.bf16 %v3042, %v3041
        %v3144 = vpack.c.bf16 %v3044, %v3043
        %v3145 = vpack.c.bf16 %v3045, %v3045
        %v3146 = vpack.c.bf16 %v3047, %v3046
        %v3147 = vpack.c.bf16 %v3049, %v3048
        %v3148 = vpack.c.bf16 %v3051, %v3050
        %v3149 = vpack.c.bf16 %v3052, %v3052
        %v3150 = vpack.c.bf16 %v3054, %v3053
        %v3151 = vpack.c.bf16 %v3056, %v3055
        %v3152 = vpack.c.bf16 %v3058, %v3057
        %v3153 = vpack.c.bf16 %v3059, %v3059
        %v3154 = vpack.c.bf16 %v3061, %v3060
        %v3155 = vpack.c.bf16 %v3063, %v3062
        %v3156 = vpack.c.bf16 %v3065, %v3064
        %v3157 = vpack.c.bf16 %v3066, %v3066
        %v3158 = vpack.c.bf16 %v3068, %v3067
        %v3159 = vpack.c.bf16 %v3070, %v3069
        %v3160 = vpack.c.bf16 %v3072, %v3071
        %v3161 = vpack.c.bf16 %v3073, %v3073
        %v3162 = vpack.c.bf16 %v3075, %v3074
        %v3163 = vpack.c.bf16 %v3077, %v3076
        %v3164 = vpack.c.bf16 %v3079, %v3078
        %v3165 = vpack.c.bf16 %v3080, %v3080
        %v3166 = vpack.c.bf16 %v3082, %v3081
        %v3167 = vpack.c.bf16 %v3084, %v3083
        %v3168 = vpack.c.bf16 %v3086, %v3085
        %v3169 = vpack.c.bf16 %v3087, %v3087
        %v3170 = vpack.c.bf16 %v3089, %v3088
        %v3171 = vpack.c.bf16 %v3091, %v3090
        %v3172 = vpack.c.bf16 %v3093, %v3092
        %v3173 = vpack.c.bf16 %v3094, %v3094
        %v3174 = vpack.c.bf16 %v3096, %v3095
        %v3175 = vpack.c.bf16 %v3098, %v3097
        %v3176 = vpack.c.bf16 %v3100, %v3099
        %v3177 = vpack.c.bf16 %v3101, %v3101
        %v3178 = vpack.c.bf16 %v3103, %v3102
        %v3179 = vpack.c.bf16 %v3105, %v3104
        %v3180 = vpack.c.bf16 %v3107, %v3106
        %v3181 = vpack.c.bf16 %v3108, %v3108
        %v3182 = vpack.c.bf16 %v3110, %v3109
        %v3183 = vpack.c.bf16 %v3112, %v3111
        %v3184 = vpack.c.bf16 %v3114, %v3113
        %v3185 = vpack.c.bf16 %v3115, %v3115
        %v3186 = vpack.c.bf16 %v3117, %v3116
        %v3187 = vpack.c.bf16 %v3119, %v3118
        %v3188 = vpack.c.bf16 %v3121, %v3120
        %v3189 = vpack.c.bf16 %v3122, %v3122
        %v3190 = vpack.c.bf16 %v3124, %v3123
        %v3191 = vpack.c.bf16 %v3126, %v3125
        %v3192 = vpack.c.bf16 %v3128, %v3127
        %v3193 = vpack.c.bf16 %v3129, %v3129
        %3194 = vst [vmem:[%s402] sm:$0xff] %v3130
        %3195 = vst [vmem:[%s402 + $0x8] sm:$0xff] %v3131
        %3196 = vst [vmem:[%s402 + $0x10] sm:$0xff] %v3132
        %3197 = vst [vmem:[%s402 + $0x18] sm:$0xf] %v3133
        %3198 = vst [vmem:[%s402 + $0x1c] sm:$0xff] %v3134
        %3199 = vst [vmem:[%s402 + $0x24] sm:$0xff] %v3135
        %3200 = vst [vmem:[%s402 + $0x2c] sm:$0xff] %v3136
        %3201 = vst [vmem:[%s402 + $0x34] sm:$0xf] %v3137
        %3202 = vst [vmem:[%s402 + $0x38] sm:$0xff] %v3138
        %3203 = vst [vmem:[%s402 + $0x40] sm:$0xff] %v3139
        %3204 = vst [vmem:[%s402 + $0x48] sm:$0xff] %v3140
        %3205 = vst [vmem:[%s402 + $0x50] sm:$0xf] %v3141
        %3206 = vst [vmem:[%s402 + $0x54] sm:$0xff] %v3142
        %3207 = vst [vmem:[%s402 + $0x5c] sm:$0xff] %v3143
        %3208 = vst [vmem:[%s402 + $0x64] sm:$0xff] %v3144
        %3209 = vst [vmem:[%s402 + $0x6c] sm:$0xf] %v3145
        %3210 = vst [vmem:[%s402 + $0x70] sm:$0xff] %v3146
        %3211 = vst [vmem:[%s402 + $0x78] sm:$0xff] %v3147
        %3212 = vst [vmem:[%s402 + $0x80] sm:$0xff] %v3148
        %3213 = vst [vmem:[%s402 + $0x88] sm:$0xf] %v3149
        %3214 = vst [vmem:[%s402 + $0x8c] sm:$0xff] %v3150
        %3215 = vst [vmem:[%s402 + $0x94] sm:$0xff] %v3151
        %3216 = vst [vmem:[%s402 + $0x9c] sm:$0xff] %v3152
        %3217 = vst [vmem:[%s402 + $0xa4] sm:$0xf] %v3153
        %3218 = vst [vmem:[%s402 + $0xa8] sm:$0xff] %v3154
        %3219 = vst [vmem:[%s402 + $0xb0] sm:$0xff] %v3155
        %3220 = vst [vmem:[%s402 + $0xb8] sm:$0xff] %v3156
        %3221 = vst [vmem:[%s402 + $0xc0] sm:$0xf] %v3157
        %3222 = vst [vmem:[%s402 + $0xc4] sm:$0xff] %v3158
        %3223 = vst [vmem:[%s402 + $0xcc] sm:$0xff] %v3159
        %3224 = vst [vmem:[%s402 + $0xd4] sm:$0xff] %v3160
        %3225 = vst [vmem:[%s402 + $0xdc] sm:$0xf] %v3161
        %3226 = vst [vmem:[%s402 + $0xe0] sm:$0xff] %v3162
        %3227 = vst [vmem:[%s402 + $0xe8] sm:$0xff] %v3163
        %3228 = vst [vmem:[%s402 + $0xf0] sm:$0xff] %v3164
        %3229 = vst [vmem:[%s402 + $0xf8] sm:$0xf] %v3165
        %3230 = vst [vmem:[%s402 + $0xfc] sm:$0xff] %v3166
        %3231 = vst [vmem:[%s402 + $0x104] sm:$0xff] %v3167
        %3232 = vst [vmem:[%s402 + $0x10c] sm:$0xff] %v3168
        %3233 = vst [vmem:[%s402 + $0x114] sm:$0xf] %v3169
        %3234 = vst [vmem:[%s402 + $0x118] sm:$0xff] %v3170
        %3235 = vst [vmem:[%s402 + $0x120] sm:$0xff] %v3171
        %3236 = vst [vmem:[%s402 + $0x128] sm:$0xff] %v3172
        %3237 = vst [vmem:[%s402 + $0x130] sm:$0xf] %v3173
        %3238 = vst [vmem:[%s402 + $0x134] sm:$0xff] %v3174
        %3239 = vst [vmem:[%s402 + $0x13c] sm:$0xff] %v3175
        %3240 = vst [vmem:[%s402 + $0x144] sm:$0xff] %v3176
        %3241 = vst [vmem:[%s402 + $0x14c] sm:$0xf] %v3177
        %3242 = vst [vmem:[%s402 + $0x150] sm:$0xff] %v3178
        %3243 = vst [vmem:[%s402 + $0x158] sm:$0xff] %v3179
        %3244 = vst [vmem:[%s402 + $0x160] sm:$0xff] %v3180
        %3245 = vst [vmem:[%s402 + $0x168] sm:$0xf] %v3181
        %3246 = vst [vmem:[%s402 + $0x16c] sm:$0xff] %v3182
        %3247 = vst [vmem:[%s402 + $0x174] sm:$0xff] %v3183
        %3248 = vst [vmem:[%s402 + $0x17c] sm:$0xff] %v3184
        %3249 = vst [vmem:[%s402 + $0x184] sm:$0xf] %v3185
        %3250 = vst [vmem:[%s402 + $0x188] sm:$0xff] %v3186
        %3251 = vst [vmem:[%s402 + $0x190] sm:$0xff] %v3187
        %3252 = vst [vmem:[%s402 + $0x198] sm:$0xff] %v3188
        %3253 = vst [vmem:[%s402 + $0x1a0] sm:$0xf] %v3189
        %3254 = vst [vmem:[%s402 + $0x1a4] sm:$0xff] %v3190
        %3255 = vst [vmem:[%s402 + $0x1ac] sm:$0xff] %v3191
        %3256 = vst [vmem:[%s402 + $0x1b4] sm:$0xff] %v3192
        %3257 = vst [vmem:[%s402 + $0x1bc] sm:$0xf] %v3193
        %s3258 = sand.u32 %s257, 1
        %s3259 = scalar_lea.sflag [#allocation3], %s3258
        %s3260 = sand.u32 %s257, 1
        %s3261 = smul.addr %s3260, 448
        %s3262 = scalar_lea.vmem [#allocation2], %s3261
        %s3263 = sand.u32 %s283, 1
        %s3264 = scalar_lea.sflag [#allocation5], %s3263
        %s3265 = sand.u32 %s283, 1
        %s3266 = smul.addr %s3265, 256
        %s3267 = scalar_lea.vmem [#allocation4], %s3266
        // Predicated region
        $region61: #{tpu_custom_call.1} parent=59 // pred_check
          %p3268 = pneg %p267
        $region62: #{tpu_custom_call.1} parent=59 // pred_check_branch
          %3270 = sbr.rel (%p3268) target = $region64
        $region63: #{tpu_custom_call.1} parent=59 // pred_region
          %s3271 = smul.u32 16, %s29
          %3273 = vsyncadd %s3259, 0
          %s3274 = smul.addr %s3271, 7
          %s3275 = smul.addr %s3274, 4
          %s3276 = scalar_lea.hbm %s10, %s3275
          %s3277 = sshll.u32 %s3262, 4
          %s3278 = int_to_ptr.vmem [resolvable:$true] %s3277
          %s3279 = sshll.u32 %s3276, 4
          %s3280 = int_to_ptr.hbm [resolvable:$true] %s3279
          %3285 = dma.vmem_to_hbm [thread:$0]  %s3278, 7168, %s3280, %s3259, 448, 448, 28
        $region64: #{tpu_custom_call.1} parent=59 // pred_fallthru
          _
        // Predicated region
        $region65: #{tpu_custom_call.1} parent=59 // pred_check
          %p3286 = pneg %p293
        $region66: #{tpu_custom_call.1} parent=59 // pred_check_branch
          %3288 = sbr.rel (%p3286) target = $region68
        $region67: #{tpu_custom_call.1} parent=59 // pred_region
          %s3289 = smul.u32 16, %s29
          %3291 = vsyncadd %s3264, 0
          %s3292 = smul.addr %s3289, 2
          %s3293 = smul.addr %s3292, 8
          %s3294 = scalar_lea.hbm %s11, %s3293
          %s3295 = sshll.u32 %s3267, 4
          %s3296 = int_to_ptr.vmem [resolvable:$true] %s3295
          %s3297 = sshll.u32 %s3294, 4
          %s3298 = int_to_ptr.hbm [resolvable:$true] %s3297
          %3303 = dma.vmem_to_hbm [thread:$0]  %s3296, 4096, %s3298, %s3264, 256, 256, 16
        $region68: #{tpu_custom_call.1} parent=59 // pred_fallthru
          _
      $region60: #{tpu_custom_call.1} parent=5 // pred_fallthru
        _
      %p3304 = scmp.le.s32.totalorder 2, %s24
      // Predicated region
      $region69: #{tpu_custom_call.1} parent=5 // pred_check
        %p3305 = pneg %p3304
      $region70: #{tpu_custom_call.1} parent=5 // pred_check_branch
        %3307 = sbr.rel (%p3305) target = $region72
      $region71: #{tpu_custom_call.1} parent=5 // pred_region
        %s3308 = ssub.s32 %s24, 2
        // Predicated region
        $region73: #{tpu_custom_call.1} parent=71 // pred_check
          %p3309 = pneg %p273
        $region74: #{tpu_custom_call.1} parent=71 // pred_check_branch
          %3311 = sbr.rel (%p3309) target = $region76
        $region75: #{tpu_custom_call.1} parent=71 // pred_region
          %s3312 = sand.u32 %s258, 1
          %s3313 = scalar_lea.sflag [#allocation3], %s3312
          %s3314 = sand.u32 %s258, 1
          %s3315 = smul.addr %s3314, 448
          %s3316 = scalar_lea.vmem [#allocation2], %s3315
          %3318 = dma.done %s3313, 7168
        $region76: #{tpu_custom_call.1} parent=71 // pred_fallthru
          _
        // Predicated region
        $region77: #{tpu_custom_call.1} parent=71 // pred_check
          %p3319 = pneg %p299
        $region78: #{tpu_custom_call.1} parent=71 // pred_check_branch
          %3321 = sbr.rel (%p3319) target = $region80
        $region79: #{tpu_custom_call.1} parent=71 // pred_region
          %s3322 = sand.u32 %s284, 1
          %s3323 = scalar_lea.sflag [#allocation5], %s3322
          %s3324 = sand.u32 %s284, 1
          %s3325 = smul.addr %s3324, 256
          %s3326 = scalar_lea.vmem [#allocation4], %s3325
          %3328 = dma.done %s3323, 4096
        $region80: #{tpu_custom_call.1} parent=71 // pred_fallthru
          _
      $region72: #{tpu_custom_call.1} parent=5 // pred_fallthru
        _
    $region6: #{tpu_custom_call.1} parent=1 // loop_footer
      %s28 = sadd.s32 1, %s24
    $region7: #{tpu_custom_call.1} parent=1 // loop_footer_branch
      %23 = sbr.rel target = $region3
    $region8: #{tpu_custom_call.1} parent=1 // loop_exit
      _
    %3329 = vsyncpa [#allocation3], 1
    %s3330 = scalar_lea.sflag [#allocation3], 1
    %3331 = vsyncpa %s3330, 1
    %3332 = vsyncpa [#allocation5], 1
    %s3333 = scalar_lea.sflag [#allocation5], 1
    %3334 = vsyncpa %s3333, 1

</llo_original>
